<compile_context>
chip_gen: v6e
topology: v6e:2x2x1
jax: 0.10.0
libtpu: 0.0.40
codegen_flags: <defaults>
</compile_context>

<pallas_src>
import functools

import jax
import jax.numpy as jnp
from jax.experimental import pallas as pl
from jax.experimental.pallas import tpu as pltpu

_EPS = 1e-5  # BatchNorm eps (eval mode, folded into scale/bias)


@functools.lru_cache(maxsize=None)
def _vmem_limit_bytes():
    """Generation-aware VMEM limit: ~100 MiB on v5e/v6e (128 MiB physical),
    ~48 MiB on v7x (64 MiB physical)."""
    default = 48 * 1024 * 1024
    try:
        cap = getattr(pltpu.get_tpu_info(), "vmem_capacity_bytes", None)
        if not cap:
            return default
        return max(32 * 1024 * 1024, min(cap - 16 * 1024 * 1024, 100 * 1024 * 1024))
    except Exception:
        return default


# ----------------------------- kernel helpers ------------------------------ #

def _xcat_value(x, dt):
    """(H, W, Cin) -> (H+2, W, 3*Cin) kw-concatenated, SAME-zero-padded patch
    tensor: xcat[r, w, kw*Cin:(kw+1)*Cin] == x_padded[r, w+kw, :]."""
    H, W, Cin = x.shape
    x = x.astype(dt)
    zc = jnp.zeros((H, 1, Cin), dt)
    left = jnp.concatenate([zc, x[:, :W - 1, :]], axis=1)    # tap kw=0
    right = jnp.concatenate([x[:, 1:, :], zc], axis=1)       # tap kw=2
    body = jnp.concatenate([left, x, right], axis=-1)        # (H, W, 3*Cin)
    zrow = jnp.zeros((1, W, 3 * Cin), dt)
    return jnp.concatenate([zrow, body, zrow], axis=0)       # (H+2, W, 3*Cin)


def _conv_accumulate(xcat_ref, w_ref, H, W, K):
    """3 bf16 MXU matmuls (K = 3*Cin), f32 accumulation; first tap writes
    (no accumulator zero-init pass, no acc scratch)."""
    acc = jnp.dot(xcat_ref[0:H, :, :].reshape(H * W, K), w_ref[0],
                  preferred_element_type=jnp.float32)
    acc = acc + jnp.dot(xcat_ref[1:H + 1, :, :].reshape(H * W, K), w_ref[1],
                        preferred_element_type=jnp.float32)
    acc = acc + jnp.dot(xcat_ref[2:H + 2, :, :].reshape(H * W, K), w_ref[2],
                        preferred_element_type=jnp.float32)
    return acc


def _maxpool2x2(y, H, W, C):
    y = y.reshape(H, W, C)
    y = jnp.max(y.reshape(H // 2, 2, W, C), axis=1)
    y = jnp.max(y.reshape(H // 2, W // 2, 2, C), axis=2)
    return y                                                  # (H//2, W//2, C)


# ----------------------------- Pallas kernels ------------------------------ #

def _conv3x3_kernel(x_ref, w_ref, s_ref, b_ref, o_ref, xcat_ref, *, relu, pool):
    """3x3 SAME conv + folded-BN affine (+ ReLU) (+ fused 2x2/stride-2 maxpool).

    x_ref  : (1, H, W, Cin)      bf16 activation tile
    w_ref  : (3, 3*Cin, TC)      bf16 kw-fused weights
    s_ref, b_ref : (1, TC)       f32 folded scale / bias
    o_ref  : (1, Ho, Wo, TC)     (Ho=H//2, Wo=W//2 when pool)
    xcat_ref : VMEM (H+2, W, 3*Cin) bf16 patch scratch (built once per image)
    """
    _, H, W, Cin = x_ref.shape
    TC = o_ref.shape[3]
    K = 3 * Cin

    # Built only at Cout-tile 0; the scratch persists across the Cout grid
    # axis (marked "arbitrary"), and the x block index is constant across it.
    @pl.when(pl.program_id(1) == 0)
    def _():
        xcat_ref[...] = _xcat_value(x_ref[0], xcat_ref.dtype)

    acc = _conv_accumulate(xcat_ref, w_ref, H, W, K)

    y = acc * s_ref[...] + b_ref[...]
    if relu:
        y = jnp.maximum(y, 0.0)
    if pool:
        y = _maxpool2x2(y, H, W, TC)
        o_ref[...] = y.reshape(1, H // 2, W // 2, TC).astype(o_ref.dtype)
    else:
        o_ref[...] = y.reshape(1, H, W, TC).astype(o_ref.dtype)


def _conv3x3_dual_kernel(x_ref, w_ref, s_ref, b_ref, s2_ref, b2_ref,
                         o_raw_ref, o_pool_ref, xcat_ref):
    """conv4_3: raw conv output (node split, f32) AND fused
    bn4_3 + ReLU + maxpool4 (edge input, bf16) from one kernel."""
    _, H, W, Cin = x_ref.shape
    TC = o_raw_ref.shape[3]
    K = 3 * Cin

    @pl.when(pl.program_id(1) == 0)
    def _():
        xcat_ref[...] = _xcat_value(x_ref[0], xcat_ref.dtype)

    acc = _conv_accumulate(xcat_ref, w_ref, H, W, K)

    raw = acc * s_ref[...] + b_ref[...]                       # conv bias only
    o_raw_ref[...] = raw.reshape(1, H, W, TC).astype(o_raw_ref.dtype)

    y = jnp.maximum(raw * s2_ref[...] + b2_ref[...], 0.0)     # folded bn4_3+ReLU
    y = _maxpool2x2(y, H, W, TC)
    o_pool_ref[...] = y.reshape(1, H // 2, W // 2, TC).astype(o_pool_ref.dtype)


# --------------------------- pallas_call wrappers --------------------------- #

def _cout_tile(cout):
    return cout if cout <= 256 else 256


@functools.lru_cache(maxsize=None)
def _conv_call(N, H, W, Cin, Cout, relu, pool, out_dtype_name):
    TC = _cout_tile(Cout)
    Ho, Wo = (H // 2, W // 2) if pool else (H, W)
    out_dtype = jnp.dtype(out_dtype_name)
    kernel = functools.partial(_conv3x3_kernel, relu=relu, pool=pool)
    flops = 2 * N * H * W * 9 * Cin * Cout
    bytes_accessed = (2 * N * H * W * Cin + 2 * 9 * Cin * Cout
                      + out_dtype.itemsize * N * Ho * Wo * Cout + 8 * Cout)
    # TODO(synk): for 224x224 inputs add an H-strip grid axis (16-32 output rows,
    # 1-row halo) so per-step working sets fit v7x's 64 MiB VMEM, and give the
    # weight BlockSpec pipeline_mode=pl.Buffered(3) / weight-resident ordering.
    return pl.pallas_call(
        kernel,
        out_shape=jax.ShapeDtypeStruct((N, Ho, Wo, Cout), out_dtype),
        grid=(N, Cout // TC),
        in_specs=[
            pl.BlockSpec((1, H, W, Cin), lambda n, c: (n, 0, 0, 0)),
            pl.BlockSpec((3, 3 * Cin, TC), lambda n, c: (0, 0, c)),
            pl.BlockSpec((1, TC), lambda n, c: (0, c)),
            pl.BlockSpec((1, TC), lambda n, c: (0, c)),
        ],
        out_specs=pl.BlockSpec((1, Ho, Wo, TC), lambda n, c: (n, 0, 0, c)),
        scratch_shapes=[pltpu.VMEM((H + 2, W, 3 * Cin), jnp.bfloat16)],
        compiler_params=pltpu.CompilerParams(
            dimension_semantics=("parallel", "arbitrary"),
            vmem_limit_bytes=_vmem_limit_bytes()),
        cost_estimate=pl.CostEstimate(flops=flops, transcendentals=0,
                                      bytes_accessed=bytes_accessed),
    )


@functools.lru_cache(maxsize=None)
def _conv_dual_call(N, H, W, Cin, Cout):
    TC = _cout_tile(Cout)
    Ho, Wo = H // 2, W // 2
    flops = 2 * N * H * W * 9 * Cin * Cout
    bytes_accessed = (2 * N * H * W * Cin + 2 * 9 * Cin * Cout
                      + 4 * N * H * W * Cout + 2 * N * Ho * Wo * Cout + 16 * Cout)
    return pl.pallas_call(
        _conv3x3_dual_kernel,
        out_shape=(jax.ShapeDtypeStruct((N, H, W, Cout), jnp.float32),
                   jax.ShapeDtypeStruct((N, Ho, Wo, Cout), jnp.bfloat16)),
        grid=(N, Cout // TC),
        in_specs=[
            pl.BlockSpec((1, H, W, Cin), lambda n, c: (n, 0, 0, 0)),
            pl.BlockSpec((3, 3 * Cin, TC), lambda n, c: (0, 0, c)),
            pl.BlockSpec((1, TC), lambda n, c: (0, c)),
            pl.BlockSpec((1, TC), lambda n, c: (0, c)),
            pl.BlockSpec((1, TC), lambda n, c: (0, c)),
            pl.BlockSpec((1, TC), lambda n, c: (0, c)),
        ],
        out_specs=(pl.BlockSpec((1, H, W, TC), lambda n, c: (n, 0, 0, c)),
                   pl.BlockSpec((1, Ho, Wo, TC), lambda n, c: (n, 0, 0, c))),
        scratch_shapes=[pltpu.VMEM((H + 2, W, 3 * Cin), jnp.bfloat16)],
        compiler_params=pltpu.CompilerParams(
            dimension_semantics=("parallel", "arbitrary"),
            vmem_limit_bytes=_vmem_limit_bytes()),
        cost_estimate=pl.CostEstimate(flops=flops, transcendentals=0,
                                      bytes_accessed=bytes_accessed),
    )


def conv3x3(x, op):
    N, H, W, Cin = x.shape
    Cout = op['w'].shape[-1]
    call = _conv_call(N, H, W, Cin, Cout, bool(op['relu']), bool(op['pool']),
                      op['out_dtype'])
    return call(x, op['w'], op['scale'], op['bias'])


def conv3x3_dual(x, op):
    N, H, W, Cin = x.shape
    Cout = op['w'].shape[-1]
    call = _conv_dual_call(N, H, W, Cin, Cout)
    return call(x, op['w'], op['scale'], op['bias'], op['scale2'], op['bias2'])


# ------------------------------ parameters --------------------------------- #

def init_vgg16_base_params(seed=0):
    """Deterministic synthetic parameters matching the VGG16-BN layer shapes.
    (Pretrained torchvision weights are replaced by deterministic random init.)"""
    key = jax.random.PRNGKey(seed)
    counter = [0]

    def next_key():
        counter[0] += 1
        return jax.random.fold_in(key, counter[0])

    def vec(c, scale=0.05, offset=0.0):
        return offset + scale * jax.random.normal(next_key(), (c,), jnp.float32)

    def bn_fold(conv_bias, cout):
        gamma = vec(cout, 0.1, 1.0)
        beta = vec(cout)
        mean = vec(cout)
        var = 1.0 + 0.1 * jax.random.uniform(next_key(), (cout,), jnp.float32)
        scale = gamma / jnp.sqrt(var + _EPS)
        bias = beta + (conv_bias - mean) * scale
        return scale.reshape(1, -1), bias.reshape(1, -1)

    def conv_w(cin, cout):
        fan_in = cin * 9
        w = jax.random.normal(next_key(), (cout, cin, 3, 3),
                              jnp.float32) / jnp.sqrt(fan_in)
        # OIHW -> (KH, KW, Cin, Cout) -> kw-fused (KH, KW*Cin, Cout), kw-major.
        w = jnp.transpose(w, (2, 3, 1, 0)).reshape(3, 3 * cin, cout)
        return w.astype(jnp.bfloat16)

    def conv_op(cin, cout, *, bn, relu, pool, out_dtype='bfloat16'):
        w = conv_w(cin, cout)
        b = vec(cout)
        if bn:
            scale, bias = bn_fold(b, cout)
        else:
            scale, bias = jnp.ones((1, cout), jnp.float32), b.reshape(1, cout)
        return dict(w=w, scale=scale, bias=bias, relu=relu, pool=pool,
                    out_dtype=out_dtype)

    node_pre = [
        conv_op(3, 64, bn=True, relu=True, pool=False),        # conv1_1
        conv_op(64, 64, bn=True, relu=True, pool=True),         # conv1_2 (+pool1)
        conv_op(64, 128, bn=True, relu=True, pool=False),       # conv2_1
        conv_op(128, 128, bn=True, relu=True, pool=True),        # conv2_2 (+pool2)
        conv_op(128, 256, bn=True, relu=True, pool=False),       # conv3_1
        conv_op(256, 256, bn=True, relu=True, pool=False),       # conv3_2
        conv_op(256, 256, bn=True, relu=True, pool=True),        # conv3_3 (+pool3)
        conv_op(256, 512, bn=True, relu=True, pool=False),       # conv4_1
        conv_op(512, 512, bn=True, relu=True, pool=False),       # conv4_2
    ]
    # conv4_3 (node split: raw conv output) fused with bn4_3 + ReLU + maxpool4.
    w43 = conv_w(512, 512)
    b43 = vec(512)
    scale2, bias2 = bn_fold(jnp.zeros((512,), jnp.float32), 512)   # bn4_3
    conv4_3 = dict(w=w43, scale=jnp.ones((1, 512), jnp.float32),
                   bias=b43.reshape(1, 512), scale2=scale2, bias2=bias2)
    edge_ops = [
        conv_op(512, 512, bn=True, relu=True, pool=False),        # conv5_1+bn+ReLU
        conv_op(512, 512, bn=False, relu=False, pool=False,
                out_dtype='float32'),                             # conv5_2 (edge split)
    ]
    # TODO(synk): final_layers (bn5_2..maxpool5 + AdaptiveMaxPool2d) omitted because
    # VGG16_base(final_layers=False) sets self.final_layers = None.
    return dict(node_pre=node_pre, conv4_3=conv4_3, edge=edge_ops)


# ------------------------------ forward ------------------------------------ #

def vgg16_base_forward(x_nchw, params):
    """node_feat = node_layers(x); edge_feat = edge_layers(node_feat).
    Returns both in PyTorch NCHW layout (f32)."""
    x = jnp.transpose(x_nchw, (0, 2, 3, 1)).astype(jnp.bfloat16)   # NCHW -> NHWC bf16
    for op in params['node_pre']:
        x = conv3x3(x, op)
    node_raw, x = conv3x3_dual(x, params['conv4_3'])                # conv4_3 + bn/relu/pool4
    for op in params['edge']:
        x = conv3x3(x, op)
    node = jnp.transpose(node_raw, (0, 3, 1, 2))                    # f32 from kernel
    edge = jnp.transpose(x, (0, 3, 1, 2)).astype(jnp.float32)
    return node, edge


if __name__ == "__main__":
    params = init_vgg16_base_params(seed=0)
    x = jax.random.normal(jax.random.PRNGKey(0), (2, 3, 32, 32), jnp.float32)
    node_feat, edge_feat = vgg16_base_forward(x, params)
    jax.block_until_ready((node_feat, edge_feat))
    assert node_feat.shape == (2, 512, 4, 4), node_feat.shape   # conv4_3 output
    assert edge_feat.shape == (2, 512, 2, 2), edge_feat.shape   # conv5_2 output
    assert bool(jnp.isfinite(node_feat).all()) and bool(jnp.isfinite(edge_feat).all())
    print("KERNEL_OK")
</pallas_src>

<mosaic_0001>
module attributes {stable_mosaic.version = 11 : i64} {
  func.func @_conv3x3_kernel(%arg0: i32, %arg1: i32, %arg2: memref<1x32x32x3xbf16, #tpu.memory_space<vmem>>, %arg3: memref<3x9x64xbf16, #tpu.memory_space<vmem>>, %arg4: memref<1x64xf32, #tpu.memory_space<vmem>>, %arg5: memref<1x64xf32, #tpu.memory_space<vmem>>, %arg6: memref<1x32x32x64xbf16, #tpu.memory_space<vmem>>, %arg7: memref<34x32x9xbf16, #tpu.memory_space<vmem>>) attributes {dimension_semantics = [#tpu.dimension_semantics<parallel>, #tpu.dimension_semantics<arbitrary>], iteration_bounds = array<i64: 2, 1>, scalar_prefetch = 0 : i64, scratch_operands = 1 : i64, tpu.core_type = #tpu.core_type<tc>, window_params = [{transform_indices = @transform_0, window_bounds = array<i64: 1, 32, 32, 3>}, {transform_indices = @transform_1, window_bounds = array<i64: 3, 9, 64>}, {transform_indices = @transform_2, window_bounds = array<i64: 1, 64>}, {transform_indices = @transform_3, window_bounds = array<i64: 1, 64>}, {transform_indices = @transform_4, window_bounds = array<i64: 1, 32, 32, 64>}]} {
    %c0_i32 = arith.constant 0 : i32
    %0 = arith.cmpi eq, %arg1, %c0_i32 : i32
    %1 = arith.extui %0 : i1 to i32
    %c0_i32_0 = arith.constant 0 : i32
    %2 = arith.cmpi ne, %1, %c0_i32_0 : i32
    scf.if %2 {
      %c0_27 = arith.constant 0 : index
      %c0_28 = arith.constant 0 : index
      %c0_29 = arith.constant 0 : index
      %c0_30 = arith.constant 0 : index
      %31 = vector.load %arg2[%c0_27, %c0_28, %c0_29, %c0_30] : memref<1x32x32x3xbf16, #tpu.memory_space<vmem>>, vector<1x32x32x3xbf16>
      %32 = vector.shape_cast %31 : vector<1x32x32x3xbf16> to vector<32x32x3xbf16>
      %cst_31 = arith.constant 0.000000e+00 : bf16
      %33 = vector.broadcast %cst_31 : bf16 to vector<32x1x3xbf16>
      %34 = vector.extract_strided_slice %32 {offsets = [0, 0, 0], sizes = [32, 31, 3], strides = [1, 1, 1]} : vector<32x32x3xbf16> to vector<32x31x3xbf16>
      %35 = tpu.concatenate %33, %34 in 1 : vector<32x1x3xbf16>, vector<32x31x3xbf16> -> vector<32x32x3xbf16>
      %36 = vector.extract_strided_slice %32 {offsets = [0, 1, 0], sizes = [32, 31, 3], strides = [1, 1, 1]} : vector<32x32x3xbf16> to vector<32x31x3xbf16>
      %37 = tpu.concatenate %36, %33 in 1 : vector<32x31x3xbf16>, vector<32x1x3xbf16> -> vector<32x32x3xbf16>
      %38 = tpu.concatenate %35, %32, %37 in 2 : vector<32x32x3xbf16>, vector<32x32x3xbf16>, vector<32x32x3xbf16> -> vector<32x32x9xbf16>
      %cst_32 = arith.constant 0.000000e+00 : bf16
      %39 = vector.broadcast %cst_32 : bf16 to vector<1x32x9xbf16>
      %40 = tpu.concatenate %39, %38, %39 in 0 : vector<1x32x9xbf16>, vector<32x32x9xbf16>, vector<1x32x9xbf16> -> vector<34x32x9xbf16>
      %c0_33 = arith.constant 0 : index
      %c0_34 = arith.constant 0 : index
      %c0_35 = arith.constant 0 : index
      %41 = vector.load %arg7[%c0_33, %c0_34, %c0_35] : memref<34x32x9xbf16, #tpu.memory_space<vmem>>, vector<34x32x9xbf16>
      tpu.vector_store %arg7[%c0_33, %c0_34, %c0_35], %40 {strides = array<i32>} : memref<34x32x9xbf16, #tpu.memory_space<vmem>>, vector<34x32x9xbf16>,
    } else {
    }
    %c0 = arith.constant 0 : index
    %c0_1 = arith.constant 0 : index
    %c0_2 = arith.constant 0 : index
    %3 = vector.load %arg7[%c0, %c0_1, %c0_2] : memref<34x32x9xbf16, #tpu.memory_space<vmem>>, vector<32x32x9xbf16>
    %4 = vector.shape_cast %3 : vector<32x32x9xbf16> to vector<1024x9xbf16>
    %c0_3 = arith.constant 0 : index
    %c0_4 = arith.constant 0 : index
    %c0_5 = arith.constant 0 : index
    %5 = vector.load %arg3[%c0_3, %c0_4, %c0_5] : memref<3x9x64xbf16, #tpu.memory_space<vmem>>, vector<1x9x64xbf16>
    %6 = vector.shape_cast %5 : vector<1x9x64xbf16> to vector<9x64xbf16>
    %cst = arith.constant dense<0.000000e+00> : vector<1024x64xf32>
    %7 = tpu.matmul %4, %6, %cst {dimension_numbers = #tpu.dot_dimension_numbers<[1], [0], [0], [1], [0, 0, 1, 1], [], []>} : vector<1024x9xbf16>, vector<9x64xbf16>, vector<1024x64xf32> -> vector<1024x64xf32>
    %c1 = arith.constant 1 : index
    %c0_6 = arith.constant 0 : index
    %c0_7 = arith.constant 0 : index
    %8 = vector.load %arg7[%c1, %c0_6, %c0_7] : memref<34x32x9xbf16, #tpu.memory_space<vmem>>, vector<32x32x9xbf16>
    %9 = vector.shape_cast %8 : vector<32x32x9xbf16> to vector<1024x9xbf16>
    %c1_8 = arith.constant 1 : index
    %c0_9 = arith.constant 0 : index
    %c0_10 = arith.constant 0 : index
    %10 = vector.load %arg3[%c1_8, %c0_9, %c0_10] : memref<3x9x64xbf16, #tpu.memory_space<vmem>>, vector<1x9x64xbf16>
    %11 = vector.shape_cast %10 : vector<1x9x64xbf16> to vector<9x64xbf16>
    %cst_11 = arith.constant dense<0.000000e+00> : vector<1024x64xf32>
    %12 = tpu.matmul %9, %11, %cst_11 {dimension_numbers = #tpu.dot_dimension_numbers<[1], [0], [0], [1], [0, 0, 1, 1], [], []>} : vector<1024x9xbf16>, vector<9x64xbf16>, vector<1024x64xf32> -> vector<1024x64xf32>
    %13 = arith.addf %7, %12 : vector<1024x64xf32>
    %c2 = arith.constant 2 : index
    %c0_12 = arith.constant 0 : index
    %c0_13 = arith.constant 0 : index
    %14 = vector.load %arg7[%c2, %c0_12, %c0_13] : memref<34x32x9xbf16, #tpu.memory_space<vmem>>, vector<32x32x9xbf16>
    %15 = vector.shape_cast %14 : vector<32x32x9xbf16> to vector<1024x9xbf16>
    %c2_14 = arith.constant 2 : index
    %c0_15 = arith.constant 0 : index
    %c0_16 = arith.constant 0 : index
    %16 = vector.load %arg3[%c2_14, %c0_15, %c0_16] : memref<3x9x64xbf16, #tpu.memory_space<vmem>>, vector<1x9x64xbf16>
    %17 = vector.shape_cast %16 : vector<1x9x64xbf16> to vector<9x64xbf16>
    %cst_17 = arith.constant dense<0.000000e+00> : vector<1024x64xf32>
    %18 = tpu.matmul %15, %17, %cst_17 {dimension_numbers = #tpu.dot_dimension_numbers<[1], [0], [0], [1], [0, 0, 1, 1], [], []>} : vector<1024x9xbf16>, vector<9x64xbf16>, vector<1024x64xf32> -> vector<1024x64xf32>
    %19 = arith.addf %13, %18 : vector<1024x64xf32>
    %c0_18 = arith.constant 0 : index
    %c0_19 = arith.constant 0 : index
    %20 = vector.load %arg4[%c0_18, %c0_19] : memref<1x64xf32, #tpu.memory_space<vmem>>, vector<1x64xf32>
    %21 = vector.broadcast %20 : vector<1x64xf32> to vector<1024x64xf32>
    %22 = arith.mulf %19, %21 : vector<1024x64xf32>
    %c0_20 = arith.constant 0 : index
    %c0_21 = arith.constant 0 : index
    %23 = vector.load %arg5[%c0_20, %c0_21] : memref<1x64xf32, #tpu.memory_space<vmem>>, vector<1x64xf32>
    %24 = vector.broadcast %23 : vector<1x64xf32> to vector<1024x64xf32>
    %25 = arith.addf %22, %24 : vector<1024x64xf32>
    %cst_22 = arith.constant 0.000000e+00 : f32
    %26 = vector.broadcast %cst_22 : f32 to vector<1024x64xf32>
    %27 = arith.maximumf %25, %26 : vector<1024x64xf32>
    %28 = vector.shape_cast %27 : vector<1024x64xf32> to vector<1x32x32x64xf32>
    %29 = arith.truncf %28 : vector<1x32x32x64xf32> to vector<1x32x32x64xbf16>
    %c0_23 = arith.constant 0 : index
    %c0_24 = arith.constant 0 : index
    %c0_25 = arith.constant 0 : index
    %c0_26 = arith.constant 0 : index
    %30 = vector.load %arg6[%c0_23, %c0_24, %c0_25, %c0_26] : memref<1x32x32x64xbf16, #tpu.memory_space<vmem>>, vector<1x32x32x64xbf16>
    tpu.vector_store %arg6[%c0_23, %c0_24, %c0_25, %c0_26], %29 {strides = array<i32>} : memref<1x32x32x64xbf16, #tpu.memory_space<vmem>>, vector<1x32x32x64xbf16>,
    return
  }
  func.func @transform_0(%arg0: i32, %arg1: i32) -> (i32, i32, i32, i32) {
    %c0_i32 = arith.constant 0 : i32
    %c0_i32_0 = arith.constant 0 : i32
    %c0_i32_1 = arith.constant 0 : i32
    %c0_i32_2 = arith.constant 0 : i32
    return %arg0, %c0_i32, %c0_i32_0, %c0_i32_1 : i32, i32, i32, i32
  }
  func.func @transform_1(%arg0: i32, %arg1: i32) -> (i32, i32, i32) {
    %c0_i32 = arith.constant 0 : i32
    %c0_i32_0 = arith.constant 0 : i32
    %c0_i32_1 = arith.constant 0 : i32
    return %c0_i32, %c0_i32_0, %arg1 : i32, i32, i32
  }
  func.func @transform_2(%arg0: i32, %arg1: i32) -> (i32, i32) {
    %c0_i32 = arith.constant 0 : i32
    %c0_i32_0 = arith.constant 0 : i32
    return %c0_i32, %arg1 : i32, i32
  }
  func.func @transform_3(%arg0: i32, %arg1: i32) -> (i32, i32) {
    %c0_i32 = arith.constant 0 : i32
    %c0_i32_0 = arith.constant 0 : i32
    return %c0_i32, %arg1 : i32, i32
  }
  func.func @transform_4(%arg0: i32, %arg1: i32) -> (i32, i32, i32, i32) {
    %c0_i32 = arith.constant 0 : i32
    %c0_i32_0 = arith.constant 0 : i32
    %c0_i32_1 = arith.constant 0 : i32
    return %arg0, %c0_i32, %c0_i32_0, %arg1 : i32, i32, i32, i32
  }
}

</mosaic_0001>

<llo_original>
// kernel: tpu_custom_call.1
$region0: #{tpu_custom_call.1}
  #allocation0 [shape = 'u32[]', space=smem, size = 0x4, offset = 0x4, fixed_abs, tag = 'smem constant byte address 0x4 - core index']
  #allocation1 [shape = 'u32[144,128]{1,0:T(1,128)}', space=vmem, size = 0x12000, scoped, tag = 'internal scratch']
  #allocation2 [shape = 'bf16[34,32,9]{2,1,0:T(8,128)(2,1)}', space=vmem, size = 0x44000, scoped, tag = 'scratch operand']
  %s0 = inlined_call_operand.vmem [shape: bf16[2,32,32,3], index: 0, kind: input, shape index: {}]
  %s1 = inlined_call_operand.vmem [shape: bf16[3,9,64], index: 1, kind: input, shape index: {}]
  %s2 = inlined_call_operand.vmem [shape: f32[1,64], index: 2, kind: input, shape index: {}]
  %s3 = inlined_call_operand.vmem [shape: f32[1,64], index: 3, kind: input, shape index: {}]
  %s4 = inlined_call_operand.hbm [shape: bf16[2,32,32,64], index: 4, kind: output, shape index: {}]
  %s5 = sld [smem:[#allocation0]]
  $region53: #{tpu_custom_call.1} parent=0
    _
  %s7 = ssub.s32 1, %s5
  %s8 = scalar_select 0, %s7, %s5
  $region1: #{tpu_custom_call.1} parent=0
    #allocation3 [shape = 'u8[524288]{0}', space=vmem, size = 0x80000, scoped, tag = 'output window, operand 0']
    #allocation4 [shape = 's32[2]{0}', space=sflag, size = 0x8, scoped, tag = 'scoped memory for tpu_custom_call.1']
    %9 = vsyncpa [#allocation4], 0
    %s10 = scalar_lea.sflag [#allocation4], 1
    %11 = vsyncpa %s10, 0
    loop: start=0, step=1, limit=4
    $region2: #{tpu_custom_call.1} parent=1 // loop_pre_header
      _
    $region3: #{tpu_custom_call.1} parent=1 // loop_header
      %s13 = sphi 0, %s17
      %p14 = scmp.ge.s32.totalorder %s13, 4
      %s20 = sphi 0, %s32
      %s21 = sphi 0, %s28
      %s22 = sphi 0, %s20
      %s23 = sphi 0, %s21
      %s24 = sphi 0, %s22
      %s25 = sphi 0, %s23
      %s35 = sphi 0, %s37
      %s38 = sphi 0, %s35
      %s39 = sphi 0, %s38
      %s55 = sphi 0, %s39
      %s61 = sphi 0, %s63
      %s64 = sphi 0, %s61
      %s65 = sphi 0, %s64
      %s81 = sphi 0, %s65
      %s87 = sphi 0, %s89
      %s90 = sphi 0, %s87
      %s91 = sphi 0, %s90
      %s107 = sphi 0, %s91
      %s113 = sphi 0, %s115
      %s116 = sphi 0, %s113
      %s117 = sphi 0, %s116
      %s133 = sphi 0, %s117
      %s141 = sphi 0, %s143
      %s144 = sphi 0, %s141
      %s145 = sphi 0, %s144
      %s161 = sphi 0, %s145
    $region4: #{tpu_custom_call.1} parent=1 // loop_header_branch
      %16 = sbr.rel (%p14) target = $region8
    $region5: #{tpu_custom_call.1} parent=1 // loop_body
      %s18 = ssub.s32 %s13, 1
      %s19 = ssub.s32 %s13, 2
      %s26 = sadd.s32 1, %s21
      %p27 = scmp.ge.s32.totalorder %s26, 1
      %s28 = scalar_select %p27, 0, %s26
      %s29 = sadd.s32 1, %s20
      %s30 = scalar_select %p27, %s29, %s20
      %p31 = scmp.ge.s32.totalorder %s30, 2
      %s32 = scalar_select %p31, 0, %s30
      %s33 = ssub.s32 %s20, %s32
      %p34 = scmp.eq.s32.totalorder %s33, 0
      %s36 = sadd.s32 %s35, 1
      %s37 = scalar_select %p34, %s35, %s36
      %p40 = pneg %p34
      %p41 = scmp.eq.s32.totalorder %s13, 1
      %p42 = por %p40, %p41
      %p43 = scmp.ne.s32.totalorder %s35, %s38
      %p44 = scmp.eq.s32.totalorder %s13, 0
      %p45 = por %p43, %p44
      %p46 = scmp.ne.s32.totalorder %s35, %s38
      %p47 = scmp.eq.s32.totalorder %s18, 1
      %p48 = por %p46, %p47
      %p49 = scmp.ne.s32.totalorder %s38, %s39
      %p50 = scmp.eq.s32.totalorder %s18, 0
      %p51 = por %p49, %p50
      %p52 = scmp.ne.s32.totalorder %s38, %s39
      %p53 = scmp.eq.s32.totalorder %s19, 1
      %p54 = por %p52, %p53
      %p56 = scmp.ne.s32.totalorder %s39, %s55
      %p57 = scmp.eq.s32.totalorder %s19, 0
      %p58 = por %p56, %p57
      %s59 = ssub.s32 %s21, %s28
      %p60 = scmp.eq.s32.totalorder %s59, 0
      %s62 = sadd.s32 %s61, 1
      %s63 = scalar_select %p60, %s61, %s62
      %p66 = pneg %p60
      %p67 = scmp.eq.s32.totalorder %s13, 1
      %p68 = por %p66, %p67
      %p69 = scmp.ne.s32.totalorder %s61, %s64
      %p70 = scmp.eq.s32.totalorder %s13, 0
      %p71 = por %p69, %p70
      %p72 = scmp.ne.s32.totalorder %s61, %s64
      %p73 = scmp.eq.s32.totalorder %s18, 1
      %p74 = por %p72, %p73
      %p75 = scmp.ne.s32.totalorder %s64, %s65
      %p76 = scmp.eq.s32.totalorder %s18, 0
      %p77 = por %p75, %p76
      %p78 = scmp.ne.s32.totalorder %s64, %s65
      %p79 = scmp.eq.s32.totalorder %s19, 1
      %p80 = por %p78, %p79
      %p82 = scmp.ne.s32.totalorder %s65, %s81
      %p83 = scmp.eq.s32.totalorder %s19, 0
      %p84 = por %p82, %p83
      %s85 = ssub.s32 %s21, %s28
      %p86 = scmp.eq.s32.totalorder %s85, 0
      %s88 = sadd.s32 %s87, 1
      %s89 = scalar_select %p86, %s87, %s88
      %p92 = pneg %p86
      %p93 = scmp.eq.s32.totalorder %s13, 1
      %p94 = por %p92, %p93
      %p95 = scmp.ne.s32.totalorder %s87, %s90
      %p96 = scmp.eq.s32.totalorder %s13, 0
      %p97 = por %p95, %p96
      %p98 = scmp.ne.s32.totalorder %s87, %s90
      %p99 = scmp.eq.s32.totalorder %s18, 1
      %p100 = por %p98, %p99
      %p101 = scmp.ne.s32.totalorder %s90, %s91
      %p102 = scmp.eq.s32.totalorder %s18, 0
      %p103 = por %p101, %p102
      %p104 = scmp.ne.s32.totalorder %s90, %s91
      %p105 = scmp.eq.s32.totalorder %s19, 1
      %p106 = por %p104, %p105
      %p108 = scmp.ne.s32.totalorder %s91, %s107
      %p109 = scmp.eq.s32.totalorder %s19, 0
      %p110 = por %p108, %p109
      %s111 = ssub.s32 %s21, %s28
      %p112 = scmp.eq.s32.totalorder %s111, 0
      %s114 = sadd.s32 %s113, 1
      %s115 = scalar_select %p112, %s113, %s114
      %p118 = pneg %p112
      %p119 = scmp.eq.s32.totalorder %s13, 1
      %p120 = por %p118, %p119
      %p121 = scmp.ne.s32.totalorder %s113, %s116
      %p122 = scmp.eq.s32.totalorder %s13, 0
      %p123 = por %p121, %p122
      %p124 = scmp.ne.s32.totalorder %s113, %s116
      %p125 = scmp.eq.s32.totalorder %s18, 1
      %p126 = por %p124, %p125
      %p127 = scmp.ne.s32.totalorder %s116, %s117
      %p128 = scmp.eq.s32.totalorder %s18, 0
      %p129 = por %p127, %p128
      %p130 = scmp.ne.s32.totalorder %s116, %s117
      %p131 = scmp.eq.s32.totalorder %s19, 1
      %p132 = por %p130, %p131
      %p134 = scmp.ne.s32.totalorder %s117, %s133
      %p135 = scmp.eq.s32.totalorder %s19, 0
      %p136 = por %p134, %p135
      %s137 = ssub.s32 %s20, %s32
      %s138 = ssub.s32 %s21, %s28
      %s139 = sor.u32 %s137, %s138
      %p140 = scmp.eq.s32.totalorder %s139, 0
      %s142 = sadd.s32 %s141, 1
      %s143 = scalar_select %p140, %s141, %s142
      %p146 = pneg %p140
      %p147 = scmp.eq.s32.totalorder %s13, 1
      %p148 = por %p146, %p147
      %p149 = scmp.ne.s32.totalorder %s141, %s144
      %p150 = scmp.eq.s32.totalorder %s13, 0
      %p151 = por %p149, %p150
      %p152 = scmp.ne.s32.totalorder %s141, %s144
      %p153 = scmp.eq.s32.totalorder %s18, 1
      %p154 = por %p152, %p153
      %p155 = scmp.ne.s32.totalorder %s144, %s145
      %p156 = scmp.eq.s32.totalorder %s18, 0
      %p157 = por %p155, %p156
      %p158 = scmp.ne.s32.totalorder %s144, %s145
      %p159 = scmp.eq.s32.totalorder %s19, 1
      %p160 = por %p158, %p159
      %p162 = scmp.ne.s32.totalorder %s145, %s161
      %p163 = scmp.eq.s32.totalorder %s19, 0
      %p164 = por %p162, %p163
      %p165 = scmp.le.s32.totalorder 1, %s13
      %p166 = scmp.lt.s32.totalorder %s13, 3
      %p167 = pnand %p165, %p166
      %p168 = pneg %p167
      // Predicated region
      $region9: #{tpu_custom_call.1} parent=5 // pred_check
        _
      $region10: #{tpu_custom_call.1} parent=5 // pred_check_branch
        %170 = sbr.rel (%p167) target = $region12
      $region11: #{tpu_custom_call.1} parent=5 // pred_region
        %s171 = ssub.s32 %s13, 1
        // Predicated region
        $region13: #{tpu_custom_call.1} parent=11 // pred_check
          %p172 = pneg %p77
        $region14: #{tpu_custom_call.1} parent=11 // pred_check_branch
          %174 = sbr.rel (%p172) target = $region16
        $region15: #{tpu_custom_call.1} parent=11 // pred_region
          %p175 = scmp.lt.s32.totalorder %s23, 0
          %s176 = scalar_select %p175, %s23, 0
          %s177 = smul.addr %s176, 4
          %s178 = scalar_lea.vmem %s1, %s177
        $region16: #{tpu_custom_call.1} parent=11 // pred_fallthru
          _
        // Predicated region
        $region17: #{tpu_custom_call.1} parent=11 // pred_check
          %p179 = pneg %p103
        $region18: #{tpu_custom_call.1} parent=11 // pred_check_branch
          %181 = sbr.rel (%p179) target = $region20
        $region19: #{tpu_custom_call.1} parent=11 // pred_region
          %p182 = scmp.lt.s32.totalorder %s23, 0
          %s183 = scalar_select %p182, %s23, 0
          %s184 = scalar_lea.vmem %s2, %s183
        $region20: #{tpu_custom_call.1} parent=11 // pred_fallthru
          _
        // Predicated region
        $region21: #{tpu_custom_call.1} parent=11 // pred_check
          %p185 = pneg %p129
        $region22: #{tpu_custom_call.1} parent=11 // pred_check_branch
          %187 = sbr.rel (%p185) target = $region24
        $region23: #{tpu_custom_call.1} parent=11 // pred_region
          %p188 = scmp.lt.s32.totalorder %s23, 0
          %s189 = scalar_select %p188, %s23, 0
          %s190 = scalar_lea.vmem %s3, %s189
        $region24: #{tpu_custom_call.1} parent=11 // pred_fallthru
          _
      $region12: #{tpu_custom_call.1} parent=5 // pred_fallthru
        _
      %p191 = scmp.lt.s32.totalorder %s13, 2
      // Predicated region
      $region25: #{tpu_custom_call.1} parent=5 // pred_check
        %p192 = pneg %p191
      $region26: #{tpu_custom_call.1} parent=5 // pred_check_branch
        %194 = sbr.rel (%p192) target = $region28
      $region27: #{tpu_custom_call.1} parent=5 // pred_region
        // Predicated region
        $region29: #{tpu_custom_call.1} parent=27 // pred_check
          %p195 = pneg %p45
        $region30: #{tpu_custom_call.1} parent=27 // pred_check_branch
          %197 = sbr.rel (%p195) target = $region32
        $region31: #{tpu_custom_call.1} parent=27 // pred_region
          %p198 = scmp.lt.s32.totalorder %s20, 1
          %s199 = scalar_select %p198, %s20, 1
          %s200 = smul.addr %s199, 128
          %s201 = smul.addr %s200, 4
          %s202 = scalar_lea.vmem %s0, %s201
        $region32: #{tpu_custom_call.1} parent=27 // pred_fallthru
          _
      $region28: #{tpu_custom_call.1} parent=5 // pred_fallthru
        _
      %p203 = scmp.le.s32.totalorder 1, %s13
      %p204 = scmp.lt.s32.totalorder %s13, 3
      %p205 = pnand %p203, %p204
      %p206 = pneg %p205
      // Predicated region
      $region33: #{tpu_custom_call.1} parent=5 // pred_check
        _
      $region34: #{tpu_custom_call.1} parent=5 // pred_check_branch
        %208 = sbr.rel (%p205) target = $region36
      $region35: #{tpu_custom_call.1} parent=5 // pred_region
        %s209 = ssub.s32 %s13, 1
        %p210 = scmp.lt.s32.totalorder %s22, 1
        %s211 = scalar_select %p210, %s22, 1
        %s212 = smul.addr %s211, 128
        %s213 = smul.addr %s212, 4
        %s214 = scalar_lea.vmem %s0, %s213
        %p215 = pneg %p51
        %p216 = pneg %p48
        %p217 = scmp.lt.s32.totalorder %s23, 0
        %s218 = scalar_select %p217, %s23, 0
        %s219 = smul.addr %s218, 4
        %s220 = scalar_lea.vmem %s1, %s219
        %p221 = pneg %p77
        %p222 = pneg %p74
        %p223 = scmp.lt.s32.totalorder %s23, 0
        %s224 = scalar_select %p223, %s23, 0
        %s225 = scalar_lea.vmem %s2, %s224
        %p226 = pneg %p103
        %p227 = pneg %p100
        %p228 = scmp.lt.s32.totalorder %s23, 0
        %s229 = scalar_select %p228, %s23, 0
        %s230 = scalar_lea.vmem %s3, %s229
        %p231 = pneg %p129
        %p232 = pneg %p126
        %p233 = pneg %p157
        %p234 = pneg %p154
        %s235 = sand.u32 %s144, 1
        %s236 = scalar_lea.sflag [#allocation4], %s235
        %s237 = sand.u32 %s144, 1
        %s238 = smul.addr %s237, 512
        %s239 = scalar_lea.vmem [#allocation3], %s238
        %p240 = scmp.lt.s32.totalorder %s22, 1
        %s241 = scalar_select %p240, %s22, 1
        %s242 = smul.addr %s241, 128
        %s243 = smul.addr %s242, 4
        %s244 = scalar_lea.vmem %s0, %s243
        %p245 = scmp.lt.s32.totalorder %s23, 0
        %s246 = scalar_select %p245, %s23, 0
        %s247 = smul.addr %s246, 4
        %s248 = scalar_lea.vmem %s1, %s247
        %p249 = scmp.lt.s32.totalorder %s23, 0
        %s250 = scalar_select %p249, %s23, 0
        %s251 = scalar_lea.vmem %s2, %s250
        %p252 = scmp.lt.s32.totalorder %s23, 0
        %s253 = scalar_select %p252, %s23, 0
        %s254 = scalar_lea.vmem %s3, %s253
        %p256 = scmp.eq.s32.totalorder %s23, 0
        // Predicated region
        $region37: #{tpu_custom_call.1} parent=35 // pred_check
          %p257 = pneg %p256
        $region38: #{tpu_custom_call.1} parent=35 // pred_check_branch
          %259 = sbr.rel (%p257) target = $region40
        $region39: #{tpu_custom_call.1} parent=35 // pred_region
          %v260 = vld [vmem:[%s244] sm:$0xf]
          %v261 = vld [vmem:[%s244 + $0x4] sm:$0xf]
          %v262 = vld [vmem:[%s244 + $0x8] sm:$0xf]
          %v263 = vld [vmem:[%s244 + $0xc] sm:$0xf]
          %v264 = vld [vmem:[%s244 + $0x10] sm:$0xf]
          %v265 = vld [vmem:[%s244 + $0x14] sm:$0xf]
          %v266 = vld [vmem:[%s244 + $0x18] sm:$0xf]
          %v267 = vld [vmem:[%s244 + $0x1c] sm:$0xf]
          %v268 = vld [vmem:[%s244 + $0x20] sm:$0xf]
          %v269 = vld [vmem:[%s244 + $0x24] sm:$0xf]
          %v270 = vld [vmem:[%s244 + $0x28] sm:$0xf]
          %v271 = vld [vmem:[%s244 + $0x2c] sm:$0xf]
          %v272 = vld [vmem:[%s244 + $0x30] sm:$0xf]
          %v273 = vld [vmem:[%s244 + $0x34] sm:$0xf]
          %v274 = vld [vmem:[%s244 + $0x38] sm:$0xf]
          %v275 = vld [vmem:[%s244 + $0x3c] sm:$0xf]
          %v276 = vld [vmem:[%s244 + $0x40] sm:$0xf]
          %v277 = vld [vmem:[%s244 + $0x44] sm:$0xf]
          %v278 = vld [vmem:[%s244 + $0x48] sm:$0xf]
          %v279 = vld [vmem:[%s244 + $0x4c] sm:$0xf]
          %v280 = vld [vmem:[%s244 + $0x50] sm:$0xf]
          %v281 = vld [vmem:[%s244 + $0x54] sm:$0xf]
          %v282 = vld [vmem:[%s244 + $0x58] sm:$0xf]
          %v283 = vld [vmem:[%s244 + $0x5c] sm:$0xf]
          %v284 = vld [vmem:[%s244 + $0x60] sm:$0xf]
          %v285 = vld [vmem:[%s244 + $0x64] sm:$0xf]
          %v286 = vld [vmem:[%s244 + $0x68] sm:$0xf]
          %v287 = vld [vmem:[%s244 + $0x6c] sm:$0xf]
          %v288 = vld [vmem:[%s244 + $0x70] sm:$0xf]
          %v289 = vld [vmem:[%s244 + $0x74] sm:$0xf]
          %v290 = vld [vmem:[%s244 + $0x78] sm:$0xf]
          %v291 = vld [vmem:[%s244 + $0x7c] sm:$0xf]
          %v292 = vld [vmem:[%s244 + $0x80] sm:$0xf]
          %v293 = vld [vmem:[%s244 + $0x84] sm:$0xf]
          %v294 = vld [vmem:[%s244 + $0x88] sm:$0xf]
          %v295 = vld [vmem:[%s244 + $0x8c] sm:$0xf]
          %v296 = vld [vmem:[%s244 + $0x90] sm:$0xf]
          %v297 = vld [vmem:[%s244 + $0x94] sm:$0xf]
          %v298 = vld [vmem:[%s244 + $0x98] sm:$0xf]
          %v299 = vld [vmem:[%s244 + $0x9c] sm:$0xf]
          %v300 = vld [vmem:[%s244 + $0xa0] sm:$0xf]
          %v301 = vld [vmem:[%s244 + $0xa4] sm:$0xf]
          %v302 = vld [vmem:[%s244 + $0xa8] sm:$0xf]
          %v303 = vld [vmem:[%s244 + $0xac] sm:$0xf]
          %v304 = vld [vmem:[%s244 + $0xb0] sm:$0xf]
          %v305 = vld [vmem:[%s244 + $0xb4] sm:$0xf]
          %v306 = vld [vmem:[%s244 + $0xb8] sm:$0xf]
          %v307 = vld [vmem:[%s244 + $0xbc] sm:$0xf]
          %v308 = vld [vmem:[%s244 + $0xc0] sm:$0xf]
          %v309 = vld [vmem:[%s244 + $0xc4] sm:$0xf]
          %v310 = vld [vmem:[%s244 + $0xc8] sm:$0xf]
          %v311 = vld [vmem:[%s244 + $0xcc] sm:$0xf]
          %v312 = vld [vmem:[%s244 + $0xd0] sm:$0xf]
          %v313 = vld [vmem:[%s244 + $0xd4] sm:$0xf]
          %v314 = vld [vmem:[%s244 + $0xd8] sm:$0xf]
          %v315 = vld [vmem:[%s244 + $0xdc] sm:$0xf]
          %v316 = vld [vmem:[%s244 + $0xe0] sm:$0xf]
          %v317 = vld [vmem:[%s244 + $0xe4] sm:$0xf]
          %v318 = vld [vmem:[%s244 + $0xe8] sm:$0xf]
          %v319 = vld [vmem:[%s244 + $0xec] sm:$0xf]
          %v320 = vld [vmem:[%s244 + $0xf0] sm:$0xf]
          %v321 = vld [vmem:[%s244 + $0xf4] sm:$0xf]
          %v322 = vld [vmem:[%s244 + $0xf8] sm:$0xf]
          %v323 = vld [vmem:[%s244 + $0xfc] sm:$0xf]
          %v324 = vld [vmem:[%s244 + $0x100] sm:$0xf]
          %v325 = vld [vmem:[%s244 + $0x104] sm:$0xf]
          %v326 = vld [vmem:[%s244 + $0x108] sm:$0xf]
          %v327 = vld [vmem:[%s244 + $0x10c] sm:$0xf]
          %v328 = vld [vmem:[%s244 + $0x110] sm:$0xf]
          %v329 = vld [vmem:[%s244 + $0x114] sm:$0xf]
          %v330 = vld [vmem:[%s244 + $0x118] sm:$0xf]
          %v331 = vld [vmem:[%s244 + $0x11c] sm:$0xf]
          %v332 = vld [vmem:[%s244 + $0x120] sm:$0xf]
          %v333 = vld [vmem:[%s244 + $0x124] sm:$0xf]
          %v334 = vld [vmem:[%s244 + $0x128] sm:$0xf]
          %v335 = vld [vmem:[%s244 + $0x12c] sm:$0xf]
          %v336 = vld [vmem:[%s244 + $0x130] sm:$0xf]
          %v337 = vld [vmem:[%s244 + $0x134] sm:$0xf]
          %v338 = vld [vmem:[%s244 + $0x138] sm:$0xf]
          %v339 = vld [vmem:[%s244 + $0x13c] sm:$0xf]
          %v340 = vld [vmem:[%s244 + $0x140] sm:$0xf]
          %v341 = vld [vmem:[%s244 + $0x144] sm:$0xf]
          %v342 = vld [vmem:[%s244 + $0x148] sm:$0xf]
          %v343 = vld [vmem:[%s244 + $0x14c] sm:$0xf]
          %v344 = vld [vmem:[%s244 + $0x150] sm:$0xf]
          %v345 = vld [vmem:[%s244 + $0x154] sm:$0xf]
          %v346 = vld [vmem:[%s244 + $0x158] sm:$0xf]
          %v347 = vld [vmem:[%s244 + $0x15c] sm:$0xf]
          %v348 = vld [vmem:[%s244 + $0x160] sm:$0xf]
          %v349 = vld [vmem:[%s244 + $0x164] sm:$0xf]
          %v350 = vld [vmem:[%s244 + $0x168] sm:$0xf]
          %v351 = vld [vmem:[%s244 + $0x16c] sm:$0xf]
          %v352 = vld [vmem:[%s244 + $0x170] sm:$0xf]
          %v353 = vld [vmem:[%s244 + $0x174] sm:$0xf]
          %v354 = vld [vmem:[%s244 + $0x178] sm:$0xf]
          %v355 = vld [vmem:[%s244 + $0x17c] sm:$0xf]
          %v356 = vld [vmem:[%s244 + $0x180] sm:$0xf]
          %v357 = vld [vmem:[%s244 + $0x184] sm:$0xf]
          %v358 = vld [vmem:[%s244 + $0x188] sm:$0xf]
          %v359 = vld [vmem:[%s244 + $0x18c] sm:$0xf]
          %v360 = vld [vmem:[%s244 + $0x190] sm:$0xf]
          %v361 = vld [vmem:[%s244 + $0x194] sm:$0xf]
          %v362 = vld [vmem:[%s244 + $0x198] sm:$0xf]
          %v363 = vld [vmem:[%s244 + $0x19c] sm:$0xf]
          %v364 = vld [vmem:[%s244 + $0x1a0] sm:$0xf]
          %v365 = vld [vmem:[%s244 + $0x1a4] sm:$0xf]
          %v366 = vld [vmem:[%s244 + $0x1a8] sm:$0xf]
          %v367 = vld [vmem:[%s244 + $0x1ac] sm:$0xf]
          %v368 = vld [vmem:[%s244 + $0x1b0] sm:$0xf]
          %v369 = vld [vmem:[%s244 + $0x1b4] sm:$0xf]
          %v370 = vld [vmem:[%s244 + $0x1b8] sm:$0xf]
          %v371 = vld [vmem:[%s244 + $0x1bc] sm:$0xf]
          %v372 = vld [vmem:[%s244 + $0x1c0] sm:$0xf]
          %v373 = vld [vmem:[%s244 + $0x1c4] sm:$0xf]
          %v374 = vld [vmem:[%s244 + $0x1c8] sm:$0xf]
          %v375 = vld [vmem:[%s244 + $0x1cc] sm:$0xf]
          %v376 = vld [vmem:[%s244 + $0x1d0] sm:$0xf]
          %v377 = vld [vmem:[%s244 + $0x1d4] sm:$0xf]
          %v378 = vld [vmem:[%s244 + $0x1d8] sm:$0xf]
          %v379 = vld [vmem:[%s244 + $0x1dc] sm:$0xf]
          %v380 = vld [vmem:[%s244 + $0x1e0] sm:$0xf]
          %v381 = vld [vmem:[%s244 + $0x1e4] sm:$0xf]
          %v382 = vld [vmem:[%s244 + $0x1e8] sm:$0xf]
          %v383 = vld [vmem:[%s244 + $0x1ec] sm:$0xf]
          %v384 = vld [vmem:[%s244 + $0x1f0] sm:$0xf]
          %v385 = vld [vmem:[%s244 + $0x1f4] sm:$0xf]
          %v386 = vld [vmem:[%s244 + $0x1f8] sm:$0xf]
          %v387 = vld [vmem:[%s244 + $0x1fc] sm:$0xf]
          %v516 = vunpack.c.l.b16 %v260
          %v517 = vunpack.c.l.b16 %v261
          %v518 = vunpack.c.l.b16 %v262
          %v519 = vunpack.c.l.b16 %v263
          %v520 = vunpack.c.l.b16 %v264
          %v521 = vunpack.c.l.b16 %v265
          %v522 = vunpack.c.l.b16 %v266
          %v523 = vunpack.c.l.b16 %v267
          %v524 = vunpack.c.l.b16 %v268
          %v525 = vunpack.c.l.b16 %v269
          %v526 = vunpack.c.l.b16 %v270
          %v527 = vunpack.c.l.b16 %v271
          %v528 = vunpack.c.l.b16 %v272
          %v529 = vunpack.c.l.b16 %v273
          %v530 = vunpack.c.l.b16 %v274
          %v531 = vunpack.c.l.b16 %v275
          %v532 = vunpack.c.l.b16 %v276
          %v533 = vunpack.c.l.b16 %v277
          %v534 = vunpack.c.l.b16 %v278
          %v535 = vunpack.c.l.b16 %v279
          %v536 = vunpack.c.l.b16 %v280
          %v537 = vunpack.c.l.b16 %v281
          %v538 = vunpack.c.l.b16 %v282
          %v539 = vunpack.c.l.b16 %v283
          %v540 = vunpack.c.l.b16 %v284
          %v541 = vunpack.c.l.b16 %v285
          %v542 = vunpack.c.l.b16 %v286
          %v543 = vunpack.c.l.b16 %v287
          %v544 = vunpack.c.l.b16 %v288
          %v545 = vunpack.c.l.b16 %v289
          %v546 = vunpack.c.l.b16 %v290
          %v547 = vunpack.c.l.b16 %v291
          %v548 = vunpack.c.l.b16 %v292
          %v549 = vunpack.c.l.b16 %v293
          %v550 = vunpack.c.l.b16 %v294
          %v551 = vunpack.c.l.b16 %v295
          %v552 = vunpack.c.l.b16 %v296
          %v553 = vunpack.c.l.b16 %v297
          %v554 = vunpack.c.l.b16 %v298
          %v555 = vunpack.c.l.b16 %v299
          %v556 = vunpack.c.l.b16 %v300
          %v557 = vunpack.c.l.b16 %v301
          %v558 = vunpack.c.l.b16 %v302
          %v559 = vunpack.c.l.b16 %v303
          %v560 = vunpack.c.l.b16 %v304
          %v561 = vunpack.c.l.b16 %v305
          %v562 = vunpack.c.l.b16 %v306
          %v563 = vunpack.c.l.b16 %v307
          %v564 = vunpack.c.l.b16 %v308
          %v565 = vunpack.c.l.b16 %v309
          %v566 = vunpack.c.l.b16 %v310
          %v567 = vunpack.c.l.b16 %v311
          %v568 = vunpack.c.l.b16 %v312
          %v569 = vunpack.c.l.b16 %v313
          %v570 = vunpack.c.l.b16 %v314
          %v571 = vunpack.c.l.b16 %v315
          %v572 = vunpack.c.l.b16 %v316
          %v573 = vunpack.c.l.b16 %v317
          %v574 = vunpack.c.l.b16 %v318
          %v575 = vunpack.c.l.b16 %v319
          %v576 = vunpack.c.l.b16 %v320
          %v577 = vunpack.c.l.b16 %v321
          %v578 = vunpack.c.l.b16 %v322
          %v579 = vunpack.c.l.b16 %v323
          %v580 = vunpack.c.l.b16 %v324
          %v581 = vunpack.c.l.b16 %v325
          %v582 = vunpack.c.l.b16 %v326
          %v583 = vunpack.c.l.b16 %v327
          %v584 = vunpack.c.l.b16 %v328
          %v585 = vunpack.c.l.b16 %v329
          %v586 = vunpack.c.l.b16 %v330
          %v587 = vunpack.c.l.b16 %v331
          %v588 = vunpack.c.l.b16 %v332
          %v589 = vunpack.c.l.b16 %v333
          %v590 = vunpack.c.l.b16 %v334
          %v591 = vunpack.c.l.b16 %v335
          %v592 = vunpack.c.l.b16 %v336
          %v593 = vunpack.c.l.b16 %v337
          %v594 = vunpack.c.l.b16 %v338
          %v595 = vunpack.c.l.b16 %v339
          %v596 = vunpack.c.l.b16 %v340
          %v597 = vunpack.c.l.b16 %v341
          %v598 = vunpack.c.l.b16 %v342
          %v599 = vunpack.c.l.b16 %v343
          %v600 = vunpack.c.l.b16 %v344
          %v601 = vunpack.c.l.b16 %v345
          %v602 = vunpack.c.l.b16 %v346
          %v603 = vunpack.c.l.b16 %v347
          %v604 = vunpack.c.l.b16 %v348
          %v605 = vunpack.c.l.b16 %v349
          %v606 = vunpack.c.l.b16 %v350
          %v607 = vunpack.c.l.b16 %v351
          %v608 = vunpack.c.l.b16 %v352
          %v609 = vunpack.c.l.b16 %v353
          %v610 = vunpack.c.l.b16 %v354
          %v611 = vunpack.c.l.b16 %v355
          %v612 = vunpack.c.l.b16 %v356
          %v613 = vunpack.c.l.b16 %v357
          %v614 = vunpack.c.l.b16 %v358
          %v615 = vunpack.c.l.b16 %v359
          %v616 = vunpack.c.l.b16 %v360
          %v617 = vunpack.c.l.b16 %v361
          %v618 = vunpack.c.l.b16 %v362
          %v619 = vunpack.c.l.b16 %v363
          %v620 = vunpack.c.l.b16 %v364
          %v621 = vunpack.c.l.b16 %v365
          %v622 = vunpack.c.l.b16 %v366
          %v623 = vunpack.c.l.b16 %v367
          %v624 = vunpack.c.l.b16 %v368
          %v625 = vunpack.c.l.b16 %v369
          %v626 = vunpack.c.l.b16 %v370
          %v627 = vunpack.c.l.b16 %v371
          %v628 = vunpack.c.l.b16 %v372
          %v629 = vunpack.c.l.b16 %v373
          %v630 = vunpack.c.l.b16 %v374
          %v631 = vunpack.c.l.b16 %v375
          %v632 = vunpack.c.l.b16 %v376
          %v633 = vunpack.c.l.b16 %v377
          %v634 = vunpack.c.l.b16 %v378
          %v635 = vunpack.c.l.b16 %v379
          %v636 = vunpack.c.l.b16 %v380
          %v637 = vunpack.c.l.b16 %v381
          %v638 = vunpack.c.l.b16 %v382
          %v639 = vunpack.c.l.b16 %v383
          %v640 = vunpack.c.l.b16 %v384
          %v641 = vunpack.c.l.b16 %v385
          %v642 = vunpack.c.l.b16 %v386
          %v643 = vunpack.c.l.b16 %v387
          %v644 = vpack.c.b16 %v517, %v516
          %v645 = vpack.c.b16 %v519, %v518
          %v646 = vpack.c.b16 %v521, %v520
          %v647 = vpack.c.b16 %v523, %v522
          %v648 = vpack.c.b16 %v525, %v524
          %v649 = vpack.c.b16 %v527, %v526
          %v650 = vpack.c.b16 %v529, %v528
          %v651 = vpack.c.b16 %v531, %v530
          %v652 = vpack.c.b16 %v533, %v532
          %v653 = vpack.c.b16 %v535, %v534
          %v654 = vpack.c.b16 %v537, %v536
          %v655 = vpack.c.b16 %v539, %v538
          %v656 = vpack.c.b16 %v541, %v540
          %v657 = vpack.c.b16 %v543, %v542
          %v658 = vpack.c.b16 %v545, %v544
          %v659 = vpack.c.b16 %v547, %v546
          %v660 = vpack.c.b16 %v549, %v548
          %v661 = vpack.c.b16 %v551, %v550
          %v662 = vpack.c.b16 %v553, %v552
          %v663 = vpack.c.b16 %v555, %v554
          %v664 = vpack.c.b16 %v557, %v556
          %v665 = vpack.c.b16 %v559, %v558
          %v666 = vpack.c.b16 %v561, %v560
          %v667 = vpack.c.b16 %v563, %v562
          %v668 = vpack.c.b16 %v565, %v564
          %v669 = vpack.c.b16 %v567, %v566
          %v670 = vpack.c.b16 %v569, %v568
          %v671 = vpack.c.b16 %v571, %v570
          %v672 = vpack.c.b16 %v573, %v572
          %v673 = vpack.c.b16 %v575, %v574
          %v674 = vpack.c.b16 %v577, %v576
          %v675 = vpack.c.b16 %v579, %v578
          %v676 = vpack.c.b16 %v581, %v580
          %v677 = vpack.c.b16 %v583, %v582
          %v678 = vpack.c.b16 %v585, %v584
          %v679 = vpack.c.b16 %v587, %v586
          %v680 = vpack.c.b16 %v589, %v588
          %v681 = vpack.c.b16 %v591, %v590
          %v682 = vpack.c.b16 %v593, %v592
          %v683 = vpack.c.b16 %v595, %v594
          %v684 = vpack.c.b16 %v597, %v596
          %v685 = vpack.c.b16 %v599, %v598
          %v686 = vpack.c.b16 %v601, %v600
          %v687 = vpack.c.b16 %v603, %v602
          %v688 = vpack.c.b16 %v605, %v604
          %v689 = vpack.c.b16 %v607, %v606
          %v690 = vpack.c.b16 %v609, %v608
          %v691 = vpack.c.b16 %v611, %v610
          %v692 = vpack.c.b16 %v613, %v612
          %v693 = vpack.c.b16 %v615, %v614
          %v694 = vpack.c.b16 %v617, %v616
          %v695 = vpack.c.b16 %v619, %v618
          %v696 = vpack.c.b16 %v621, %v620
          %v697 = vpack.c.b16 %v623, %v622
          %v698 = vpack.c.b16 %v625, %v624
          %v699 = vpack.c.b16 %v627, %v626
          %v700 = vpack.c.b16 %v629, %v628
          %v701 = vpack.c.b16 %v631, %v630
          %v702 = vpack.c.b16 %v633, %v632
          %v703 = vpack.c.b16 %v635, %v634
          %v704 = vpack.c.b16 %v637, %v636
          %v705 = vpack.c.b16 %v639, %v638
          %v706 = vpack.c.b16 %v641, %v640
          %v707 = vpack.c.b16 %v643, %v642
          %vm708 = vsmask.f32 256
          %v710 = vshrl.u32 %v644, 16
          %v712 = vrot.slane %v710, 7
          %v713 = vshll.u32 %v644, 16
          %v715 = vor.u32 %v712, %v713
          %v717 = vshrl.u32 %v645, 16
          %v719 = vrot.slane %v717, 7
          %v720 = vshll.u32 %v645, 16
          %v722 = vor.u32 %v719, %v720
          %v723 = vsel %vm708, %v712, %v722
          %v725 = vshrl.u32 %v646, 16
          %v727 = vrot.slane %v725, 7
          %v728 = vshll.u32 %v646, 16
          %v730 = vor.u32 %v727, %v728
          %v732 = vshrl.u32 %v647, 16
          %v734 = vrot.slane %v732, 7
          %v735 = vshll.u32 %v647, 16
          %v737 = vor.u32 %v734, %v735
          %v738 = vsel %vm708, %v727, %v737
          %v740 = vshrl.u32 %v648, 16
          %v742 = vrot.slane %v740, 7
          %v743 = vshll.u32 %v648, 16
          %v745 = vor.u32 %v742, %v743
          %v747 = vshrl.u32 %v649, 16
          %v749 = vrot.slane %v747, 7
          %v750 = vshll.u32 %v649, 16
          %v752 = vor.u32 %v749, %v750
          %v753 = vsel %vm708, %v742, %v752
          %v755 = vshrl.u32 %v650, 16
          %v757 = vrot.slane %v755, 7
          %v758 = vshll.u32 %v650, 16
          %v760 = vor.u32 %v757, %v758
          %v762 = vshrl.u32 %v651, 16
          %v764 = vrot.slane %v762, 7
          %v765 = vshll.u32 %v651, 16
          %v767 = vor.u32 %v764, %v765
          %v768 = vsel %vm708, %v757, %v767
          %v770 = vshrl.u32 %v652, 16
          %v772 = vrot.slane %v770, 7
          %v773 = vshll.u32 %v652, 16
          %v775 = vor.u32 %v772, %v773
          %v777 = vshrl.u32 %v653, 16
          %v779 = vrot.slane %v777, 7
          %v780 = vshll.u32 %v653, 16
          %v782 = vor.u32 %v779, %v780
          %v783 = vsel %vm708, %v772, %v782
          %v785 = vshrl.u32 %v654, 16
          %v787 = vrot.slane %v785, 7
          %v788 = vshll.u32 %v654, 16
          %v790 = vor.u32 %v787, %v788
          %v792 = vshrl.u32 %v655, 16
          %v794 = vrot.slane %v792, 7
          %v795 = vshll.u32 %v655, 16
          %v797 = vor.u32 %v794, %v795
          %v798 = vsel %vm708, %v787, %v797
          %v800 = vshrl.u32 %v656, 16
          %v802 = vrot.slane %v800, 7
          %v803 = vshll.u32 %v656, 16
          %v805 = vor.u32 %v802, %v803
          %v807 = vshrl.u32 %v657, 16
          %v809 = vrot.slane %v807, 7
          %v810 = vshll.u32 %v657, 16
          %v812 = vor.u32 %v809, %v810
          %v813 = vsel %vm708, %v802, %v812
          %v815 = vshrl.u32 %v658, 16
          %v817 = vrot.slane %v815, 7
          %v818 = vshll.u32 %v658, 16
          %v820 = vor.u32 %v817, %v818
          %v822 = vshrl.u32 %v659, 16
          %v824 = vrot.slane %v822, 7
          %v825 = vshll.u32 %v659, 16
          %v827 = vor.u32 %v824, %v825
          %v828 = vsel %vm708, %v817, %v827
          %v830 = vshrl.u32 %v660, 16
          %v832 = vrot.slane %v830, 7
          %v833 = vshll.u32 %v660, 16
          %v835 = vor.u32 %v832, %v833
          %v837 = vshrl.u32 %v661, 16
          %v839 = vrot.slane %v837, 7
          %v840 = vshll.u32 %v661, 16
          %v842 = vor.u32 %v839, %v840
          %v843 = vsel %vm708, %v832, %v842
          %v845 = vshrl.u32 %v662, 16
          %v847 = vrot.slane %v845, 7
          %v848 = vshll.u32 %v662, 16
          %v850 = vor.u32 %v847, %v848
          %v852 = vshrl.u32 %v663, 16
          %v854 = vrot.slane %v852, 7
          %v855 = vshll.u32 %v663, 16
          %v857 = vor.u32 %v854, %v855
          %v858 = vsel %vm708, %v847, %v857
          %v860 = vshrl.u32 %v664, 16
          %v862 = vrot.slane %v860, 7
          %v863 = vshll.u32 %v664, 16
          %v865 = vor.u32 %v862, %v863
          %v867 = vshrl.u32 %v665, 16
          %v869 = vrot.slane %v867, 7
          %v870 = vshll.u32 %v665, 16
          %v872 = vor.u32 %v869, %v870
          %v873 = vsel %vm708, %v862, %v872
          %v875 = vshrl.u32 %v666, 16
          %v877 = vrot.slane %v875, 7
          %v878 = vshll.u32 %v666, 16
          %v880 = vor.u32 %v877, %v878
          %v882 = vshrl.u32 %v667, 16
          %v884 = vrot.slane %v882, 7
          %v885 = vshll.u32 %v667, 16
          %v887 = vor.u32 %v884, %v885
          %v888 = vsel %vm708, %v877, %v887
          %v890 = vshrl.u32 %v668, 16
          %v892 = vrot.slane %v890, 7
          %v893 = vshll.u32 %v668, 16
          %v895 = vor.u32 %v892, %v893
          %v897 = vshrl.u32 %v669, 16
          %v899 = vrot.slane %v897, 7
          %v900 = vshll.u32 %v669, 16
          %v902 = vor.u32 %v899, %v900
          %v903 = vsel %vm708, %v892, %v902
          %v905 = vshrl.u32 %v670, 16
          %v907 = vrot.slane %v905, 7
          %v908 = vshll.u32 %v670, 16
          %v910 = vor.u32 %v907, %v908
          %v912 = vshrl.u32 %v671, 16
          %v914 = vrot.slane %v912, 7
          %v915 = vshll.u32 %v671, 16
          %v917 = vor.u32 %v914, %v915
          %v918 = vsel %vm708, %v907, %v917
          %v920 = vshrl.u32 %v672, 16
          %v922 = vrot.slane %v920, 7
          %v923 = vshll.u32 %v672, 16
          %v925 = vor.u32 %v922, %v923
          %v927 = vshrl.u32 %v673, 16
          %v929 = vrot.slane %v927, 7
          %v930 = vshll.u32 %v673, 16
          %v932 = vor.u32 %v929, %v930
          %v933 = vsel %vm708, %v922, %v932
          %v935 = vshrl.u32 %v674, 16
          %v937 = vrot.slane %v935, 7
          %v938 = vshll.u32 %v674, 16
          %v940 = vor.u32 %v937, %v938
          %v942 = vshrl.u32 %v675, 16
          %v944 = vrot.slane %v942, 7
          %v945 = vshll.u32 %v675, 16
          %v947 = vor.u32 %v944, %v945
          %v948 = vsel %vm708, %v937, %v947
          %v950 = vshrl.u32 %v676, 16
          %v952 = vrot.slane %v950, 7
          %v953 = vshll.u32 %v676, 16
          %v955 = vor.u32 %v952, %v953
          %v957 = vshrl.u32 %v677, 16
          %v959 = vrot.slane %v957, 7
          %v960 = vshll.u32 %v677, 16
          %v962 = vor.u32 %v959, %v960
          %v963 = vsel %vm708, %v952, %v962
          %v965 = vshrl.u32 %v678, 16
          %v967 = vrot.slane %v965, 7
          %v968 = vshll.u32 %v678, 16
          %v970 = vor.u32 %v967, %v968
          %v972 = vshrl.u32 %v679, 16
          %v974 = vrot.slane %v972, 7
          %v975 = vshll.u32 %v679, 16
          %v977 = vor.u32 %v974, %v975
          %v978 = vsel %vm708, %v967, %v977
          %v980 = vshrl.u32 %v680, 16
          %v982 = vrot.slane %v980, 7
          %v983 = vshll.u32 %v680, 16
          %v985 = vor.u32 %v982, %v983
          %v987 = vshrl.u32 %v681, 16
          %v989 = vrot.slane %v987, 7
          %v990 = vshll.u32 %v681, 16
          %v992 = vor.u32 %v989, %v990
          %v993 = vsel %vm708, %v982, %v992
          %v995 = vshrl.u32 %v682, 16
          %v997 = vrot.slane %v995, 7
          %v998 = vshll.u32 %v682, 16
          %v1000 = vor.u32 %v997, %v998
          %v1002 = vshrl.u32 %v683, 16
          %v1004 = vrot.slane %v1002, 7
          %v1005 = vshll.u32 %v683, 16
          %v1007 = vor.u32 %v1004, %v1005
          %v1008 = vsel %vm708, %v997, %v1007
          %v1010 = vshrl.u32 %v684, 16
          %v1012 = vrot.slane %v1010, 7
          %v1013 = vshll.u32 %v684, 16
          %v1015 = vor.u32 %v1012, %v1013
          %v1017 = vshrl.u32 %v685, 16
          %v1019 = vrot.slane %v1017, 7
          %v1020 = vshll.u32 %v685, 16
          %v1022 = vor.u32 %v1019, %v1020
          %v1023 = vsel %vm708, %v1012, %v1022
          %v1025 = vshrl.u32 %v686, 16
          %v1027 = vrot.slane %v1025, 7
          %v1028 = vshll.u32 %v686, 16
          %v1030 = vor.u32 %v1027, %v1028
          %v1032 = vshrl.u32 %v687, 16
          %v1034 = vrot.slane %v1032, 7
          %v1035 = vshll.u32 %v687, 16
          %v1037 = vor.u32 %v1034, %v1035
          %v1038 = vsel %vm708, %v1027, %v1037
          %v1040 = vshrl.u32 %v688, 16
          %v1042 = vrot.slane %v1040, 7
          %v1043 = vshll.u32 %v688, 16
          %v1045 = vor.u32 %v1042, %v1043
          %v1047 = vshrl.u32 %v689, 16
          %v1049 = vrot.slane %v1047, 7
          %v1050 = vshll.u32 %v689, 16
          %v1052 = vor.u32 %v1049, %v1050
          %v1053 = vsel %vm708, %v1042, %v1052
          %v1055 = vshrl.u32 %v690, 16
          %v1057 = vrot.slane %v1055, 7
          %v1058 = vshll.u32 %v690, 16
          %v1060 = vor.u32 %v1057, %v1058
          %v1062 = vshrl.u32 %v691, 16
          %v1064 = vrot.slane %v1062, 7
          %v1065 = vshll.u32 %v691, 16
          %v1067 = vor.u32 %v1064, %v1065
          %v1068 = vsel %vm708, %v1057, %v1067
          %v1070 = vshrl.u32 %v692, 16
          %v1072 = vrot.slane %v1070, 7
          %v1073 = vshll.u32 %v692, 16
          %v1075 = vor.u32 %v1072, %v1073
          %v1077 = vshrl.u32 %v693, 16
          %v1079 = vrot.slane %v1077, 7
          %v1080 = vshll.u32 %v693, 16
          %v1082 = vor.u32 %v1079, %v1080
          %v1083 = vsel %vm708, %v1072, %v1082
          %v1085 = vshrl.u32 %v694, 16
          %v1087 = vrot.slane %v1085, 7
          %v1088 = vshll.u32 %v694, 16
          %v1090 = vor.u32 %v1087, %v1088
          %v1092 = vshrl.u32 %v695, 16
          %v1094 = vrot.slane %v1092, 7
          %v1095 = vshll.u32 %v695, 16
          %v1097 = vor.u32 %v1094, %v1095
          %v1098 = vsel %vm708, %v1087, %v1097
          %v1100 = vshrl.u32 %v696, 16
          %v1102 = vrot.slane %v1100, 7
          %v1103 = vshll.u32 %v696, 16
          %v1105 = vor.u32 %v1102, %v1103
          %v1107 = vshrl.u32 %v697, 16
          %v1109 = vrot.slane %v1107, 7
          %v1110 = vshll.u32 %v697, 16
          %v1112 = vor.u32 %v1109, %v1110
          %v1113 = vsel %vm708, %v1102, %v1112
          %v1115 = vshrl.u32 %v698, 16
          %v1117 = vrot.slane %v1115, 7
          %v1118 = vshll.u32 %v698, 16
          %v1120 = vor.u32 %v1117, %v1118
          %v1122 = vshrl.u32 %v699, 16
          %v1124 = vrot.slane %v1122, 7
          %v1125 = vshll.u32 %v699, 16
          %v1127 = vor.u32 %v1124, %v1125
          %v1128 = vsel %vm708, %v1117, %v1127
          %v1130 = vshrl.u32 %v700, 16
          %v1132 = vrot.slane %v1130, 7
          %v1133 = vshll.u32 %v700, 16
          %v1135 = vor.u32 %v1132, %v1133
          %v1137 = vshrl.u32 %v701, 16
          %v1139 = vrot.slane %v1137, 7
          %v1140 = vshll.u32 %v701, 16
          %v1142 = vor.u32 %v1139, %v1140
          %v1143 = vsel %vm708, %v1132, %v1142
          %v1145 = vshrl.u32 %v702, 16
          %v1147 = vrot.slane %v1145, 7
          %v1148 = vshll.u32 %v702, 16
          %v1150 = vor.u32 %v1147, %v1148
          %v1152 = vshrl.u32 %v703, 16
          %v1154 = vrot.slane %v1152, 7
          %v1155 = vshll.u32 %v703, 16
          %v1157 = vor.u32 %v1154, %v1155
          %v1158 = vsel %vm708, %v1147, %v1157
          %v1160 = vshrl.u32 %v704, 16
          %v1162 = vrot.slane %v1160, 7
          %v1163 = vshll.u32 %v704, 16
          %v1165 = vor.u32 %v1162, %v1163
          %v1167 = vshrl.u32 %v705, 16
          %v1169 = vrot.slane %v1167, 7
          %v1170 = vshll.u32 %v705, 16
          %v1172 = vor.u32 %v1169, %v1170
          %v1173 = vsel %vm708, %v1162, %v1172
          %v1175 = vshrl.u32 %v706, 16
          %v1177 = vrot.slane %v1175, 7
          %v1178 = vshll.u32 %v706, 16
          %v1180 = vor.u32 %v1177, %v1178
          %v1182 = vshrl.u32 %v707, 16
          %v1184 = vrot.slane %v1182, 7
          %v1185 = vshll.u32 %v707, 16
          %v1187 = vor.u32 %v1184, %v1185
          %v1188 = vsel %vm708, %v1177, %v1187
          %vm1221 = vcmask 1040384
          %vm1222 = vmand %vm1221, %vm708
          %v1223 = vsel %vm1222, 0, %v715
          %v1224 = vsel %vm1222, 0, %v730
          %v1225 = vsel %vm1222, 0, %v745
          %v1226 = vsel %vm1222, 0, %v760
          %v1227 = vsel %vm1222, 0, %v775
          %v1228 = vsel %vm1222, 0, %v790
          %v1229 = vsel %vm1222, 0, %v805
          %v1230 = vsel %vm1222, 0, %v820
          %v1231 = vsel %vm1222, 0, %v835
          %v1232 = vsel %vm1222, 0, %v850
          %v1233 = vsel %vm1222, 0, %v865
          %v1234 = vsel %vm1222, 0, %v880
          %v1235 = vsel %vm1222, 0, %v895
          %v1236 = vsel %vm1222, 0, %v910
          %v1237 = vsel %vm1222, 0, %v925
          %v1238 = vsel %vm1222, 0, %v940
          %v1239 = vsel %vm1222, 0, %v955
          %v1240 = vsel %vm1222, 0, %v970
          %v1241 = vsel %vm1222, 0, %v985
          %v1242 = vsel %vm1222, 0, %v1000
          %v1243 = vsel %vm1222, 0, %v1015
          %v1244 = vsel %vm1222, 0, %v1030
          %v1245 = vsel %vm1222, 0, %v1045
          %v1246 = vsel %vm1222, 0, %v1060
          %v1247 = vsel %vm1222, 0, %v1075
          %v1248 = vsel %vm1222, 0, %v1090
          %v1249 = vsel %vm1222, 0, %v1105
          %v1250 = vsel %vm1222, 0, %v1120
          %v1251 = vsel %vm1222, 0, %v1135
          %v1252 = vsel %vm1222, 0, %v1150
          %v1253 = vsel %vm1222, 0, %v1165
          %v1254 = vsel %vm1222, 0, %v1180
          %vm1255 = vsmask.f32 7424
          %v1256 = vrot.slane %v713, 1
          %v1257 = vor.u32 %v710, %v1256
          %v1258 = vrot.slane %v720, 1
          %v1259 = vsel %vm1255, %v1257, %v1258
          %v1260 = vor.u32 %v717, %v1258
          %v1261 = vrot.slane %v728, 1
          %v1262 = vor.u32 %v725, %v1261
          %v1263 = vrot.slane %v735, 1
          %v1264 = vsel %vm1255, %v1262, %v1263
          %v1265 = vor.u32 %v732, %v1263
          %v1266 = vrot.slane %v743, 1
          %v1267 = vor.u32 %v740, %v1266
          %v1268 = vrot.slane %v750, 1
          %v1269 = vsel %vm1255, %v1267, %v1268
          %v1270 = vor.u32 %v747, %v1268
          %v1271 = vrot.slane %v758, 1
          %v1272 = vor.u32 %v755, %v1271
          %v1273 = vrot.slane %v765, 1
          %v1274 = vsel %vm1255, %v1272, %v1273
          %v1275 = vor.u32 %v762, %v1273
          %v1276 = vrot.slane %v773, 1
          %v1277 = vor.u32 %v770, %v1276
          %v1278 = vrot.slane %v780, 1
          %v1279 = vsel %vm1255, %v1277, %v1278
          %v1280 = vor.u32 %v777, %v1278
          %v1281 = vrot.slane %v788, 1
          %v1282 = vor.u32 %v785, %v1281
          %v1283 = vrot.slane %v795, 1
          %v1284 = vsel %vm1255, %v1282, %v1283
          %v1285 = vor.u32 %v792, %v1283
          %v1286 = vrot.slane %v803, 1
          %v1287 = vor.u32 %v800, %v1286
          %v1288 = vrot.slane %v810, 1
          %v1289 = vsel %vm1255, %v1287, %v1288
          %v1290 = vor.u32 %v807, %v1288
          %v1291 = vrot.slane %v818, 1
          %v1292 = vor.u32 %v815, %v1291
          %v1293 = vrot.slane %v825, 1
          %v1294 = vsel %vm1255, %v1292, %v1293
          %v1295 = vor.u32 %v822, %v1293
          %v1296 = vrot.slane %v833, 1
          %v1297 = vor.u32 %v830, %v1296
          %v1298 = vrot.slane %v840, 1
          %v1299 = vsel %vm1255, %v1297, %v1298
          %v1300 = vor.u32 %v837, %v1298
          %v1301 = vrot.slane %v848, 1
          %v1302 = vor.u32 %v845, %v1301
          %v1303 = vrot.slane %v855, 1
          %v1304 = vsel %vm1255, %v1302, %v1303
          %v1305 = vor.u32 %v852, %v1303
          %v1306 = vrot.slane %v863, 1
          %v1307 = vor.u32 %v860, %v1306
          %v1308 = vrot.slane %v870, 1
          %v1309 = vsel %vm1255, %v1307, %v1308
          %v1310 = vor.u32 %v867, %v1308
          %v1311 = vrot.slane %v878, 1
          %v1312 = vor.u32 %v875, %v1311
          %v1313 = vrot.slane %v885, 1
          %v1314 = vsel %vm1255, %v1312, %v1313
          %v1315 = vor.u32 %v882, %v1313
          %v1316 = vrot.slane %v893, 1
          %v1317 = vor.u32 %v890, %v1316
          %v1318 = vrot.slane %v900, 1
          %v1319 = vsel %vm1255, %v1317, %v1318
          %v1320 = vor.u32 %v897, %v1318
          %v1321 = vrot.slane %v908, 1
          %v1322 = vor.u32 %v905, %v1321
          %v1323 = vrot.slane %v915, 1
          %v1324 = vsel %vm1255, %v1322, %v1323
          %v1325 = vor.u32 %v912, %v1323
          %v1326 = vrot.slane %v923, 1
          %v1327 = vor.u32 %v920, %v1326
          %v1328 = vrot.slane %v930, 1
          %v1329 = vsel %vm1255, %v1327, %v1328
          %v1330 = vor.u32 %v927, %v1328
          %v1331 = vrot.slane %v938, 1
          %v1332 = vor.u32 %v935, %v1331
          %v1333 = vrot.slane %v945, 1
          %v1334 = vsel %vm1255, %v1332, %v1333
          %v1335 = vor.u32 %v942, %v1333
          %v1336 = vrot.slane %v953, 1
          %v1337 = vor.u32 %v950, %v1336
          %v1338 = vrot.slane %v960, 1
          %v1339 = vsel %vm1255, %v1337, %v1338
          %v1340 = vor.u32 %v957, %v1338
          %v1341 = vrot.slane %v968, 1
          %v1342 = vor.u32 %v965, %v1341
          %v1343 = vrot.slane %v975, 1
          %v1344 = vsel %vm1255, %v1342, %v1343
          %v1345 = vor.u32 %v972, %v1343
          %v1346 = vrot.slane %v983, 1
          %v1347 = vor.u32 %v980, %v1346
          %v1348 = vrot.slane %v990, 1
          %v1349 = vsel %vm1255, %v1347, %v1348
          %v1350 = vor.u32 %v987, %v1348
          %v1351 = vrot.slane %v998, 1
          %v1352 = vor.u32 %v995, %v1351
          %v1353 = vrot.slane %v1005, 1
          %v1354 = vsel %vm1255, %v1352, %v1353
          %v1355 = vor.u32 %v1002, %v1353
          %v1356 = vrot.slane %v1013, 1
          %v1357 = vor.u32 %v1010, %v1356
          %v1358 = vrot.slane %v1020, 1
          %v1359 = vsel %vm1255, %v1357, %v1358
          %v1360 = vor.u32 %v1017, %v1358
          %v1361 = vrot.slane %v1028, 1
          %v1362 = vor.u32 %v1025, %v1361
          %v1363 = vrot.slane %v1035, 1
          %v1364 = vsel %vm1255, %v1362, %v1363
          %v1365 = vor.u32 %v1032, %v1363
          %v1366 = vrot.slane %v1043, 1
          %v1367 = vor.u32 %v1040, %v1366
          %v1368 = vrot.slane %v1050, 1
          %v1369 = vsel %vm1255, %v1367, %v1368
          %v1370 = vor.u32 %v1047, %v1368
          %v1371 = vrot.slane %v1058, 1
          %v1372 = vor.u32 %v1055, %v1371
          %v1373 = vrot.slane %v1065, 1
          %v1374 = vsel %vm1255, %v1372, %v1373
          %v1375 = vor.u32 %v1062, %v1373
          %v1376 = vrot.slane %v1073, 1
          %v1377 = vor.u32 %v1070, %v1376
          %v1378 = vrot.slane %v1080, 1
          %v1379 = vsel %vm1255, %v1377, %v1378
          %v1380 = vor.u32 %v1077, %v1378
          %v1381 = vrot.slane %v1088, 1
          %v1382 = vor.u32 %v1085, %v1381
          %v1383 = vrot.slane %v1095, 1
          %v1384 = vsel %vm1255, %v1382, %v1383
          %v1385 = vor.u32 %v1092, %v1383
          %v1386 = vrot.slane %v1103, 1
          %v1387 = vor.u32 %v1100, %v1386
          %v1388 = vrot.slane %v1110, 1
          %v1389 = vsel %vm1255, %v1387, %v1388
          %v1390 = vor.u32 %v1107, %v1388
          %v1391 = vrot.slane %v1118, 1
          %v1392 = vor.u32 %v1115, %v1391
          %v1393 = vrot.slane %v1125, 1
          %v1394 = vsel %vm1255, %v1392, %v1393
          %v1395 = vor.u32 %v1122, %v1393
          %v1396 = vrot.slane %v1133, 1
          %v1397 = vor.u32 %v1130, %v1396
          %v1398 = vrot.slane %v1140, 1
          %v1399 = vsel %vm1255, %v1397, %v1398
          %v1400 = vor.u32 %v1137, %v1398
          %v1401 = vrot.slane %v1148, 1
          %v1402 = vor.u32 %v1145, %v1401
          %v1403 = vrot.slane %v1155, 1
          %v1404 = vsel %vm1255, %v1402, %v1403
          %v1405 = vor.u32 %v1152, %v1403
          %v1406 = vrot.slane %v1163, 1
          %v1407 = vor.u32 %v1160, %v1406
          %v1408 = vrot.slane %v1170, 1
          %v1409 = vsel %vm1255, %v1407, %v1408
          %v1410 = vor.u32 %v1167, %v1408
          %v1411 = vrot.slane %v1178, 1
          %v1412 = vor.u32 %v1175, %v1411
          %v1413 = vrot.slane %v1185, 1
          %v1414 = vsel %vm1255, %v1412, %v1413
          %v1415 = vor.u32 %v1182, %v1413
          %vm1448 = vcmask 1047552
          %vm1449 = vmand %vm1448, %vm1255
          %v1450 = vsel %vm1449, %v1260, 0
          %v1451 = vsel %vm1449, %v1265, 0
          %v1452 = vsel %vm1449, %v1270, 0
          %v1453 = vsel %vm1449, %v1275, 0
          %v1454 = vsel %vm1449, %v1280, 0
          %v1455 = vsel %vm1449, %v1285, 0
          %v1456 = vsel %vm1449, %v1290, 0
          %v1457 = vsel %vm1449, %v1295, 0
          %v1458 = vsel %vm1449, %v1300, 0
          %v1459 = vsel %vm1449, %v1305, 0
          %v1460 = vsel %vm1449, %v1310, 0
          %v1461 = vsel %vm1449, %v1315, 0
          %v1462 = vsel %vm1449, %v1320, 0
          %v1463 = vsel %vm1449, %v1325, 0
          %v1464 = vsel %vm1449, %v1330, 0
          %v1465 = vsel %vm1449, %v1335, 0
          %v1466 = vsel %vm1449, %v1340, 0
          %v1467 = vsel %vm1449, %v1345, 0
          %v1468 = vsel %vm1449, %v1350, 0
          %v1469 = vsel %vm1449, %v1355, 0
          %v1470 = vsel %vm1449, %v1360, 0
          %v1471 = vsel %vm1449, %v1365, 0
          %v1472 = vsel %vm1449, %v1370, 0
          %v1473 = vsel %vm1449, %v1375, 0
          %v1474 = vsel %vm1449, %v1380, 0
          %v1475 = vsel %vm1449, %v1385, 0
          %v1476 = vsel %vm1449, %v1390, 0
          %v1477 = vsel %vm1449, %v1395, 0
          %v1478 = vsel %vm1449, %v1400, 0
          %v1479 = vsel %vm1449, %v1405, 0
          %v1480 = vsel %vm1449, %v1410, 0
          %v1481 = vsel %vm1449, %v1415, 0
          %1482 = vrot.lane.b32.xlu0 %v644, 3
          %v1483 = vpop.permute.xlu0 %1482
          %1484 = vrot.lane.b32.xlu0 %v645, 3
          %v1485 = vpop.permute.xlu0 %1484
          %1486 = vrot.lane.b32.xlu0 %v646, 3
          %v1487 = vpop.permute.xlu0 %1486
          %1488 = vrot.lane.b32.xlu0 %v647, 3
          %v1489 = vpop.permute.xlu0 %1488
          %1490 = vrot.lane.b32.xlu0 %v648, 3
          %v1491 = vpop.permute.xlu0 %1490
          %1492 = vrot.lane.b32.xlu0 %v649, 3
          %v1493 = vpop.permute.xlu0 %1492
          %1494 = vrot.lane.b32.xlu0 %v650, 3
          %v1495 = vpop.permute.xlu0 %1494
          %1496 = vrot.lane.b32.xlu0 %v651, 3
          %v1497 = vpop.permute.xlu0 %1496
          %1498 = vrot.lane.b32.xlu0 %v652, 3
          %v1499 = vpop.permute.xlu0 %1498
          %1500 = vrot.lane.b32.xlu0 %v653, 3
          %v1501 = vpop.permute.xlu0 %1500
          %1502 = vrot.lane.b32.xlu0 %v654, 3
          %v1503 = vpop.permute.xlu0 %1502
          %1504 = vrot.lane.b32.xlu0 %v655, 3
          %v1505 = vpop.permute.xlu0 %1504
          %1506 = vrot.lane.b32.xlu0 %v656, 3
          %v1507 = vpop.permute.xlu0 %1506
          %1508 = vrot.lane.b32.xlu0 %v657, 3
          %v1509 = vpop.permute.xlu0 %1508
          %1510 = vrot.lane.b32.xlu0 %v658, 3
          %v1511 = vpop.permute.xlu0 %1510
          %1512 = vrot.lane.b32.xlu0 %v659, 3
          %v1513 = vpop.permute.xlu0 %1512
          %1514 = vrot.lane.b32.xlu0 %v660, 3
          %v1515 = vpop.permute.xlu0 %1514
          %1516 = vrot.lane.b32.xlu0 %v661, 3
          %v1517 = vpop.permute.xlu0 %1516
          %1518 = vrot.lane.b32.xlu0 %v662, 3
          %v1519 = vpop.permute.xlu0 %1518
          %1520 = vrot.lane.b32.xlu0 %v663, 3
          %v1521 = vpop.permute.xlu0 %1520
          %1522 = vrot.lane.b32.xlu0 %v664, 3
          %v1523 = vpop.permute.xlu0 %1522
          %1524 = vrot.lane.b32.xlu0 %v665, 3
          %v1525 = vpop.permute.xlu0 %1524
          %1526 = vrot.lane.b32.xlu0 %v666, 3
          %v1527 = vpop.permute.xlu0 %1526
          %1528 = vrot.lane.b32.xlu0 %v667, 3
          %v1529 = vpop.permute.xlu0 %1528
          %1530 = vrot.lane.b32.xlu0 %v668, 3
          %v1531 = vpop.permute.xlu0 %1530
          %1532 = vrot.lane.b32.xlu0 %v669, 3
          %v1533 = vpop.permute.xlu0 %1532
          %1534 = vrot.lane.b32.xlu0 %v670, 3
          %v1535 = vpop.permute.xlu0 %1534
          %1536 = vrot.lane.b32.xlu0 %v671, 3
          %v1537 = vpop.permute.xlu0 %1536
          %1538 = vrot.lane.b32.xlu0 %v672, 3
          %v1539 = vpop.permute.xlu0 %1538
          %1540 = vrot.lane.b32.xlu0 %v673, 3
          %v1541 = vpop.permute.xlu0 %1540
          %1542 = vrot.lane.b32.xlu0 %v674, 3
          %v1543 = vpop.permute.xlu0 %1542
          %1544 = vrot.lane.b32.xlu0 %v675, 3
          %v1545 = vpop.permute.xlu0 %1544
          %1546 = vrot.lane.b32.xlu0 %v676, 3
          %v1547 = vpop.permute.xlu0 %1546
          %1548 = vrot.lane.b32.xlu0 %v677, 3
          %v1549 = vpop.permute.xlu0 %1548
          %1550 = vrot.lane.b32.xlu0 %v678, 3
          %v1551 = vpop.permute.xlu0 %1550
          %1552 = vrot.lane.b32.xlu0 %v679, 3
          %v1553 = vpop.permute.xlu0 %1552
          %1554 = vrot.lane.b32.xlu0 %v680, 3
          %v1555 = vpop.permute.xlu0 %1554
          %1556 = vrot.lane.b32.xlu0 %v681, 3
          %v1557 = vpop.permute.xlu0 %1556
          %1558 = vrot.lane.b32.xlu0 %v682, 3
          %v1559 = vpop.permute.xlu0 %1558
          %1560 = vrot.lane.b32.xlu0 %v683, 3
          %v1561 = vpop.permute.xlu0 %1560
          %1562 = vrot.lane.b32.xlu0 %v684, 3
          %v1563 = vpop.permute.xlu0 %1562
          %1564 = vrot.lane.b32.xlu0 %v685, 3
          %v1565 = vpop.permute.xlu0 %1564
          %1566 = vrot.lane.b32.xlu0 %v686, 3
          %v1567 = vpop.permute.xlu0 %1566
          %1568 = vrot.lane.b32.xlu0 %v687, 3
          %v1569 = vpop.permute.xlu0 %1568
          %1570 = vrot.lane.b32.xlu0 %v688, 3
          %v1571 = vpop.permute.xlu0 %1570
          %1572 = vrot.lane.b32.xlu0 %v689, 3
          %v1573 = vpop.permute.xlu0 %1572
          %1574 = vrot.lane.b32.xlu0 %v690, 3
          %v1575 = vpop.permute.xlu0 %1574
          %1576 = vrot.lane.b32.xlu0 %v691, 3
          %v1577 = vpop.permute.xlu0 %1576
          %1578 = vrot.lane.b32.xlu0 %v692, 3
          %v1579 = vpop.permute.xlu0 %1578
          %1580 = vrot.lane.b32.xlu0 %v693, 3
          %v1581 = vpop.permute.xlu0 %1580
          %1582 = vrot.lane.b32.xlu0 %v694, 3
          %v1583 = vpop.permute.xlu0 %1582
          %1584 = vrot.lane.b32.xlu0 %v695, 3
          %v1585 = vpop.permute.xlu0 %1584
          %1586 = vrot.lane.b32.xlu0 %v696, 3
          %v1587 = vpop.permute.xlu0 %1586
          %1588 = vrot.lane.b32.xlu0 %v697, 3
          %v1589 = vpop.permute.xlu0 %1588
          %1590 = vrot.lane.b32.xlu0 %v698, 3
          %v1591 = vpop.permute.xlu0 %1590
          %1592 = vrot.lane.b32.xlu0 %v699, 3
          %v1593 = vpop.permute.xlu0 %1592
          %1594 = vrot.lane.b32.xlu0 %v700, 3
          %v1595 = vpop.permute.xlu0 %1594
          %1596 = vrot.lane.b32.xlu0 %v701, 3
          %v1597 = vpop.permute.xlu0 %1596
          %1598 = vrot.lane.b32.xlu0 %v702, 3
          %v1599 = vpop.permute.xlu0 %1598
          %1600 = vrot.lane.b32.xlu0 %v703, 3
          %v1601 = vpop.permute.xlu0 %1600
          %1602 = vrot.lane.b32.xlu0 %v704, 3
          %v1603 = vpop.permute.xlu0 %1602
          %1604 = vrot.lane.b32.xlu0 %v705, 3
          %v1605 = vpop.permute.xlu0 %1604
          %1606 = vrot.lane.b32.xlu0 %v706, 3
          %v1607 = vpop.permute.xlu0 %1606
          %1608 = vrot.lane.b32.xlu0 %v707, 3
          %v1609 = vpop.permute.xlu0 %1608
          %1642 = vrot.lane.b32.xlu0 %v1259, 6
          %v1643 = vpop.permute.xlu0 %1642
          %1644 = vrot.lane.b32.xlu0 %v1450, 6
          %v1645 = vpop.permute.xlu0 %1644
          %1646 = vrot.lane.b32.xlu0 %v1264, 6
          %v1647 = vpop.permute.xlu0 %1646
          %1648 = vrot.lane.b32.xlu0 %v1451, 6
          %v1649 = vpop.permute.xlu0 %1648
          %1650 = vrot.lane.b32.xlu0 %v1269, 6
          %v1651 = vpop.permute.xlu0 %1650
          %1652 = vrot.lane.b32.xlu0 %v1452, 6
          %v1653 = vpop.permute.xlu0 %1652
          %1654 = vrot.lane.b32.xlu0 %v1274, 6
          %v1655 = vpop.permute.xlu0 %1654
          %1656 = vrot.lane.b32.xlu0 %v1453, 6
          %v1657 = vpop.permute.xlu0 %1656
          %1658 = vrot.lane.b32.xlu0 %v1279, 6
          %v1659 = vpop.permute.xlu0 %1658
          %1660 = vrot.lane.b32.xlu0 %v1454, 6
          %v1661 = vpop.permute.xlu0 %1660
          %1662 = vrot.lane.b32.xlu0 %v1284, 6
          %v1663 = vpop.permute.xlu0 %1662
          %1664 = vrot.lane.b32.xlu0 %v1455, 6
          %v1665 = vpop.permute.xlu0 %1664
          %1666 = vrot.lane.b32.xlu0 %v1289, 6
          %v1667 = vpop.permute.xlu0 %1666
          %1668 = vrot.lane.b32.xlu0 %v1456, 6
          %v1669 = vpop.permute.xlu0 %1668
          %1670 = vrot.lane.b32.xlu0 %v1294, 6
          %v1671 = vpop.permute.xlu0 %1670
          %1672 = vrot.lane.b32.xlu0 %v1457, 6
          %v1673 = vpop.permute.xlu0 %1672
          %1674 = vrot.lane.b32.xlu0 %v1299, 6
          %v1675 = vpop.permute.xlu0 %1674
          %1676 = vrot.lane.b32.xlu0 %v1458, 6
          %v1677 = vpop.permute.xlu0 %1676
          %1678 = vrot.lane.b32.xlu0 %v1304, 6
          %v1679 = vpop.permute.xlu0 %1678
          %1680 = vrot.lane.b32.xlu0 %v1459, 6
          %v1681 = vpop.permute.xlu0 %1680
          %1682 = vrot.lane.b32.xlu0 %v1309, 6
          %v1683 = vpop.permute.xlu0 %1682
          %1684 = vrot.lane.b32.xlu0 %v1460, 6
          %v1685 = vpop.permute.xlu0 %1684
          %1686 = vrot.lane.b32.xlu0 %v1314, 6
          %v1687 = vpop.permute.xlu0 %1686
          %1688 = vrot.lane.b32.xlu0 %v1461, 6
          %v1689 = vpop.permute.xlu0 %1688
          %1690 = vrot.lane.b32.xlu0 %v1319, 6
          %v1691 = vpop.permute.xlu0 %1690
          %1692 = vrot.lane.b32.xlu0 %v1462, 6
          %v1693 = vpop.permute.xlu0 %1692
          %1694 = vrot.lane.b32.xlu0 %v1324, 6
          %v1695 = vpop.permute.xlu0 %1694
          %1696 = vrot.lane.b32.xlu0 %v1463, 6
          %v1697 = vpop.permute.xlu0 %1696
          %1698 = vrot.lane.b32.xlu0 %v1329, 6
          %v1699 = vpop.permute.xlu0 %1698
          %1700 = vrot.lane.b32.xlu0 %v1464, 6
          %v1701 = vpop.permute.xlu0 %1700
          %1702 = vrot.lane.b32.xlu0 %v1334, 6
          %v1703 = vpop.permute.xlu0 %1702
          %1704 = vrot.lane.b32.xlu0 %v1465, 6
          %v1705 = vpop.permute.xlu0 %1704
          %1706 = vrot.lane.b32.xlu0 %v1339, 6
          %v1707 = vpop.permute.xlu0 %1706
          %1708 = vrot.lane.b32.xlu0 %v1466, 6
          %v1709 = vpop.permute.xlu0 %1708
          %1710 = vrot.lane.b32.xlu0 %v1344, 6
          %v1711 = vpop.permute.xlu0 %1710
          %1712 = vrot.lane.b32.xlu0 %v1467, 6
          %v1713 = vpop.permute.xlu0 %1712
          %1714 = vrot.lane.b32.xlu0 %v1349, 6
          %v1715 = vpop.permute.xlu0 %1714
          %1716 = vrot.lane.b32.xlu0 %v1468, 6
          %v1717 = vpop.permute.xlu0 %1716
          %1718 = vrot.lane.b32.xlu0 %v1354, 6
          %v1719 = vpop.permute.xlu0 %1718
          %1720 = vrot.lane.b32.xlu0 %v1469, 6
          %v1721 = vpop.permute.xlu0 %1720
          %1722 = vrot.lane.b32.xlu0 %v1359, 6
          %v1723 = vpop.permute.xlu0 %1722
          %1724 = vrot.lane.b32.xlu0 %v1470, 6
          %v1725 = vpop.permute.xlu0 %1724
          %1726 = vrot.lane.b32.xlu0 %v1364, 6
          %v1727 = vpop.permute.xlu0 %1726
          %1728 = vrot.lane.b32.xlu0 %v1471, 6
          %v1729 = vpop.permute.xlu0 %1728
          %1730 = vrot.lane.b32.xlu0 %v1369, 6
          %v1731 = vpop.permute.xlu0 %1730
          %1732 = vrot.lane.b32.xlu0 %v1472, 6
          %v1733 = vpop.permute.xlu0 %1732
          %1734 = vrot.lane.b32.xlu0 %v1374, 6
          %v1735 = vpop.permute.xlu0 %1734
          %1736 = vrot.lane.b32.xlu0 %v1473, 6
          %v1737 = vpop.permute.xlu0 %1736
          %1738 = vrot.lane.b32.xlu0 %v1379, 6
          %v1739 = vpop.permute.xlu0 %1738
          %1740 = vrot.lane.b32.xlu0 %v1474, 6
          %v1741 = vpop.permute.xlu0 %1740
          %1742 = vrot.lane.b32.xlu0 %v1384, 6
          %v1743 = vpop.permute.xlu0 %1742
          %1744 = vrot.lane.b32.xlu0 %v1475, 6
          %v1745 = vpop.permute.xlu0 %1744
          %1746 = vrot.lane.b32.xlu0 %v1389, 6
          %v1747 = vpop.permute.xlu0 %1746
          %1748 = vrot.lane.b32.xlu0 %v1476, 6
          %v1749 = vpop.permute.xlu0 %1748
          %1750 = vrot.lane.b32.xlu0 %v1394, 6
          %v1751 = vpop.permute.xlu0 %1750
          %1752 = vrot.lane.b32.xlu0 %v1477, 6
          %v1753 = vpop.permute.xlu0 %1752
          %1754 = vrot.lane.b32.xlu0 %v1399, 6
          %v1755 = vpop.permute.xlu0 %1754
          %1756 = vrot.lane.b32.xlu0 %v1478, 6
          %v1757 = vpop.permute.xlu0 %1756
          %1758 = vrot.lane.b32.xlu0 %v1404, 6
          %v1759 = vpop.permute.xlu0 %1758
          %1760 = vrot.lane.b32.xlu0 %v1479, 6
          %v1761 = vpop.permute.xlu0 %1760
          %1762 = vrot.lane.b32.xlu0 %v1409, 6
          %v1763 = vpop.permute.xlu0 %1762
          %1764 = vrot.lane.b32.xlu0 %v1480, 6
          %v1765 = vpop.permute.xlu0 %1764
          %1766 = vrot.lane.b32.xlu0 %v1414, 6
          %v1767 = vpop.permute.xlu0 %1766
          %1768 = vrot.lane.b32.xlu0 %v1481, 6
          %v1769 = vpop.permute.xlu0 %1768
          %vm1770 = vcmask 23552
          %v1773 = vsel %vm1770, %v1223, %v1483
          %v1776 = vsel %vm1770, %v723, %v1485
          %v1779 = vsel %vm1770, %v1224, %v1487
          %v1782 = vsel %vm1770, %v738, %v1489
          %v1785 = vsel %vm1770, %v1225, %v1491
          %v1788 = vsel %vm1770, %v753, %v1493
          %v1791 = vsel %vm1770, %v1226, %v1495
          %v1794 = vsel %vm1770, %v768, %v1497
          %v1797 = vsel %vm1770, %v1227, %v1499
          %v1800 = vsel %vm1770, %v783, %v1501
          %v1803 = vsel %vm1770, %v1228, %v1503
          %v1806 = vsel %vm1770, %v798, %v1505
          %v1809 = vsel %vm1770, %v1229, %v1507
          %v1812 = vsel %vm1770, %v813, %v1509
          %v1815 = vsel %vm1770, %v1230, %v1511
          %v1818 = vsel %vm1770, %v828, %v1513
          %v1821 = vsel %vm1770, %v1231, %v1515
          %v1824 = vsel %vm1770, %v843, %v1517
          %v1827 = vsel %vm1770, %v1232, %v1519
          %v1830 = vsel %vm1770, %v858, %v1521
          %v1833 = vsel %vm1770, %v1233, %v1523
          %v1836 = vsel %vm1770, %v873, %v1525
          %v1839 = vsel %vm1770, %v1234, %v1527
          %v1842 = vsel %vm1770, %v888, %v1529
          %v1845 = vsel %vm1770, %v1235, %v1531
          %v1848 = vsel %vm1770, %v903, %v1533
          %v1851 = vsel %vm1770, %v1236, %v1535
          %v1854 = vsel %vm1770, %v918, %v1537
          %v1857 = vsel %vm1770, %v1237, %v1539
          %v1860 = vsel %vm1770, %v933, %v1541
          %v1863 = vsel %vm1770, %v1238, %v1543
          %v1866 = vsel %vm1770, %v948, %v1545
          %v1869 = vsel %vm1770, %v1239, %v1547
          %v1872 = vsel %vm1770, %v963, %v1549
          %v1875 = vsel %vm1770, %v1240, %v1551
          %v1878 = vsel %vm1770, %v978, %v1553
          %v1881 = vsel %vm1770, %v1241, %v1555
          %v1884 = vsel %vm1770, %v993, %v1557
          %v1887 = vsel %vm1770, %v1242, %v1559
          %v1890 = vsel %vm1770, %v1008, %v1561
          %v1893 = vsel %vm1770, %v1243, %v1563
          %v1896 = vsel %vm1770, %v1023, %v1565
          %v1899 = vsel %vm1770, %v1244, %v1567
          %v1902 = vsel %vm1770, %v1038, %v1569
          %v1905 = vsel %vm1770, %v1245, %v1571
          %v1908 = vsel %vm1770, %v1053, %v1573
          %v1911 = vsel %vm1770, %v1246, %v1575
          %v1914 = vsel %vm1770, %v1068, %v1577
          %v1917 = vsel %vm1770, %v1247, %v1579
          %v1920 = vsel %vm1770, %v1083, %v1581
          %v1923 = vsel %vm1770, %v1248, %v1583
          %v1926 = vsel %vm1770, %v1098, %v1585
          %v1929 = vsel %vm1770, %v1249, %v1587
          %v1932 = vsel %vm1770, %v1113, %v1589
          %v1935 = vsel %vm1770, %v1250, %v1591
          %v1938 = vsel %vm1770, %v1128, %v1593
          %v1941 = vsel %vm1770, %v1251, %v1595
          %v1944 = vsel %vm1770, %v1143, %v1597
          %v1947 = vsel %vm1770, %v1252, %v1599
          %v1950 = vsel %vm1770, %v1158, %v1601
          %v1953 = vsel %vm1770, %v1253, %v1603
          %v1956 = vsel %vm1770, %v1173, %v1605
          %v1959 = vsel %vm1770, %v1254, %v1607
          %v1962 = vsel %vm1770, %v1188, %v1609
          %vm1963 = vcmask 48128
          %v1965 = vsel %vm1963, %v1773, %v1643
          %v1967 = vsel %vm1963, %v1776, %v1645
          %v1969 = vsel %vm1963, %v1779, %v1647
          %v1971 = vsel %vm1963, %v1782, %v1649
          %v1973 = vsel %vm1963, %v1785, %v1651
          %v1975 = vsel %vm1963, %v1788, %v1653
          %v1977 = vsel %vm1963, %v1791, %v1655
          %v1979 = vsel %vm1963, %v1794, %v1657
          %v1981 = vsel %vm1963, %v1797, %v1659
          %v1983 = vsel %vm1963, %v1800, %v1661
          %v1985 = vsel %vm1963, %v1803, %v1663
          %v1987 = vsel %vm1963, %v1806, %v1665
          %v1989 = vsel %vm1963, %v1809, %v1667
          %v1991 = vsel %vm1963, %v1812, %v1669
          %v1993 = vsel %vm1963, %v1815, %v1671
          %v1995 = vsel %vm1963, %v1818, %v1673
          %v1997 = vsel %vm1963, %v1821, %v1675
          %v1999 = vsel %vm1963, %v1824, %v1677
          %v2001 = vsel %vm1963, %v1827, %v1679
          %v2003 = vsel %vm1963, %v1830, %v1681
          %v2005 = vsel %vm1963, %v1833, %v1683
          %v2007 = vsel %vm1963, %v1836, %v1685
          %v2009 = vsel %vm1963, %v1839, %v1687
          %v2011 = vsel %vm1963, %v1842, %v1689
          %v2013 = vsel %vm1963, %v1845, %v1691
          %v2015 = vsel %vm1963, %v1848, %v1693
          %v2017 = vsel %vm1963, %v1851, %v1695
          %v2019 = vsel %vm1963, %v1854, %v1697
          %v2021 = vsel %vm1963, %v1857, %v1699
          %v2023 = vsel %vm1963, %v1860, %v1701
          %v2025 = vsel %vm1963, %v1863, %v1703
          %v2027 = vsel %vm1963, %v1866, %v1705
          %v2029 = vsel %vm1963, %v1869, %v1707
          %v2031 = vsel %vm1963, %v1872, %v1709
          %v2033 = vsel %vm1963, %v1875, %v1711
          %v2035 = vsel %vm1963, %v1878, %v1713
          %v2037 = vsel %vm1963, %v1881, %v1715
          %v2039 = vsel %vm1963, %v1884, %v1717
          %v2041 = vsel %vm1963, %v1887, %v1719
          %v2043 = vsel %vm1963, %v1890, %v1721
          %v2045 = vsel %vm1963, %v1893, %v1723
          %v2047 = vsel %vm1963, %v1896, %v1725
          %v2049 = vsel %vm1963, %v1899, %v1727
          %v2051 = vsel %vm1963, %v1902, %v1729
          %v2053 = vsel %vm1963, %v1905, %v1731
          %v2055 = vsel %vm1963, %v1908, %v1733
          %v2057 = vsel %vm1963, %v1911, %v1735
          %v2059 = vsel %vm1963, %v1914, %v1737
          %v2061 = vsel %vm1963, %v1917, %v1739
          %v2063 = vsel %vm1963, %v1920, %v1741
          %v2065 = vsel %vm1963, %v1923, %v1743
          %v2067 = vsel %vm1963, %v1926, %v1745
          %v2069 = vsel %vm1963, %v1929, %v1747
          %v2071 = vsel %vm1963, %v1932, %v1749
          %v2073 = vsel %vm1963, %v1935, %v1751
          %v2075 = vsel %vm1963, %v1938, %v1753
          %v2077 = vsel %vm1963, %v1941, %v1755
          %v2079 = vsel %vm1963, %v1944, %v1757
          %v2081 = vsel %vm1963, %v1947, %v1759
          %v2083 = vsel %vm1963, %v1950, %v1761
          %v2085 = vsel %vm1963, %v1953, %v1763
          %v2087 = vsel %vm1963, %v1956, %v1765
          %v2089 = vsel %vm1963, %v1959, %v1767
          %v2091 = vsel %vm1963, %v1962, %v1769
          %v2157 = vunpack.c.l.b16 0
          %v2158 = vunpack.c.h.b16 0
          %v2159 = vunpack.c.l.b16 %v1965
          %v2160 = vunpack.c.h.b16 %v1965
          %v2161 = vunpack.c.l.b16 %v1967
          %v2162 = vunpack.c.h.b16 %v1967
          %v2163 = vunpack.c.l.b16 %v1969
          %v2164 = vunpack.c.h.b16 %v1969
          %v2165 = vunpack.c.l.b16 %v1971
          %v2166 = vunpack.c.h.b16 %v1971
          %v2167 = vunpack.c.l.b16 %v1973
          %v2168 = vunpack.c.h.b16 %v1973
          %v2169 = vunpack.c.l.b16 %v1975
          %v2170 = vunpack.c.h.b16 %v1975
          %v2171 = vunpack.c.l.b16 %v1977
          %v2172 = vunpack.c.h.b16 %v1977
          %v2173 = vunpack.c.l.b16 %v1979
          %v2174 = vunpack.c.h.b16 %v1979
          %v2175 = vunpack.c.l.b16 %v1981
          %v2176 = vunpack.c.h.b16 %v1981
          %v2177 = vunpack.c.l.b16 %v1983
          %v2178 = vunpack.c.h.b16 %v1983
          %v2179 = vunpack.c.l.b16 %v1985
          %v2180 = vunpack.c.h.b16 %v1985
          %v2181 = vunpack.c.l.b16 %v1987
          %v2182 = vunpack.c.h.b16 %v1987
          %v2183 = vunpack.c.l.b16 %v1989
          %v2184 = vunpack.c.h.b16 %v1989
          %v2185 = vunpack.c.l.b16 %v1991
          %v2186 = vunpack.c.h.b16 %v1991
          %v2187 = vunpack.c.l.b16 %v1993
          %v2188 = vunpack.c.h.b16 %v1993
          %v2189 = vunpack.c.l.b16 %v1995
          %v2190 = vunpack.c.h.b16 %v1995
          %v2191 = vunpack.c.l.b16 %v1997
          %v2192 = vunpack.c.h.b16 %v1997
          %v2193 = vunpack.c.l.b16 %v1999
          %v2194 = vunpack.c.h.b16 %v1999
          %v2195 = vunpack.c.l.b16 %v2001
          %v2196 = vunpack.c.h.b16 %v2001
          %v2197 = vunpack.c.l.b16 %v2003
          %v2198 = vunpack.c.h.b16 %v2003
          %v2199 = vunpack.c.l.b16 %v2005
          %v2200 = vunpack.c.h.b16 %v2005
          %v2201 = vunpack.c.l.b16 %v2007
          %v2202 = vunpack.c.h.b16 %v2007
          %v2203 = vunpack.c.l.b16 %v2009
          %v2204 = vunpack.c.h.b16 %v2009
          %v2205 = vunpack.c.l.b16 %v2011
          %v2206 = vunpack.c.h.b16 %v2011
          %v2207 = vunpack.c.l.b16 %v2013
          %v2208 = vunpack.c.h.b16 %v2013
          %v2209 = vunpack.c.l.b16 %v2015
          %v2210 = vunpack.c.h.b16 %v2015
          %v2211 = vunpack.c.l.b16 %v2017
          %v2212 = vunpack.c.h.b16 %v2017
          %v2213 = vunpack.c.l.b16 %v2019
          %v2214 = vunpack.c.h.b16 %v2019
          %v2215 = vunpack.c.l.b16 %v2021
          %v2216 = vunpack.c.h.b16 %v2021
          %v2217 = vunpack.c.l.b16 %v2023
          %v2218 = vunpack.c.h.b16 %v2023
          %v2219 = vunpack.c.l.b16 %v2025
          %v2220 = vunpack.c.h.b16 %v2025
          %v2221 = vunpack.c.l.b16 %v2027
          %v2222 = vunpack.c.h.b16 %v2027
          %v2223 = vunpack.c.l.b16 %v2029
          %v2224 = vunpack.c.h.b16 %v2029
          %v2225 = vunpack.c.l.b16 %v2031
          %v2226 = vunpack.c.h.b16 %v2031
          %v2227 = vunpack.c.l.b16 %v2033
          %v2228 = vunpack.c.h.b16 %v2033
          %v2229 = vunpack.c.l.b16 %v2035
          %v2230 = vunpack.c.h.b16 %v2035
          %v2231 = vunpack.c.l.b16 %v2037
          %v2232 = vunpack.c.h.b16 %v2037
          %v2233 = vunpack.c.l.b16 %v2039
          %v2234 = vunpack.c.h.b16 %v2039
          %v2235 = vunpack.c.l.b16 %v2041
          %v2236 = vunpack.c.h.b16 %v2041
          %v2237 = vunpack.c.l.b16 %v2043
          %v2238 = vunpack.c.h.b16 %v2043
          %v2239 = vunpack.c.l.b16 %v2045
          %v2240 = vunpack.c.h.b16 %v2045
          %v2241 = vunpack.c.l.b16 %v2047
          %v2242 = vunpack.c.h.b16 %v2047
          %v2243 = vunpack.c.l.b16 %v2049
          %v2244 = vunpack.c.h.b16 %v2049
          %v2245 = vunpack.c.l.b16 %v2051
          %v2246 = vunpack.c.h.b16 %v2051
          %v2247 = vunpack.c.l.b16 %v2053
          %v2248 = vunpack.c.h.b16 %v2053
          %v2249 = vunpack.c.l.b16 %v2055
          %v2250 = vunpack.c.h.b16 %v2055
          %v2251 = vunpack.c.l.b16 %v2057
          %v2252 = vunpack.c.h.b16 %v2057
          %v2253 = vunpack.c.l.b16 %v2059
          %v2254 = vunpack.c.h.b16 %v2059
          %v2255 = vunpack.c.l.b16 %v2061
          %v2256 = vunpack.c.h.b16 %v2061
          %v2257 = vunpack.c.l.b16 %v2063
          %v2258 = vunpack.c.h.b16 %v2063
          %v2259 = vunpack.c.l.b16 %v2065
          %v2260 = vunpack.c.h.b16 %v2065
          %v2261 = vunpack.c.l.b16 %v2067
          %v2262 = vunpack.c.h.b16 %v2067
          %v2263 = vunpack.c.l.b16 %v2069
          %v2264 = vunpack.c.h.b16 %v2069
          %v2265 = vunpack.c.l.b16 %v2071
          %v2266 = vunpack.c.h.b16 %v2071
          %v2267 = vunpack.c.l.b16 %v2073
          %v2268 = vunpack.c.h.b16 %v2073
          %v2269 = vunpack.c.l.b16 %v2075
          %v2270 = vunpack.c.h.b16 %v2075
          %v2271 = vunpack.c.l.b16 %v2077
          %v2272 = vunpack.c.h.b16 %v2077
          %v2273 = vunpack.c.l.b16 %v2079
          %v2274 = vunpack.c.h.b16 %v2079
          %v2275 = vunpack.c.l.b16 %v2081
          %v2276 = vunpack.c.h.b16 %v2081
          %v2277 = vunpack.c.l.b16 %v2083
          %v2278 = vunpack.c.h.b16 %v2083
          %v2279 = vunpack.c.l.b16 %v2085
          %v2280 = vunpack.c.h.b16 %v2085
          %v2281 = vunpack.c.l.b16 %v2087
          %v2282 = vunpack.c.h.b16 %v2087
          %v2283 = vunpack.c.l.b16 %v2089
          %v2284 = vunpack.c.h.b16 %v2089
          %v2285 = vunpack.c.l.b16 %v2091
          %v2286 = vunpack.c.h.b16 %v2091
          %v2287 = vpack.c.b16 %v2157, %v2157
          %v2288 = vpack.c.b16 %v2158, %v2158
          %v2289 = vpack.c.b16 %v2159, %v2159
          %v2290 = vpack.c.b16 %v2160, %v2160
          %v2291 = vpack.c.b16 %v2161, %v2161
          %v2292 = vpack.c.b16 %v2162, %v2162
          %v2293 = vpack.c.b16 %v2163, %v2163
          %v2294 = vpack.c.b16 %v2164, %v2164
          %v2295 = vpack.c.b16 %v2165, %v2165
          %v2296 = vpack.c.b16 %v2166, %v2166
          %v2297 = vpack.c.b16 %v2167, %v2167
          %v2298 = vpack.c.b16 %v2168, %v2168
          %v2299 = vpack.c.b16 %v2169, %v2169
          %v2300 = vpack.c.b16 %v2170, %v2170
          %v2301 = vpack.c.b16 %v2171, %v2171
          %v2302 = vpack.c.b16 %v2172, %v2172
          %v2303 = vpack.c.b16 %v2173, %v2173
          %v2304 = vpack.c.b16 %v2174, %v2174
          %v2305 = vpack.c.b16 %v2175, %v2175
          %v2306 = vpack.c.b16 %v2176, %v2176
          %v2307 = vpack.c.b16 %v2177, %v2177
          %v2308 = vpack.c.b16 %v2178, %v2178
          %v2309 = vpack.c.b16 %v2179, %v2179
          %v2310 = vpack.c.b16 %v2180, %v2180
          %v2311 = vpack.c.b16 %v2181, %v2181
          %v2312 = vpack.c.b16 %v2182, %v2182
          %v2313 = vpack.c.b16 %v2183, %v2183
          %v2314 = vpack.c.b16 %v2184, %v2184
          %v2315 = vpack.c.b16 %v2185, %v2185
          %v2316 = vpack.c.b16 %v2186, %v2186
          %v2317 = vpack.c.b16 %v2187, %v2187
          %v2318 = vpack.c.b16 %v2188, %v2188
          %v2319 = vpack.c.b16 %v2189, %v2189
          %v2320 = vpack.c.b16 %v2190, %v2190
          %v2321 = vpack.c.b16 %v2191, %v2191
          %v2322 = vpack.c.b16 %v2192, %v2192
          %v2323 = vpack.c.b16 %v2193, %v2193
          %v2324 = vpack.c.b16 %v2194, %v2194
          %v2325 = vpack.c.b16 %v2195, %v2195
          %v2326 = vpack.c.b16 %v2196, %v2196
          %v2327 = vpack.c.b16 %v2197, %v2197
          %v2328 = vpack.c.b16 %v2198, %v2198
          %v2329 = vpack.c.b16 %v2199, %v2199
          %v2330 = vpack.c.b16 %v2200, %v2200
          %v2331 = vpack.c.b16 %v2201, %v2201
          %v2332 = vpack.c.b16 %v2202, %v2202
          %v2333 = vpack.c.b16 %v2203, %v2203
          %v2334 = vpack.c.b16 %v2204, %v2204
          %v2335 = vpack.c.b16 %v2205, %v2205
          %v2336 = vpack.c.b16 %v2206, %v2206
          %v2337 = vpack.c.b16 %v2207, %v2207
          %v2338 = vpack.c.b16 %v2208, %v2208
          %v2339 = vpack.c.b16 %v2209, %v2209
          %v2340 = vpack.c.b16 %v2210, %v2210
          %v2341 = vpack.c.b16 %v2211, %v2211
          %v2342 = vpack.c.b16 %v2212, %v2212
          %v2343 = vpack.c.b16 %v2213, %v2213
          %v2344 = vpack.c.b16 %v2214, %v2214
          %v2345 = vpack.c.b16 %v2215, %v2215
          %v2346 = vpack.c.b16 %v2216, %v2216
          %v2347 = vpack.c.b16 %v2217, %v2217
          %v2348 = vpack.c.b16 %v2218, %v2218
          %v2349 = vpack.c.b16 %v2219, %v2219
          %v2350 = vpack.c.b16 %v2220, %v2220
          %v2351 = vpack.c.b16 %v2221, %v2221
          %v2352 = vpack.c.b16 %v2222, %v2222
          %v2353 = vpack.c.b16 %v2223, %v2223
          %v2354 = vpack.c.b16 %v2224, %v2224
          %v2355 = vpack.c.b16 %v2225, %v2225
          %v2356 = vpack.c.b16 %v2226, %v2226
          %v2357 = vpack.c.b16 %v2227, %v2227
          %v2358 = vpack.c.b16 %v2228, %v2228
          %v2359 = vpack.c.b16 %v2229, %v2229
          %v2360 = vpack.c.b16 %v2230, %v2230
          %v2361 = vpack.c.b16 %v2231, %v2231
          %v2362 = vpack.c.b16 %v2232, %v2232
          %v2363 = vpack.c.b16 %v2233, %v2233
          %v2364 = vpack.c.b16 %v2234, %v2234
          %v2365 = vpack.c.b16 %v2235, %v2235
          %v2366 = vpack.c.b16 %v2236, %v2236
          %v2367 = vpack.c.b16 %v2237, %v2237
          %v2368 = vpack.c.b16 %v2238, %v2238
          %v2369 = vpack.c.b16 %v2239, %v2239
          %v2370 = vpack.c.b16 %v2240, %v2240
          %v2371 = vpack.c.b16 %v2241, %v2241
          %v2372 = vpack.c.b16 %v2242, %v2242
          %v2373 = vpack.c.b16 %v2243, %v2243
          %v2374 = vpack.c.b16 %v2244, %v2244
          %v2375 = vpack.c.b16 %v2245, %v2245
          %v2376 = vpack.c.b16 %v2246, %v2246
          %v2377 = vpack.c.b16 %v2247, %v2247
          %v2378 = vpack.c.b16 %v2248, %v2248
          %v2379 = vpack.c.b16 %v2249, %v2249
          %v2380 = vpack.c.b16 %v2250, %v2250
          %v2381 = vpack.c.b16 %v2251, %v2251
          %v2382 = vpack.c.b16 %v2252, %v2252
          %v2383 = vpack.c.b16 %v2253, %v2253
          %v2384 = vpack.c.b16 %v2254, %v2254
          %v2385 = vpack.c.b16 %v2255, %v2255
          %v2386 = vpack.c.b16 %v2256, %v2256
          %v2387 = vpack.c.b16 %v2257, %v2257
          %v2388 = vpack.c.b16 %v2258, %v2258
          %v2389 = vpack.c.b16 %v2259, %v2259
          %v2390 = vpack.c.b16 %v2260, %v2260
          %v2391 = vpack.c.b16 %v2261, %v2261
          %v2392 = vpack.c.b16 %v2262, %v2262
          %v2393 = vpack.c.b16 %v2263, %v2263
          %v2394 = vpack.c.b16 %v2264, %v2264
          %v2395 = vpack.c.b16 %v2265, %v2265
          %v2396 = vpack.c.b16 %v2266, %v2266
          %v2397 = vpack.c.b16 %v2267, %v2267
          %v2398 = vpack.c.b16 %v2268, %v2268
          %v2399 = vpack.c.b16 %v2269, %v2269
          %v2400 = vpack.c.b16 %v2270, %v2270
          %v2401 = vpack.c.b16 %v2271, %v2271
          %v2402 = vpack.c.b16 %v2272, %v2272
          %v2403 = vpack.c.b16 %v2273, %v2273
          %v2404 = vpack.c.b16 %v2274, %v2274
          %v2405 = vpack.c.b16 %v2275, %v2275
          %v2406 = vpack.c.b16 %v2276, %v2276
          %v2407 = vpack.c.b16 %v2277, %v2277
          %v2408 = vpack.c.b16 %v2278, %v2278
          %v2409 = vpack.c.b16 %v2279, %v2279
          %v2410 = vpack.c.b16 %v2280, %v2280
          %v2411 = vpack.c.b16 %v2281, %v2281
          %v2412 = vpack.c.b16 %v2282, %v2282
          %v2413 = vpack.c.b16 %v2283, %v2283
          %v2414 = vpack.c.b16 %v2284, %v2284
          %v2415 = vpack.c.b16 %v2285, %v2285
          %v2416 = vpack.c.b16 %v2286, %v2286
          %vm2547 = vcmask 68608
          %2548 = vst.msk [vmem:[#allocation2] sm:$0xf] %vm2547, %v2287
          %2549 = vst.msk [vmem:[#allocation2 + $0x4] sm:$0xf] %vm2547, %v2288
          %2550 = vst.msk [vmem:[#allocation2 + $0x8] sm:$0xf] %vm2547, %v2287
          %2551 = vst.msk [vmem:[#allocation2 + $0xc] sm:$0xf] %vm2547, %v2288
          %2552 = vst.msk [vmem:[#allocation2 + $0x10] sm:$0xf] %vm2547, %v2289
          %2553 = vst.msk [vmem:[#allocation2 + $0x14] sm:$0xf] %vm2547, %v2290
          %2554 = vst.msk [vmem:[#allocation2 + $0x18] sm:$0xf] %vm2547, %v2291
          %2555 = vst.msk [vmem:[#allocation2 + $0x1c] sm:$0xf] %vm2547, %v2292
          %2556 = vst.msk [vmem:[#allocation2 + $0x20] sm:$0xf] %vm2547, %v2293
          %2557 = vst.msk [vmem:[#allocation2 + $0x24] sm:$0xf] %vm2547, %v2294
          %2558 = vst.msk [vmem:[#allocation2 + $0x28] sm:$0xf] %vm2547, %v2295
          %2559 = vst.msk [vmem:[#allocation2 + $0x2c] sm:$0xf] %vm2547, %v2296
          %2560 = vst.msk [vmem:[#allocation2 + $0x30] sm:$0xf] %vm2547, %v2297
          %2561 = vst.msk [vmem:[#allocation2 + $0x34] sm:$0xf] %vm2547, %v2298
          %2562 = vst.msk [vmem:[#allocation2 + $0x38] sm:$0xf] %vm2547, %v2299
          %2563 = vst.msk [vmem:[#allocation2 + $0x3c] sm:$0xf] %vm2547, %v2300
          %2564 = vst.msk [vmem:[#allocation2 + $0x40] sm:$0xf] %vm2547, %v2301
          %2565 = vst.msk [vmem:[#allocation2 + $0x44] sm:$0xf] %vm2547, %v2302
          %2566 = vst.msk [vmem:[#allocation2 + $0x48] sm:$0xf] %vm2547, %v2303
          %2567 = vst.msk [vmem:[#allocation2 + $0x4c] sm:$0xf] %vm2547, %v2304
          %2568 = vst.msk [vmem:[#allocation2 + $0x50] sm:$0xf] %vm2547, %v2305
          %2569 = vst.msk [vmem:[#allocation2 + $0x54] sm:$0xf] %vm2547, %v2306
          %2570 = vst.msk [vmem:[#allocation2 + $0x58] sm:$0xf] %vm2547, %v2307
          %2571 = vst.msk [vmem:[#allocation2 + $0x5c] sm:$0xf] %vm2547, %v2308
          %2572 = vst.msk [vmem:[#allocation2 + $0x60] sm:$0xf] %vm2547, %v2309
          %2573 = vst.msk [vmem:[#allocation2 + $0x64] sm:$0xf] %vm2547, %v2310
          %2574 = vst.msk [vmem:[#allocation2 + $0x68] sm:$0xf] %vm2547, %v2311
          %2575 = vst.msk [vmem:[#allocation2 + $0x6c] sm:$0xf] %vm2547, %v2312
          %2576 = vst.msk [vmem:[#allocation2 + $0x70] sm:$0xf] %vm2547, %v2313
          %2577 = vst.msk [vmem:[#allocation2 + $0x74] sm:$0xf] %vm2547, %v2314
          %2578 = vst.msk [vmem:[#allocation2 + $0x78] sm:$0xf] %vm2547, %v2315
          %2579 = vst.msk [vmem:[#allocation2 + $0x7c] sm:$0xf] %vm2547, %v2316
          %2580 = vst.msk [vmem:[#allocation2 + $0x80] sm:$0xf] %vm2547, %v2317
          %2581 = vst.msk [vmem:[#allocation2 + $0x84] sm:$0xf] %vm2547, %v2318
          %2582 = vst.msk [vmem:[#allocation2 + $0x88] sm:$0xf] %vm2547, %v2319
          %2583 = vst.msk [vmem:[#allocation2 + $0x8c] sm:$0xf] %vm2547, %v2320
          %2584 = vst.msk [vmem:[#allocation2 + $0x90] sm:$0xf] %vm2547, %v2321
          %2585 = vst.msk [vmem:[#allocation2 + $0x94] sm:$0xf] %vm2547, %v2322
          %2586 = vst.msk [vmem:[#allocation2 + $0x98] sm:$0xf] %vm2547, %v2323
          %2587 = vst.msk [vmem:[#allocation2 + $0x9c] sm:$0xf] %vm2547, %v2324
          %2588 = vst.msk [vmem:[#allocation2 + $0xa0] sm:$0xf] %vm2547, %v2325
          %2589 = vst.msk [vmem:[#allocation2 + $0xa4] sm:$0xf] %vm2547, %v2326
          %2590 = vst.msk [vmem:[#allocation2 + $0xa8] sm:$0xf] %vm2547, %v2327
          %2591 = vst.msk [vmem:[#allocation2 + $0xac] sm:$0xf] %vm2547, %v2328
          %2592 = vst.msk [vmem:[#allocation2 + $0xb0] sm:$0xf] %vm2547, %v2329
          %2593 = vst.msk [vmem:[#allocation2 + $0xb4] sm:$0xf] %vm2547, %v2330
          %2594 = vst.msk [vmem:[#allocation2 + $0xb8] sm:$0xf] %vm2547, %v2331
          %2595 = vst.msk [vmem:[#allocation2 + $0xbc] sm:$0xf] %vm2547, %v2332
          %2596 = vst.msk [vmem:[#allocation2 + $0xc0] sm:$0xf] %vm2547, %v2333
          %2597 = vst.msk [vmem:[#allocation2 + $0xc4] sm:$0xf] %vm2547, %v2334
          %2598 = vst.msk [vmem:[#allocation2 + $0xc8] sm:$0xf] %vm2547, %v2335
          %2599 = vst.msk [vmem:[#allocation2 + $0xcc] sm:$0xf] %vm2547, %v2336
          %2600 = vst.msk [vmem:[#allocation2 + $0xd0] sm:$0xf] %vm2547, %v2337
          %2601 = vst.msk [vmem:[#allocation2 + $0xd4] sm:$0xf] %vm2547, %v2338
          %2602 = vst.msk [vmem:[#allocation2 + $0xd8] sm:$0xf] %vm2547, %v2339
          %2603 = vst.msk [vmem:[#allocation2 + $0xdc] sm:$0xf] %vm2547, %v2340
          %2604 = vst.msk [vmem:[#allocation2 + $0xe0] sm:$0xf] %vm2547, %v2341
          %2605 = vst.msk [vmem:[#allocation2 + $0xe4] sm:$0xf] %vm2547, %v2342
          %2606 = vst.msk [vmem:[#allocation2 + $0xe8] sm:$0xf] %vm2547, %v2343
          %2607 = vst.msk [vmem:[#allocation2 + $0xec] sm:$0xf] %vm2547, %v2344
          %2608 = vst.msk [vmem:[#allocation2 + $0xf0] sm:$0xf] %vm2547, %v2345
          %2609 = vst.msk [vmem:[#allocation2 + $0xf4] sm:$0xf] %vm2547, %v2346
          %2610 = vst.msk [vmem:[#allocation2 + $0xf8] sm:$0xf] %vm2547, %v2347
          %2611 = vst.msk [vmem:[#allocation2 + $0xfc] sm:$0xf] %vm2547, %v2348
          %2612 = vst.msk [vmem:[#allocation2 + $0x100] sm:$0xf] %vm2547, %v2349
          %2613 = vst.msk [vmem:[#allocation2 + $0x104] sm:$0xf] %vm2547, %v2350
          %2614 = vst.msk [vmem:[#allocation2 + $0x108] sm:$0xf] %vm2547, %v2351
          %2615 = vst.msk [vmem:[#allocation2 + $0x10c] sm:$0xf] %vm2547, %v2352
          %2616 = vst.msk [vmem:[#allocation2 + $0x110] sm:$0xf] %vm2547, %v2353
          %2617 = vst.msk [vmem:[#allocation2 + $0x114] sm:$0xf] %vm2547, %v2354
          %2618 = vst.msk [vmem:[#allocation2 + $0x118] sm:$0xf] %vm2547, %v2355
          %2619 = vst.msk [vmem:[#allocation2 + $0x11c] sm:$0xf] %vm2547, %v2356
          %2620 = vst.msk [vmem:[#allocation2 + $0x120] sm:$0xf] %vm2547, %v2357
          %2621 = vst.msk [vmem:[#allocation2 + $0x124] sm:$0xf] %vm2547, %v2358
          %2622 = vst.msk [vmem:[#allocation2 + $0x128] sm:$0xf] %vm2547, %v2359
          %2623 = vst.msk [vmem:[#allocation2 + $0x12c] sm:$0xf] %vm2547, %v2360
          %2624 = vst.msk [vmem:[#allocation2 + $0x130] sm:$0xf] %vm2547, %v2361
          %2625 = vst.msk [vmem:[#allocation2 + $0x134] sm:$0xf] %vm2547, %v2362
          %2626 = vst.msk [vmem:[#allocation2 + $0x138] sm:$0xf] %vm2547, %v2363
          %2627 = vst.msk [vmem:[#allocation2 + $0x13c] sm:$0xf] %vm2547, %v2364
          %2628 = vst.msk [vmem:[#allocation2 + $0x140] sm:$0xf] %vm2547, %v2365
          %2629 = vst.msk [vmem:[#allocation2 + $0x144] sm:$0xf] %vm2547, %v2366
          %2630 = vst.msk [vmem:[#allocation2 + $0x148] sm:$0xf] %vm2547, %v2367
          %2631 = vst.msk [vmem:[#allocation2 + $0x14c] sm:$0xf] %vm2547, %v2368
          %2632 = vst.msk [vmem:[#allocation2 + $0x150] sm:$0xf] %vm2547, %v2369
          %2633 = vst.msk [vmem:[#allocation2 + $0x154] sm:$0xf] %vm2547, %v2370
          %2634 = vst.msk [vmem:[#allocation2 + $0x158] sm:$0xf] %vm2547, %v2371
          %2635 = vst.msk [vmem:[#allocation2 + $0x15c] sm:$0xf] %vm2547, %v2372
          %2636 = vst.msk [vmem:[#allocation2 + $0x160] sm:$0xf] %vm2547, %v2373
          %2637 = vst.msk [vmem:[#allocation2 + $0x164] sm:$0xf] %vm2547, %v2374
          %2638 = vst.msk [vmem:[#allocation2 + $0x168] sm:$0xf] %vm2547, %v2375
          %2639 = vst.msk [vmem:[#allocation2 + $0x16c] sm:$0xf] %vm2547, %v2376
          %2640 = vst.msk [vmem:[#allocation2 + $0x170] sm:$0xf] %vm2547, %v2377
          %2641 = vst.msk [vmem:[#allocation2 + $0x174] sm:$0xf] %vm2547, %v2378
          %2642 = vst.msk [vmem:[#allocation2 + $0x178] sm:$0xf] %vm2547, %v2379
          %2643 = vst.msk [vmem:[#allocation2 + $0x17c] sm:$0xf] %vm2547, %v2380
          %2644 = vst.msk [vmem:[#allocation2 + $0x180] sm:$0xf] %vm2547, %v2381
          %2645 = vst.msk [vmem:[#allocation2 + $0x184] sm:$0xf] %vm2547, %v2382
          %2646 = vst.msk [vmem:[#allocation2 + $0x188] sm:$0xf] %vm2547, %v2383
          %2647 = vst.msk [vmem:[#allocation2 + $0x18c] sm:$0xf] %vm2547, %v2384
          %2648 = vst.msk [vmem:[#allocation2 + $0x190] sm:$0xf] %vm2547, %v2385
          %2649 = vst.msk [vmem:[#allocation2 + $0x194] sm:$0xf] %vm2547, %v2386
          %2650 = vst.msk [vmem:[#allocation2 + $0x198] sm:$0xf] %vm2547, %v2387
          %2651 = vst.msk [vmem:[#allocation2 + $0x19c] sm:$0xf] %vm2547, %v2388
          %2652 = vst.msk [vmem:[#allocation2 + $0x1a0] sm:$0xf] %vm2547, %v2389
          %2653 = vst.msk [vmem:[#allocation2 + $0x1a4] sm:$0xf] %vm2547, %v2390
          %2654 = vst.msk [vmem:[#allocation2 + $0x1a8] sm:$0xf] %vm2547, %v2391
          %2655 = vst.msk [vmem:[#allocation2 + $0x1ac] sm:$0xf] %vm2547, %v2392
          %2656 = vst.msk [vmem:[#allocation2 + $0x1b0] sm:$0xf] %vm2547, %v2393
          %2657 = vst.msk [vmem:[#allocation2 + $0x1b4] sm:$0xf] %vm2547, %v2394
          %2658 = vst.msk [vmem:[#allocation2 + $0x1b8] sm:$0xf] %vm2547, %v2395
          %2659 = vst.msk [vmem:[#allocation2 + $0x1bc] sm:$0xf] %vm2547, %v2396
          %2660 = vst.msk [vmem:[#allocation2 + $0x1c0] sm:$0xf] %vm2547, %v2397
          %2661 = vst.msk [vmem:[#allocation2 + $0x1c4] sm:$0xf] %vm2547, %v2398
          %2662 = vst.msk [vmem:[#allocation2 + $0x1c8] sm:$0xf] %vm2547, %v2399
          %2663 = vst.msk [vmem:[#allocation2 + $0x1cc] sm:$0xf] %vm2547, %v2400
          %2664 = vst.msk [vmem:[#allocation2 + $0x1d0] sm:$0xf] %vm2547, %v2401
          %2665 = vst.msk [vmem:[#allocation2 + $0x1d4] sm:$0xf] %vm2547, %v2402
          %2666 = vst.msk [vmem:[#allocation2 + $0x1d8] sm:$0xf] %vm2547, %v2403
          %2667 = vst.msk [vmem:[#allocation2 + $0x1dc] sm:$0xf] %vm2547, %v2404
          %2668 = vst.msk [vmem:[#allocation2 + $0x1e0] sm:$0xf] %vm2547, %v2405
          %2669 = vst.msk [vmem:[#allocation2 + $0x1e4] sm:$0xf] %vm2547, %v2406
          %2670 = vst.msk [vmem:[#allocation2 + $0x1e8] sm:$0xf] %vm2547, %v2407
          %2671 = vst.msk [vmem:[#allocation2 + $0x1ec] sm:$0xf] %vm2547, %v2408
          %2672 = vst.msk [vmem:[#allocation2 + $0x1f0] sm:$0xf] %vm2547, %v2409
          %2673 = vst.msk [vmem:[#allocation2 + $0x1f4] sm:$0xf] %vm2547, %v2410
          %2674 = vst.msk [vmem:[#allocation2 + $0x1f8] sm:$0xf] %vm2547, %v2411
          %2675 = vst.msk [vmem:[#allocation2 + $0x1fc] sm:$0xf] %vm2547, %v2412
          %2676 = vst.msk [vmem:[#allocation2 + $0x200] sm:$0xf] %vm2547, %v2413
          %2677 = vst.msk [vmem:[#allocation2 + $0x204] sm:$0xf] %vm2547, %v2414
          %2678 = vst.msk [vmem:[#allocation2 + $0x208] sm:$0xf] %vm2547, %v2415
          %2679 = vst.msk [vmem:[#allocation2 + $0x20c] sm:$0xf] %vm2547, %v2416
          %2680 = vst.msk [vmem:[#allocation2 + $0x210] sm:$0xf] %vm2547, %v2287
          %2681 = vst.msk [vmem:[#allocation2 + $0x214] sm:$0xf] %vm2547, %v2288
          %2682 = vst.msk [vmem:[#allocation2 + $0x218] sm:$0xf] %vm2547, %v2287
          %2683 = vst.msk [vmem:[#allocation2 + $0x21c] sm:$0xf] %vm2547, %v2288
        $region40: #{tpu_custom_call.1} parent=35 // pred_fallthru
          _
        %v2684 = vld [vmem:[#allocation2] sm:$0xf]
        %v2685 = vld [vmem:[#allocation2 + $0x4] sm:$0xf]
        %v2686 = vld [vmem:[#allocation2 + $0x8] sm:$0xf]
        %v2687 = vld [vmem:[#allocation2 + $0xc] sm:$0xf]
        %v2688 = vld [vmem:[#allocation2 + $0x10] sm:$0xf]
        %v2689 = vld [vmem:[#allocation2 + $0x14] sm:$0xf]
        %v2690 = vld [vmem:[#allocation2 + $0x18] sm:$0xf]
        %v2691 = vld [vmem:[#allocation2 + $0x1c] sm:$0xf]
        %v2692 = vld [vmem:[#allocation2 + $0x20] sm:$0xf]
        %v2693 = vld [vmem:[#allocation2 + $0x24] sm:$0xf]
        %v2694 = vld [vmem:[#allocation2 + $0x28] sm:$0xf]
        %v2695 = vld [vmem:[#allocation2 + $0x2c] sm:$0xf]
        %v2696 = vld [vmem:[#allocation2 + $0x30] sm:$0xf]
        %v2697 = vld [vmem:[#allocation2 + $0x34] sm:$0xf]
        %v2698 = vld [vmem:[#allocation2 + $0x38] sm:$0xf]
        %v2699 = vld [vmem:[#allocation2 + $0x3c] sm:$0xf]
        %v2700 = vld [vmem:[#allocation2 + $0x40] sm:$0xf]
        %v2701 = vld [vmem:[#allocation2 + $0x44] sm:$0xf]
        %v2702 = vld [vmem:[#allocation2 + $0x48] sm:$0xf]
        %v2703 = vld [vmem:[#allocation2 + $0x4c] sm:$0xf]
        %v2704 = vld [vmem:[#allocation2 + $0x50] sm:$0xf]
        %v2705 = vld [vmem:[#allocation2 + $0x54] sm:$0xf]
        %v2706 = vld [vmem:[#allocation2 + $0x58] sm:$0xf]
        %v2707 = vld [vmem:[#allocation2 + $0x5c] sm:$0xf]
        %v2708 = vld [vmem:[#allocation2 + $0x60] sm:$0xf]
        %v2709 = vld [vmem:[#allocation2 + $0x64] sm:$0xf]
        %v2710 = vld [vmem:[#allocation2 + $0x68] sm:$0xf]
        %v2711 = vld [vmem:[#allocation2 + $0x6c] sm:$0xf]
        %v2712 = vld [vmem:[#allocation2 + $0x70] sm:$0xf]
        %v2713 = vld [vmem:[#allocation2 + $0x74] sm:$0xf]
        %v2714 = vld [vmem:[#allocation2 + $0x78] sm:$0xf]
        %v2715 = vld [vmem:[#allocation2 + $0x7c] sm:$0xf]
        %v2716 = vld [vmem:[#allocation2 + $0x80] sm:$0xf]
        %v2717 = vld [vmem:[#allocation2 + $0x84] sm:$0xf]
        %v2718 = vld [vmem:[#allocation2 + $0x88] sm:$0xf]
        %v2719 = vld [vmem:[#allocation2 + $0x8c] sm:$0xf]
        %v2720 = vld [vmem:[#allocation2 + $0x90] sm:$0xf]
        %v2721 = vld [vmem:[#allocation2 + $0x94] sm:$0xf]
        %v2722 = vld [vmem:[#allocation2 + $0x98] sm:$0xf]
        %v2723 = vld [vmem:[#allocation2 + $0x9c] sm:$0xf]
        %v2724 = vld [vmem:[#allocation2 + $0xa0] sm:$0xf]
        %v2725 = vld [vmem:[#allocation2 + $0xa4] sm:$0xf]
        %v2726 = vld [vmem:[#allocation2 + $0xa8] sm:$0xf]
        %v2727 = vld [vmem:[#allocation2 + $0xac] sm:$0xf]
        %v2728 = vld [vmem:[#allocation2 + $0xb0] sm:$0xf]
        %v2729 = vld [vmem:[#allocation2 + $0xb4] sm:$0xf]
        %v2730 = vld [vmem:[#allocation2 + $0xb8] sm:$0xf]
        %v2731 = vld [vmem:[#allocation2 + $0xbc] sm:$0xf]
        %v2732 = vld [vmem:[#allocation2 + $0xc0] sm:$0xf]
        %v2733 = vld [vmem:[#allocation2 + $0xc4] sm:$0xf]
        %v2734 = vld [vmem:[#allocation2 + $0xc8] sm:$0xf]
        %v2735 = vld [vmem:[#allocation2 + $0xcc] sm:$0xf]
        %v2736 = vld [vmem:[#allocation2 + $0xd0] sm:$0xf]
        %v2737 = vld [vmem:[#allocation2 + $0xd4] sm:$0xf]
        %v2738 = vld [vmem:[#allocation2 + $0xd8] sm:$0xf]
        %v2739 = vld [vmem:[#allocation2 + $0xdc] sm:$0xf]
        %v2740 = vld [vmem:[#allocation2 + $0xe0] sm:$0xf]
        %v2741 = vld [vmem:[#allocation2 + $0xe4] sm:$0xf]
        %v2742 = vld [vmem:[#allocation2 + $0xe8] sm:$0xf]
        %v2743 = vld [vmem:[#allocation2 + $0xec] sm:$0xf]
        %v2744 = vld [vmem:[#allocation2 + $0xf0] sm:$0xf]
        %v2745 = vld [vmem:[#allocation2 + $0xf4] sm:$0xf]
        %v2746 = vld [vmem:[#allocation2 + $0xf8] sm:$0xf]
        %v2747 = vld [vmem:[#allocation2 + $0xfc] sm:$0xf]
        %v2748 = vld [vmem:[#allocation2 + $0x100] sm:$0xf]
        %v2749 = vld [vmem:[#allocation2 + $0x104] sm:$0xf]
        %v2750 = vld [vmem:[#allocation2 + $0x108] sm:$0xf]
        %v2751 = vld [vmem:[#allocation2 + $0x10c] sm:$0xf]
        %v2752 = vld [vmem:[#allocation2 + $0x110] sm:$0xf]
        %v2753 = vld [vmem:[#allocation2 + $0x114] sm:$0xf]
        %v2754 = vld [vmem:[#allocation2 + $0x118] sm:$0xf]
        %v2755 = vld [vmem:[#allocation2 + $0x11c] sm:$0xf]
        %v2756 = vld [vmem:[#allocation2 + $0x120] sm:$0xf]
        %v2757 = vld [vmem:[#allocation2 + $0x124] sm:$0xf]
        %v2758 = vld [vmem:[#allocation2 + $0x128] sm:$0xf]
        %v2759 = vld [vmem:[#allocation2 + $0x12c] sm:$0xf]
        %v2760 = vld [vmem:[#allocation2 + $0x130] sm:$0xf]
        %v2761 = vld [vmem:[#allocation2 + $0x134] sm:$0xf]
        %v2762 = vld [vmem:[#allocation2 + $0x138] sm:$0xf]
        %v2763 = vld [vmem:[#allocation2 + $0x13c] sm:$0xf]
        %v2764 = vld [vmem:[#allocation2 + $0x140] sm:$0xf]
        %v2765 = vld [vmem:[#allocation2 + $0x144] sm:$0xf]
        %v2766 = vld [vmem:[#allocation2 + $0x148] sm:$0xf]
        %v2767 = vld [vmem:[#allocation2 + $0x14c] sm:$0xf]
        %v2768 = vld [vmem:[#allocation2 + $0x150] sm:$0xf]
        %v2769 = vld [vmem:[#allocation2 + $0x154] sm:$0xf]
        %v2770 = vld [vmem:[#allocation2 + $0x158] sm:$0xf]
        %v2771 = vld [vmem:[#allocation2 + $0x15c] sm:$0xf]
        %v2772 = vld [vmem:[#allocation2 + $0x160] sm:$0xf]
        %v2773 = vld [vmem:[#allocation2 + $0x164] sm:$0xf]
        %v2774 = vld [vmem:[#allocation2 + $0x168] sm:$0xf]
        %v2775 = vld [vmem:[#allocation2 + $0x16c] sm:$0xf]
        %v2776 = vld [vmem:[#allocation2 + $0x170] sm:$0xf]
        %v2777 = vld [vmem:[#allocation2 + $0x174] sm:$0xf]
        %v2778 = vld [vmem:[#allocation2 + $0x178] sm:$0xf]
        %v2779 = vld [vmem:[#allocation2 + $0x17c] sm:$0xf]
        %v2780 = vld [vmem:[#allocation2 + $0x180] sm:$0xf]
        %v2781 = vld [vmem:[#allocation2 + $0x184] sm:$0xf]
        %v2782 = vld [vmem:[#allocation2 + $0x188] sm:$0xf]
        %v2783 = vld [vmem:[#allocation2 + $0x18c] sm:$0xf]
        %v2784 = vld [vmem:[#allocation2 + $0x190] sm:$0xf]
        %v2785 = vld [vmem:[#allocation2 + $0x194] sm:$0xf]
        %v2786 = vld [vmem:[#allocation2 + $0x198] sm:$0xf]
        %v2787 = vld [vmem:[#allocation2 + $0x19c] sm:$0xf]
        %v2788 = vld [vmem:[#allocation2 + $0x1a0] sm:$0xf]
        %v2789 = vld [vmem:[#allocation2 + $0x1a4] sm:$0xf]
        %v2790 = vld [vmem:[#allocation2 + $0x1a8] sm:$0xf]
        %v2791 = vld [vmem:[#allocation2 + $0x1ac] sm:$0xf]
        %v2792 = vld [vmem:[#allocation2 + $0x1b0] sm:$0xf]
        %v2793 = vld [vmem:[#allocation2 + $0x1b4] sm:$0xf]
        %v2794 = vld [vmem:[#allocation2 + $0x1b8] sm:$0xf]
        %v2795 = vld [vmem:[#allocation2 + $0x1bc] sm:$0xf]
        %v2796 = vld [vmem:[#allocation2 + $0x1c0] sm:$0xf]
        %v2797 = vld [vmem:[#allocation2 + $0x1c4] sm:$0xf]
        %v2798 = vld [vmem:[#allocation2 + $0x1c8] sm:$0xf]
        %v2799 = vld [vmem:[#allocation2 + $0x1cc] sm:$0xf]
        %v2800 = vld [vmem:[#allocation2 + $0x1d0] sm:$0xf]
        %v2801 = vld [vmem:[#allocation2 + $0x1d4] sm:$0xf]
        %v2802 = vld [vmem:[#allocation2 + $0x1d8] sm:$0xf]
        %v2803 = vld [vmem:[#allocation2 + $0x1dc] sm:$0xf]
        %v2804 = vld [vmem:[#allocation2 + $0x1e0] sm:$0xf]
        %v2805 = vld [vmem:[#allocation2 + $0x1e4] sm:$0xf]
        %v2806 = vld [vmem:[#allocation2 + $0x1e8] sm:$0xf]
        %v2807 = vld [vmem:[#allocation2 + $0x1ec] sm:$0xf]
        %v2808 = vld [vmem:[#allocation2 + $0x1f0] sm:$0xf]
        %v2809 = vld [vmem:[#allocation2 + $0x1f4] sm:$0xf]
        %v2810 = vld [vmem:[#allocation2 + $0x1f8] sm:$0xf]
        %v2811 = vld [vmem:[#allocation2 + $0x1fc] sm:$0xf]
        %v2812 = vld [vmem:[%s248] sm:$0xf]
        %v2813 = vld [vmem:[%s248 + $0x4] sm:$0x1]
        %s2814 = scalar_lea.vmem [#allocation2], 16
        %v2815 = vld [vmem:[%s2814] sm:$0xf]
        %v2816 = vld [vmem:[%s2814 + $0x4] sm:$0xf]
        %v2817 = vld [vmem:[%s2814 + $0x8] sm:$0xf]
        %v2818 = vld [vmem:[%s2814 + $0xc] sm:$0xf]
        %v2819 = vld [vmem:[%s2814 + $0x10] sm:$0xf]
        %v2820 = vld [vmem:[%s2814 + $0x14] sm:$0xf]
        %v2821 = vld [vmem:[%s2814 + $0x18] sm:$0xf]
        %v2822 = vld [vmem:[%s2814 + $0x1c] sm:$0xf]
        %v2823 = vld [vmem:[%s2814 + $0x20] sm:$0xf]
        %v2824 = vld [vmem:[%s2814 + $0x24] sm:$0xf]
        %v2825 = vld [vmem:[%s2814 + $0x28] sm:$0xf]
        %v2826 = vld [vmem:[%s2814 + $0x2c] sm:$0xf]
        %v2827 = vld [vmem:[%s2814 + $0x30] sm:$0xf]
        %v2828 = vld [vmem:[%s2814 + $0x34] sm:$0xf]
        %v2829 = vld [vmem:[%s2814 + $0x38] sm:$0xf]
        %v2830 = vld [vmem:[%s2814 + $0x3c] sm:$0xf]
        %v2831 = vld [vmem:[%s2814 + $0x40] sm:$0xf]
        %v2832 = vld [vmem:[%s2814 + $0x44] sm:$0xf]
        %v2833 = vld [vmem:[%s2814 + $0x48] sm:$0xf]
        %v2834 = vld [vmem:[%s2814 + $0x4c] sm:$0xf]
        %v2835 = vld [vmem:[%s2814 + $0x50] sm:$0xf]
        %v2836 = vld [vmem:[%s2814 + $0x54] sm:$0xf]
        %v2837 = vld [vmem:[%s2814 + $0x58] sm:$0xf]
        %v2838 = vld [vmem:[%s2814 + $0x5c] sm:$0xf]
        %v2839 = vld [vmem:[%s2814 + $0x60] sm:$0xf]
        %v2840 = vld [vmem:[%s2814 + $0x64] sm:$0xf]
        %v2841 = vld [vmem:[%s2814 + $0x68] sm:$0xf]
        %v2842 = vld [vmem:[%s2814 + $0x6c] sm:$0xf]
        %v2843 = vld [vmem:[%s2814 + $0x70] sm:$0xf]
        %v2844 = vld [vmem:[%s2814 + $0x74] sm:$0xf]
        %v2845 = vld [vmem:[%s2814 + $0x78] sm:$0xf]
        %v2846 = vld [vmem:[%s2814 + $0x7c] sm:$0xf]
        %v2847 = vld [vmem:[%s2814 + $0x80] sm:$0xf]
        %v2848 = vld [vmem:[%s2814 + $0x84] sm:$0xf]
        %v2849 = vld [vmem:[%s2814 + $0x88] sm:$0xf]
        %v2850 = vld [vmem:[%s2814 + $0x8c] sm:$0xf]
        %v2851 = vld [vmem:[%s2814 + $0x90] sm:$0xf]
        %v2852 = vld [vmem:[%s2814 + $0x94] sm:$0xf]
        %v2853 = vld [vmem:[%s2814 + $0x98] sm:$0xf]
        %v2854 = vld [vmem:[%s2814 + $0x9c] sm:$0xf]
        %v2855 = vld [vmem:[%s2814 + $0xa0] sm:$0xf]
        %v2856 = vld [vmem:[%s2814 + $0xa4] sm:$0xf]
        %v2857 = vld [vmem:[%s2814 + $0xa8] sm:$0xf]
        %v2858 = vld [vmem:[%s2814 + $0xac] sm:$0xf]
        %v2859 = vld [vmem:[%s2814 + $0xb0] sm:$0xf]
        %v2860 = vld [vmem:[%s2814 + $0xb4] sm:$0xf]
        %v2861 = vld [vmem:[%s2814 + $0xb8] sm:$0xf]
        %v2862 = vld [vmem:[%s2814 + $0xbc] sm:$0xf]
        %v2863 = vld [vmem:[%s2814 + $0xc0] sm:$0xf]
        %v2864 = vld [vmem:[%s2814 + $0xc4] sm:$0xf]
        %v2865 = vld [vmem:[%s2814 + $0xc8] sm:$0xf]
        %v2866 = vld [vmem:[%s2814 + $0xcc] sm:$0xf]
        %v2867 = vld [vmem:[%s2814 + $0xd0] sm:$0xf]
        %v2868 = vld [vmem:[%s2814 + $0xd4] sm:$0xf]
        %v2869 = vld [vmem:[%s2814 + $0xd8] sm:$0xf]
        %v2870 = vld [vmem:[%s2814 + $0xdc] sm:$0xf]
        %v2871 = vld [vmem:[%s2814 + $0xe0] sm:$0xf]
        %v2872 = vld [vmem:[%s2814 + $0xe4] sm:$0xf]
        %v2873 = vld [vmem:[%s2814 + $0xe8] sm:$0xf]
        %v2874 = vld [vmem:[%s2814 + $0xec] sm:$0xf]
        %v2875 = vld [vmem:[%s2814 + $0xf0] sm:$0xf]
        %v2876 = vld [vmem:[%s2814 + $0xf4] sm:$0xf]
        %v2877 = vld [vmem:[%s2814 + $0xf8] sm:$0xf]
        %v2878 = vld [vmem:[%s2814 + $0xfc] sm:$0xf]
        %v2879 = vld [vmem:[%s2814 + $0x100] sm:$0xf]
        %v2880 = vld [vmem:[%s2814 + $0x104] sm:$0xf]
        %v2881 = vld [vmem:[%s2814 + $0x108] sm:$0xf]
        %v2882 = vld [vmem:[%s2814 + $0x10c] sm:$0xf]
        %v2883 = vld [vmem:[%s2814 + $0x110] sm:$0xf]
        %v2884 = vld [vmem:[%s2814 + $0x114] sm:$0xf]
        %v2885 = vld [vmem:[%s2814 + $0x118] sm:$0xf]
        %v2886 = vld [vmem:[%s2814 + $0x11c] sm:$0xf]
        %v2887 = vld [vmem:[%s2814 + $0x120] sm:$0xf]
        %v2888 = vld [vmem:[%s2814 + $0x124] sm:$0xf]
        %v2889 = vld [vmem:[%s2814 + $0x128] sm:$0xf]
        %v2890 = vld [vmem:[%s2814 + $0x12c] sm:$0xf]
        %v2891 = vld [vmem:[%s2814 + $0x130] sm:$0xf]
        %v2892 = vld [vmem:[%s2814 + $0x134] sm:$0xf]
        %v2893 = vld [vmem:[%s2814 + $0x138] sm:$0xf]
        %v2894 = vld [vmem:[%s2814 + $0x13c] sm:$0xf]
        %v2895 = vld [vmem:[%s2814 + $0x140] sm:$0xf]
        %v2896 = vld [vmem:[%s2814 + $0x144] sm:$0xf]
        %v2897 = vld [vmem:[%s2814 + $0x148] sm:$0xf]
        %v2898 = vld [vmem:[%s2814 + $0x14c] sm:$0xf]
        %v2899 = vld [vmem:[%s2814 + $0x150] sm:$0xf]
        %v2900 = vld [vmem:[%s2814 + $0x154] sm:$0xf]
        %v2901 = vld [vmem:[%s2814 + $0x158] sm:$0xf]
        %v2902 = vld [vmem:[%s2814 + $0x15c] sm:$0xf]
        %v2903 = vld [vmem:[%s2814 + $0x160] sm:$0xf]
        %v2904 = vld [vmem:[%s2814 + $0x164] sm:$0xf]
        %v2905 = vld [vmem:[%s2814 + $0x168] sm:$0xf]
        %v2906 = vld [vmem:[%s2814 + $0x16c] sm:$0xf]
        %v2907 = vld [vmem:[%s2814 + $0x170] sm:$0xf]
        %v2908 = vld [vmem:[%s2814 + $0x174] sm:$0xf]
        %v2909 = vld [vmem:[%s2814 + $0x178] sm:$0xf]
        %v2910 = vld [vmem:[%s2814 + $0x17c] sm:$0xf]
        %v2911 = vld [vmem:[%s2814 + $0x180] sm:$0xf]
        %v2912 = vld [vmem:[%s2814 + $0x184] sm:$0xf]
        %v2913 = vld [vmem:[%s2814 + $0x188] sm:$0xf]
        %v2914 = vld [vmem:[%s2814 + $0x18c] sm:$0xf]
        %v2915 = vld [vmem:[%s2814 + $0x190] sm:$0xf]
        %v2916 = vld [vmem:[%s2814 + $0x194] sm:$0xf]
        %v2917 = vld [vmem:[%s2814 + $0x198] sm:$0xf]
        %v2918 = vld [vmem:[%s2814 + $0x19c] sm:$0xf]
        %v2919 = vld [vmem:[%s2814 + $0x1a0] sm:$0xf]
        %v2920 = vld [vmem:[%s2814 + $0x1a4] sm:$0xf]
        %v2921 = vld [vmem:[%s2814 + $0x1a8] sm:$0xf]
        %v2922 = vld [vmem:[%s2814 + $0x1ac] sm:$0xf]
        %v2923 = vld [vmem:[%s2814 + $0x1b0] sm:$0xf]
        %v2924 = vld [vmem:[%s2814 + $0x1b4] sm:$0xf]
        %v2925 = vld [vmem:[%s2814 + $0x1b8] sm:$0xf]
        %v2926 = vld [vmem:[%s2814 + $0x1bc] sm:$0xf]
        %v2927 = vld [vmem:[%s2814 + $0x1c0] sm:$0xf]
        %v2928 = vld [vmem:[%s2814 + $0x1c4] sm:$0xf]
        %v2929 = vld [vmem:[%s2814 + $0x1c8] sm:$0xf]
        %v2930 = vld [vmem:[%s2814 + $0x1cc] sm:$0xf]
        %v2931 = vld [vmem:[%s2814 + $0x1d0] sm:$0xf]
        %v2932 = vld [vmem:[%s2814 + $0x1d4] sm:$0xf]
        %v2933 = vld [vmem:[%s2814 + $0x1d8] sm:$0xf]
        %v2934 = vld [vmem:[%s2814 + $0x1dc] sm:$0xf]
        %v2935 = vld [vmem:[%s2814 + $0x1e0] sm:$0xf]
        %v2936 = vld [vmem:[%s2814 + $0x1e4] sm:$0xf]
        %v2937 = vld [vmem:[%s2814 + $0x1e8] sm:$0xf]
        %v2938 = vld [vmem:[%s2814 + $0x1ec] sm:$0xf]
        %v2939 = vld [vmem:[%s2814 + $0x1f0] sm:$0xf]
        %v2940 = vld [vmem:[%s2814 + $0x1f4] sm:$0xf]
        %v2941 = vld [vmem:[%s2814 + $0x1f8] sm:$0xf]
        %v2942 = vld [vmem:[%s2814 + $0x1fc] sm:$0xf]
        %s2943 = scalar_lea.vmem %s248, 8
        %v2944 = vld [vmem:[%s2943] sm:$0xf]
        %v2945 = vld [vmem:[%s2943 + $0x4] sm:$0x1]
        %v3074 = vunpack.c.l.b16 %v2815
        %v3075 = vunpack.c.l.b16 %v2816
        %v3076 = vunpack.c.l.b16 %v2817
        %v3077 = vunpack.c.l.b16 %v2818
        %v3078 = vunpack.c.l.b16 %v2819
        %v3079 = vunpack.c.l.b16 %v2820
        %v3080 = vunpack.c.l.b16 %v2821
        %v3081 = vunpack.c.l.b16 %v2822
        %v3082 = vunpack.c.l.b16 %v2823
        %v3083 = vunpack.c.l.b16 %v2824
        %v3084 = vunpack.c.l.b16 %v2825
        %v3085 = vunpack.c.l.b16 %v2826
        %v3086 = vunpack.c.l.b16 %v2827
        %v3087 = vunpack.c.l.b16 %v2828
        %v3088 = vunpack.c.l.b16 %v2829
        %v3089 = vunpack.c.l.b16 %v2830
        %v3090 = vunpack.c.l.b16 %v2831
        %v3091 = vunpack.c.l.b16 %v2832
        %v3092 = vunpack.c.l.b16 %v2833
        %v3093 = vunpack.c.l.b16 %v2834
        %v3094 = vunpack.c.l.b16 %v2835
        %v3095 = vunpack.c.l.b16 %v2836
        %v3096 = vunpack.c.l.b16 %v2837
        %v3097 = vunpack.c.l.b16 %v2838
        %v3098 = vunpack.c.l.b16 %v2839
        %v3099 = vunpack.c.l.b16 %v2840
        %v3100 = vunpack.c.l.b16 %v2841
        %v3101 = vunpack.c.l.b16 %v2842
        %v3102 = vunpack.c.l.b16 %v2843
        %v3103 = vunpack.c.l.b16 %v2844
        %v3104 = vunpack.c.l.b16 %v2845
        %v3105 = vunpack.c.l.b16 %v2846
        %v3106 = vunpack.c.l.b16 %v2847
        %v3107 = vunpack.c.l.b16 %v2848
        %v3108 = vunpack.c.l.b16 %v2849
        %v3109 = vunpack.c.l.b16 %v2850
        %v3110 = vunpack.c.l.b16 %v2851
        %v3111 = vunpack.c.l.b16 %v2852
        %v3112 = vunpack.c.l.b16 %v2853
        %v3113 = vunpack.c.l.b16 %v2854
        %v3114 = vunpack.c.l.b16 %v2855
        %v3115 = vunpack.c.l.b16 %v2856
        %v3116 = vunpack.c.l.b16 %v2857
        %v3117 = vunpack.c.l.b16 %v2858
        %v3118 = vunpack.c.l.b16 %v2859
        %v3119 = vunpack.c.l.b16 %v2860
        %v3120 = vunpack.c.l.b16 %v2861
        %v3121 = vunpack.c.l.b16 %v2862
        %v3122 = vunpack.c.l.b16 %v2863
        %v3123 = vunpack.c.l.b16 %v2864
        %v3124 = vunpack.c.l.b16 %v2865
        %v3125 = vunpack.c.l.b16 %v2866
        %v3126 = vunpack.c.l.b16 %v2867
        %v3127 = vunpack.c.l.b16 %v2868
        %v3128 = vunpack.c.l.b16 %v2869
        %v3129 = vunpack.c.l.b16 %v2870
        %v3130 = vunpack.c.l.b16 %v2871
        %v3131 = vunpack.c.l.b16 %v2872
        %v3132 = vunpack.c.l.b16 %v2873
        %v3133 = vunpack.c.l.b16 %v2874
        %v3134 = vunpack.c.l.b16 %v2875
        %v3135 = vunpack.c.l.b16 %v2876
        %v3136 = vunpack.c.l.b16 %v2877
        %v3137 = vunpack.c.l.b16 %v2878
        %v3138 = vunpack.c.l.b16 %v2879
        %v3139 = vunpack.c.l.b16 %v2880
        %v3140 = vunpack.c.l.b16 %v2881
        %v3141 = vunpack.c.l.b16 %v2882
        %v3142 = vunpack.c.l.b16 %v2883
        %v3143 = vunpack.c.l.b16 %v2884
        %v3144 = vunpack.c.l.b16 %v2885
        %v3145 = vunpack.c.l.b16 %v2886
        %v3146 = vunpack.c.l.b16 %v2887
        %v3147 = vunpack.c.l.b16 %v2888
        %v3148 = vunpack.c.l.b16 %v2889
        %v3149 = vunpack.c.l.b16 %v2890
        %v3150 = vunpack.c.l.b16 %v2891
        %v3151 = vunpack.c.l.b16 %v2892
        %v3152 = vunpack.c.l.b16 %v2893
        %v3153 = vunpack.c.l.b16 %v2894
        %v3154 = vunpack.c.l.b16 %v2895
        %v3155 = vunpack.c.l.b16 %v2896
        %v3156 = vunpack.c.l.b16 %v2897
        %v3157 = vunpack.c.l.b16 %v2898
        %v3158 = vunpack.c.l.b16 %v2899
        %v3159 = vunpack.c.l.b16 %v2900
        %v3160 = vunpack.c.l.b16 %v2901
        %v3161 = vunpack.c.l.b16 %v2902
        %v3162 = vunpack.c.l.b16 %v2903
        %v3163 = vunpack.c.l.b16 %v2904
        %v3164 = vunpack.c.l.b16 %v2905
        %v3165 = vunpack.c.l.b16 %v2906
        %v3166 = vunpack.c.l.b16 %v2907
        %v3167 = vunpack.c.l.b16 %v2908
        %v3168 = vunpack.c.l.b16 %v2909
        %v3169 = vunpack.c.l.b16 %v2910
        %v3170 = vunpack.c.l.b16 %v2911
        %v3171 = vunpack.c.l.b16 %v2912
        %v3172 = vunpack.c.l.b16 %v2913
        %v3173 = vunpack.c.l.b16 %v2914
        %v3174 = vunpack.c.l.b16 %v2915
        %v3175 = vunpack.c.l.b16 %v2916
        %v3176 = vunpack.c.l.b16 %v2917
        %v3177 = vunpack.c.l.b16 %v2918
        %v3178 = vunpack.c.l.b16 %v2919
        %v3179 = vunpack.c.l.b16 %v2920
        %v3180 = vunpack.c.l.b16 %v2921
        %v3181 = vunpack.c.l.b16 %v2922
        %v3182 = vunpack.c.l.b16 %v2923
        %v3183 = vunpack.c.l.b16 %v2924
        %v3184 = vunpack.c.l.b16 %v2925
        %v3185 = vunpack.c.l.b16 %v2926
        %v3186 = vunpack.c.l.b16 %v2927
        %v3187 = vunpack.c.l.b16 %v2928
        %v3188 = vunpack.c.l.b16 %v2929
        %v3189 = vunpack.c.l.b16 %v2930
        %v3190 = vunpack.c.l.b16 %v2931
        %v3191 = vunpack.c.l.b16 %v2932
        %v3192 = vunpack.c.l.b16 %v2933
        %v3193 = vunpack.c.l.b16 %v2934
        %v3194 = vunpack.c.l.b16 %v2935
        %v3195 = vunpack.c.l.b16 %v2936
        %v3196 = vunpack.c.l.b16 %v2937
        %v3197 = vunpack.c.l.b16 %v2938
        %v3198 = vunpack.c.l.b16 %v2939
        %v3199 = vunpack.c.l.b16 %v2940
        %v3200 = vunpack.c.l.b16 %v2941
        %v3201 = vunpack.c.l.b16 %v2942
        %v3202 = vpack.c.b16 %v3075, %v3074
        %v3203 = vpack.c.b16 %v3077, %v3076
        %v3204 = vpack.c.b16 %v3079, %v3078
        %v3205 = vpack.c.b16 %v3081, %v3080
        %v3206 = vpack.c.b16 %v3083, %v3082
        %v3207 = vpack.c.b16 %v3085, %v3084
        %v3208 = vpack.c.b16 %v3087, %v3086
        %v3209 = vpack.c.b16 %v3089, %v3088
        %v3210 = vpack.c.b16 %v3091, %v3090
        %v3211 = vpack.c.b16 %v3093, %v3092
        %v3212 = vpack.c.b16 %v3095, %v3094
        %v3213 = vpack.c.b16 %v3097, %v3096
        %v3214 = vpack.c.b16 %v3099, %v3098
        %v3215 = vpack.c.b16 %v3101, %v3100
        %v3216 = vpack.c.b16 %v3103, %v3102
        %v3217 = vpack.c.b16 %v3105, %v3104
        %v3218 = vpack.c.b16 %v3107, %v3106
        %v3219 = vpack.c.b16 %v3109, %v3108
        %v3220 = vpack.c.b16 %v3111, %v3110
        %v3221 = vpack.c.b16 %v3113, %v3112
        %v3222 = vpack.c.b16 %v3115, %v3114
        %v3223 = vpack.c.b16 %v3117, %v3116
        %v3224 = vpack.c.b16 %v3119, %v3118
        %v3225 = vpack.c.b16 %v3121, %v3120
        %v3226 = vpack.c.b16 %v3123, %v3122
        %v3227 = vpack.c.b16 %v3125, %v3124
        %v3228 = vpack.c.b16 %v3127, %v3126
        %v3229 = vpack.c.b16 %v3129, %v3128
        %v3230 = vpack.c.b16 %v3131, %v3130
        %v3231 = vpack.c.b16 %v3133, %v3132
        %v3232 = vpack.c.b16 %v3135, %v3134
        %v3233 = vpack.c.b16 %v3137, %v3136
        %v3234 = vpack.c.b16 %v3139, %v3138
        %v3235 = vpack.c.b16 %v3141, %v3140
        %v3236 = vpack.c.b16 %v3143, %v3142
        %v3237 = vpack.c.b16 %v3145, %v3144
        %v3238 = vpack.c.b16 %v3147, %v3146
        %v3239 = vpack.c.b16 %v3149, %v3148
        %v3240 = vpack.c.b16 %v3151, %v3150
        %v3241 = vpack.c.b16 %v3153, %v3152
        %v3242 = vpack.c.b16 %v3155, %v3154
        %v3243 = vpack.c.b16 %v3157, %v3156
        %v3244 = vpack.c.b16 %v3159, %v3158
        %v3245 = vpack.c.b16 %v3161, %v3160
        %v3246 = vpack.c.b16 %v3163, %v3162
        %v3247 = vpack.c.b16 %v3165, %v3164
        %v3248 = vpack.c.b16 %v3167, %v3166
        %v3249 = vpack.c.b16 %v3169, %v3168
        %v3250 = vpack.c.b16 %v3171, %v3170
        %v3251 = vpack.c.b16 %v3173, %v3172
        %v3252 = vpack.c.b16 %v3175, %v3174
        %v3253 = vpack.c.b16 %v3177, %v3176
        %v3254 = vpack.c.b16 %v3179, %v3178
        %v3255 = vpack.c.b16 %v3181, %v3180
        %v3256 = vpack.c.b16 %v3183, %v3182
        %v3257 = vpack.c.b16 %v3185, %v3184
        %v3258 = vpack.c.b16 %v3187, %v3186
        %v3259 = vpack.c.b16 %v3189, %v3188
        %v3260 = vpack.c.b16 %v3191, %v3190
        %v3261 = vpack.c.b16 %v3193, %v3192
        %v3262 = vpack.c.b16 %v3195, %v3194
        %v3263 = vpack.c.b16 %v3197, %v3196
        %v3264 = vpack.c.b16 %v3199, %v3198
        %v3265 = vpack.c.b16 %v3201, %v3200
        %v3268 = vunpack.c.l.b16 %v2944
        %v3269 = vunpack.c.l.b16 %v2945
        %v3270 = vpack.c.b16 %v3269, %v3268
        %vm3271 = vcmask 72704
        %v3273 = vsel %vm3271, %v3202, 0
        %v3276 = vsel %vm3271, %v3203, 0
        %v3279 = vsel %vm3271, %v3204, 0
        %v3282 = vsel %vm3271, %v3205, 0
        %v3285 = vsel %vm3271, %v3206, 0
        %v3288 = vsel %vm3271, %v3207, 0
        %v3291 = vsel %vm3271, %v3208, 0
        %v3294 = vsel %vm3271, %v3209, 0
        %v3297 = vsel %vm3271, %v3210, 0
        %v3300 = vsel %vm3271, %v3211, 0
        %v3303 = vsel %vm3271, %v3212, 0
        %v3306 = vsel %vm3271, %v3213, 0
        %v3309 = vsel %vm3271, %v3214, 0
        %v3312 = vsel %vm3271, %v3215, 0
        %v3315 = vsel %vm3271, %v3216, 0
        %v3318 = vsel %vm3271, %v3217, 0
        %v3321 = vsel %vm3271, %v3218, 0
        %v3324 = vsel %vm3271, %v3219, 0
        %v3327 = vsel %vm3271, %v3220, 0
        %v3330 = vsel %vm3271, %v3221, 0
        %v3333 = vsel %vm3271, %v3222, 0
        %v3336 = vsel %vm3271, %v3223, 0
        %v3339 = vsel %vm3271, %v3224, 0
        %v3342 = vsel %vm3271, %v3225, 0
        %v3345 = vsel %vm3271, %v3226, 0
        %v3348 = vsel %vm3271, %v3227, 0
        %v3351 = vsel %vm3271, %v3228, 0
        %v3354 = vsel %vm3271, %v3229, 0
        %v3357 = vsel %vm3271, %v3230, 0
        %v3360 = vsel %vm3271, %v3231, 0
        %v3363 = vsel %vm3271, %v3232, 0
        %v3366 = vsel %vm3271, %v3233, 0
        %v3369 = vsel %vm3271, %v3234, 0
        %v3372 = vsel %vm3271, %v3235, 0
        %v3375 = vsel %vm3271, %v3236, 0
        %v3378 = vsel %vm3271, %v3237, 0
        %v3381 = vsel %vm3271, %v3238, 0
        %v3384 = vsel %vm3271, %v3239, 0
        %v3387 = vsel %vm3271, %v3240, 0
        %v3390 = vsel %vm3271, %v3241, 0
        %v3393 = vsel %vm3271, %v3242, 0
        %v3396 = vsel %vm3271, %v3243, 0
        %v3399 = vsel %vm3271, %v3244, 0
        %v3402 = vsel %vm3271, %v3245, 0
        %v3405 = vsel %vm3271, %v3246, 0
        %v3408 = vsel %vm3271, %v3247, 0
        %v3411 = vsel %vm3271, %v3248, 0
        %v3414 = vsel %vm3271, %v3249, 0
        %v3417 = vsel %vm3271, %v3250, 0
        %v3420 = vsel %vm3271, %v3251, 0
        %v3423 = vsel %vm3271, %v3252, 0
        %v3426 = vsel %vm3271, %v3253, 0
        %v3429 = vsel %vm3271, %v3254, 0
        %v3432 = vsel %vm3271, %v3255, 0
        %v3435 = vsel %vm3271, %v3256, 0
        %v3438 = vsel %vm3271, %v3257, 0
        %v3441 = vsel %vm3271, %v3258, 0
        %v3444 = vsel %vm3271, %v3259, 0
        %v3447 = vsel %vm3271, %v3260, 0
        %v3450 = vsel %vm3271, %v3261, 0
        %v3453 = vsel %vm3271, %v3262, 0
        %v3456 = vsel %vm3271, %v3263, 0
        %v3459 = vsel %vm3271, %v3264, 0
        %v3462 = vsel %vm3271, %v3265, 0
        %vm3464 = vcmask 1043456
        %vm3465 = vcmask 1044480
        %v3466 = vsel %vm3464, 4294967295, 65535
        %v3467 = vsel %vm3465, %v3466, 0
        %v3469 = vand.u32 %v3270, %v3467
        %3471 = vmatprep.subr.bf16.mxu0 0
        %3472 = vmatpush1.bf16.msra.mxu0 0
        %3473 = vmatprep.subr.bf16.mxu0 0
        %3474 = vmatpush1.bf16.msra.mxu0 0
        %3475 = vmatprep.subr.bf16.mxu0 0
        %3476 = vmatpush1.bf16.msra.mxu0 0
        %3477 = vmatprep.subr.bf16.mxu0 0
        %3478 = vmatpush1.bf16.msra.mxu0 0
        %3479 = vmatprep.subr.bf16.mxu0 0
        %3480 = vmatpush1.bf16.msra.mxu0 0
        %3481 = vmatprep.subr.bf16.mxu0 0
        %3482 = vmatpush1.bf16.msra.mxu0 0
        %3483 = vmatprep.subr.bf16.mxu0 0
        %3484 = vmatpush1.bf16.msra.mxu0 0
        %3485 = vmatprep.subr.bf16.mxu0 0
        %3486 = vmatpush1.bf16.msra.mxu0 %v3469
        %3487 = vmatprep.subr.bf16.mxu0 0
        %3488 = vmatpush2.bf16.msra.mxu0 0
        %3489 = vmatprep.subr.bf16.mxu0 0
        %3490 = vmatpush2.bf16.msra.mxu0 0
        %3491 = vmatprep.subr.bf16.mxu0 0
        %3492 = vmatpush2.bf16.msra.mxu0 0
        %3493 = vmatprep.subr.bf16.mxu0 0
        %3494 = vmatpush2.bf16.msra.mxu0 0
        %3495 = vmatprep.subr.bf16.mxu0 0
        %3496 = vmatpush2.bf16.msra.mxu0 0
        %3497 = vmatprep.subr.bf16.mxu0 0
        %3498 = vmatpush2.bf16.msra.mxu0 0
        %3499 = vmatprep.subr.bf16.mxu0 0
        %3500 = vmatpush2.bf16.msra.mxu0 0
        %3501 = vmatprep.subr.bf16.mxu0 0
        %3502 = vmatpush2.bf16.msra.mxu0 0
        %3503 = vmatprep.mubr.bf16.mxu0 0
        %3504 = vmatmul.mubr.bf16.gmra.mxu0 %v3273
        %v3505 = vpop.f32.mrf.mxu0
        %v3506 = vadd.f32 0.0, %v3505
        %v3507 = vpop.f32.mrf.mxu0
        %v3508 = vpop.f32.mrf.mxu0
        %v3509 = vadd.f32 0.0, %v3508
        %v3510 = vpop.f32.mrf.mxu0
        %3511 = vmatprep.mubr.bf16.mxu0 0
        %3512 = vmatmul.mubr.bf16.gmra.mxu0 %v3276
        %v3513 = vpop.f32.mrf.mxu0
        %v3514 = vadd.f32 0.0, %v3513
        %v3515 = vpop.f32.mrf.mxu0
        %v3516 = vpop.f32.mrf.mxu0
        %v3517 = vadd.f32 0.0, %v3516
        %v3518 = vpop.f32.mrf.mxu0
        %3519 = vmatprep.mubr.bf16.mxu0 0
        %3520 = vmatmul.mubr.bf16.gmra.mxu0 %v3279
        %v3521 = vpop.f32.mrf.mxu0
        %v3522 = vadd.f32 0.0, %v3521
        %v3523 = vpop.f32.mrf.mxu0
        %v3524 = vpop.f32.mrf.mxu0
        %v3525 = vadd.f32 0.0, %v3524
        %v3526 = vpop.f32.mrf.mxu0
        %3527 = vmatprep.mubr.bf16.mxu0 0
        %3528 = vmatmul.mubr.bf16.gmra.mxu0 %v3282
        %v3529 = vpop.f32.mrf.mxu0
        %v3530 = vadd.f32 0.0, %v3529
        %v3531 = vpop.f32.mrf.mxu0
        %v3532 = vpop.f32.mrf.mxu0
        %v3533 = vadd.f32 0.0, %v3532
        %v3534 = vpop.f32.mrf.mxu0
        %3535 = vmatprep.mubr.bf16.mxu0 0
        %3536 = vmatmul.mubr.bf16.gmra.mxu0 %v3285
        %v3537 = vpop.f32.mrf.mxu0
        %v3538 = vadd.f32 0.0, %v3537
        %v3539 = vpop.f32.mrf.mxu0
        %v3540 = vpop.f32.mrf.mxu0
        %v3541 = vadd.f32 0.0, %v3540
        %v3542 = vpop.f32.mrf.mxu0
        %3543 = vmatprep.mubr.bf16.mxu0 0
        %3544 = vmatmul.mubr.bf16.gmra.mxu0 %v3288
        %v3545 = vpop.f32.mrf.mxu0
        %v3546 = vadd.f32 0.0, %v3545
        %v3547 = vpop.f32.mrf.mxu0
        %v3548 = vpop.f32.mrf.mxu0
        %v3549 = vadd.f32 0.0, %v3548
        %v3550 = vpop.f32.mrf.mxu0
        %3551 = vmatprep.mubr.bf16.mxu0 0
        %3552 = vmatmul.mubr.bf16.gmra.mxu0 %v3291
        %v3553 = vpop.f32.mrf.mxu0
        %v3554 = vadd.f32 0.0, %v3553
        %v3555 = vpop.f32.mrf.mxu0
        %v3556 = vpop.f32.mrf.mxu0
        %v3557 = vadd.f32 0.0, %v3556
        %v3558 = vpop.f32.mrf.mxu0
        %3559 = vmatprep.mubr.bf16.mxu0 0
        %3560 = vmatmul.mubr.bf16.gmra.mxu0 %v3294
        %v3561 = vpop.f32.mrf.mxu0
        %v3562 = vadd.f32 0.0, %v3561
        %v3563 = vpop.f32.mrf.mxu0
        %v3564 = vpop.f32.mrf.mxu0
        %v3565 = vadd.f32 0.0, %v3564
        %v3566 = vpop.f32.mrf.mxu0
        %3567 = vmatprep.mubr.bf16.mxu0 0
        %3568 = vmatmul.mubr.bf16.gmra.mxu0 %v3297
        %v3569 = vpop.f32.mrf.mxu0
        %v3570 = vadd.f32 0.0, %v3569
        %v3571 = vpop.f32.mrf.mxu0
        %v3572 = vpop.f32.mrf.mxu0
        %v3573 = vadd.f32 0.0, %v3572
        %v3574 = vpop.f32.mrf.mxu0
        %3575 = vmatprep.mubr.bf16.mxu0 0
        %3576 = vmatmul.mubr.bf16.gmra.mxu0 %v3300
        %v3577 = vpop.f32.mrf.mxu0
        %v3578 = vadd.f32 0.0, %v3577
        %v3579 = vpop.f32.mrf.mxu0
        %v3580 = vpop.f32.mrf.mxu0
        %v3581 = vadd.f32 0.0, %v3580
        %v3582 = vpop.f32.mrf.mxu0
        %3583 = vmatprep.mubr.bf16.mxu0 0
        %3584 = vmatmul.mubr.bf16.gmra.mxu0 %v3303
        %v3585 = vpop.f32.mrf.mxu0
        %v3586 = vadd.f32 0.0, %v3585
        %v3587 = vpop.f32.mrf.mxu0
        %v3588 = vpop.f32.mrf.mxu0
        %v3589 = vadd.f32 0.0, %v3588
        %v3590 = vpop.f32.mrf.mxu0
        %3591 = vmatprep.mubr.bf16.mxu0 0
        %3592 = vmatmul.mubr.bf16.gmra.mxu0 %v3306
        %v3593 = vpop.f32.mrf.mxu0
        %v3594 = vadd.f32 0.0, %v3593
        %v3595 = vpop.f32.mrf.mxu0
        %v3596 = vpop.f32.mrf.mxu0
        %v3597 = vadd.f32 0.0, %v3596
        %v3598 = vpop.f32.mrf.mxu0
        %3599 = vmatprep.mubr.bf16.mxu0 0
        %3600 = vmatmul.mubr.bf16.gmra.mxu0 %v3309
        %v3601 = vpop.f32.mrf.mxu0
        %v3602 = vadd.f32 0.0, %v3601
        %v3603 = vpop.f32.mrf.mxu0
        %v3604 = vpop.f32.mrf.mxu0
        %v3605 = vadd.f32 0.0, %v3604
        %v3606 = vpop.f32.mrf.mxu0
        %3607 = vmatprep.mubr.bf16.mxu0 0
        %3608 = vmatmul.mubr.bf16.gmra.mxu0 %v3312
        %v3609 = vpop.f32.mrf.mxu0
        %v3610 = vadd.f32 0.0, %v3609
        %v3611 = vpop.f32.mrf.mxu0
        %v3612 = vpop.f32.mrf.mxu0
        %v3613 = vadd.f32 0.0, %v3612
        %v3614 = vpop.f32.mrf.mxu0
        %3615 = vmatprep.mubr.bf16.mxu0 0
        %3616 = vmatmul.mubr.bf16.gmra.mxu0 %v3315
        %v3617 = vpop.f32.mrf.mxu0
        %v3618 = vadd.f32 0.0, %v3617
        %v3619 = vpop.f32.mrf.mxu0
        %v3620 = vpop.f32.mrf.mxu0
        %v3621 = vadd.f32 0.0, %v3620
        %v3622 = vpop.f32.mrf.mxu0
        %3623 = vmatprep.mubr.bf16.mxu0 0
        %3624 = vmatmul.mubr.bf16.gmra.mxu0 %v3318
        %v3625 = vpop.f32.mrf.mxu0
        %v3626 = vadd.f32 0.0, %v3625
        %v3627 = vpop.f32.mrf.mxu0
        %v3628 = vpop.f32.mrf.mxu0
        %v3629 = vadd.f32 0.0, %v3628
        %v3630 = vpop.f32.mrf.mxu0
        %3631 = vmatprep.mubr.bf16.mxu0 0
        %3632 = vmatmul.mubr.bf16.gmra.mxu0 %v3321
        %v3633 = vpop.f32.mrf.mxu0
        %v3634 = vadd.f32 0.0, %v3633
        %v3635 = vpop.f32.mrf.mxu0
        %v3636 = vpop.f32.mrf.mxu0
        %v3637 = vadd.f32 0.0, %v3636
        %v3638 = vpop.f32.mrf.mxu0
        %3639 = vmatprep.mubr.bf16.mxu0 0
        %3640 = vmatmul.mubr.bf16.gmra.mxu0 %v3324
        %v3641 = vpop.f32.mrf.mxu0
        %v3642 = vadd.f32 0.0, %v3641
        %v3643 = vpop.f32.mrf.mxu0
        %v3644 = vpop.f32.mrf.mxu0
        %v3645 = vadd.f32 0.0, %v3644
        %v3646 = vpop.f32.mrf.mxu0
        %3647 = vmatprep.mubr.bf16.mxu0 0
        %3648 = vmatmul.mubr.bf16.gmra.mxu0 %v3327
        %v3649 = vpop.f32.mrf.mxu0
        %v3650 = vadd.f32 0.0, %v3649
        %v3651 = vpop.f32.mrf.mxu0
        %v3652 = vpop.f32.mrf.mxu0
        %v3653 = vadd.f32 0.0, %v3652
        %v3654 = vpop.f32.mrf.mxu0
        %3655 = vmatprep.mubr.bf16.mxu0 0
        %3656 = vmatmul.mubr.bf16.gmra.mxu0 %v3330
        %v3657 = vpop.f32.mrf.mxu0
        %v3658 = vadd.f32 0.0, %v3657
        %v3659 = vpop.f32.mrf.mxu0
        %v3660 = vpop.f32.mrf.mxu0
        %v3661 = vadd.f32 0.0, %v3660
        %v3662 = vpop.f32.mrf.mxu0
        %3663 = vmatprep.mubr.bf16.mxu0 0
        %3664 = vmatmul.mubr.bf16.gmra.mxu0 %v3333
        %v3665 = vpop.f32.mrf.mxu0
        %v3666 = vadd.f32 0.0, %v3665
        %v3667 = vpop.f32.mrf.mxu0
        %v3668 = vpop.f32.mrf.mxu0
        %v3669 = vadd.f32 0.0, %v3668
        %v3670 = vpop.f32.mrf.mxu0
        %3671 = vmatprep.mubr.bf16.mxu0 0
        %3672 = vmatmul.mubr.bf16.gmra.mxu0 %v3336
        %v3673 = vpop.f32.mrf.mxu0
        %v3674 = vadd.f32 0.0, %v3673
        %v3675 = vpop.f32.mrf.mxu0
        %v3676 = vpop.f32.mrf.mxu0
        %v3677 = vadd.f32 0.0, %v3676
        %v3678 = vpop.f32.mrf.mxu0
        %3679 = vmatprep.mubr.bf16.mxu0 0
        %3680 = vmatmul.mubr.bf16.gmra.mxu0 %v3339
        %v3681 = vpop.f32.mrf.mxu0
        %v3682 = vadd.f32 0.0, %v3681
        %v3683 = vpop.f32.mrf.mxu0
        %v3684 = vpop.f32.mrf.mxu0
        %v3685 = vadd.f32 0.0, %v3684
        %v3686 = vpop.f32.mrf.mxu0
        %3687 = vmatprep.mubr.bf16.mxu0 0
        %3688 = vmatmul.mubr.bf16.gmra.mxu0 %v3342
        %v3689 = vpop.f32.mrf.mxu0
        %v3690 = vadd.f32 0.0, %v3689
        %v3691 = vpop.f32.mrf.mxu0
        %v3692 = vpop.f32.mrf.mxu0
        %v3693 = vadd.f32 0.0, %v3692
        %v3694 = vpop.f32.mrf.mxu0
        %3695 = vmatprep.mubr.bf16.mxu0 0
        %3696 = vmatmul.mubr.bf16.gmra.mxu0 %v3345
        %v3697 = vpop.f32.mrf.mxu0
        %v3698 = vadd.f32 0.0, %v3697
        %v3699 = vpop.f32.mrf.mxu0
        %v3700 = vpop.f32.mrf.mxu0
        %v3701 = vadd.f32 0.0, %v3700
        %v3702 = vpop.f32.mrf.mxu0
        %3703 = vmatprep.mubr.bf16.mxu0 0
        %3704 = vmatmul.mubr.bf16.gmra.mxu0 %v3348
        %v3705 = vpop.f32.mrf.mxu0
        %v3706 = vadd.f32 0.0, %v3705
        %v3707 = vpop.f32.mrf.mxu0
        %v3708 = vpop.f32.mrf.mxu0
        %v3709 = vadd.f32 0.0, %v3708
        %v3710 = vpop.f32.mrf.mxu0
        %3711 = vmatprep.mubr.bf16.mxu0 0
        %3712 = vmatmul.mubr.bf16.gmra.mxu0 %v3351
        %v3713 = vpop.f32.mrf.mxu0
        %v3714 = vadd.f32 0.0, %v3713
        %v3715 = vpop.f32.mrf.mxu0
        %v3716 = vpop.f32.mrf.mxu0
        %v3717 = vadd.f32 0.0, %v3716
        %v3718 = vpop.f32.mrf.mxu0
        %3719 = vmatprep.mubr.bf16.mxu0 0
        %3720 = vmatmul.mubr.bf16.gmra.mxu0 %v3354
        %v3721 = vpop.f32.mrf.mxu0
        %v3722 = vadd.f32 0.0, %v3721
        %v3723 = vpop.f32.mrf.mxu0
        %v3724 = vpop.f32.mrf.mxu0
        %v3725 = vadd.f32 0.0, %v3724
        %v3726 = vpop.f32.mrf.mxu0
        %3727 = vmatprep.mubr.bf16.mxu0 0
        %3728 = vmatmul.mubr.bf16.gmra.mxu0 %v3357
        %v3729 = vpop.f32.mrf.mxu0
        %v3730 = vadd.f32 0.0, %v3729
        %v3731 = vpop.f32.mrf.mxu0
        %v3732 = vpop.f32.mrf.mxu0
        %v3733 = vadd.f32 0.0, %v3732
        %v3734 = vpop.f32.mrf.mxu0
        %3735 = vmatprep.mubr.bf16.mxu0 0
        %3736 = vmatmul.mubr.bf16.gmra.mxu0 %v3360
        %v3737 = vpop.f32.mrf.mxu0
        %v3738 = vadd.f32 0.0, %v3737
        %v3739 = vpop.f32.mrf.mxu0
        %v3740 = vpop.f32.mrf.mxu0
        %v3741 = vadd.f32 0.0, %v3740
        %v3742 = vpop.f32.mrf.mxu0
        %3743 = vmatprep.mubr.bf16.mxu0 0
        %3744 = vmatmul.mubr.bf16.gmra.mxu0 %v3363
        %v3745 = vpop.f32.mrf.mxu0
        %v3746 = vadd.f32 0.0, %v3745
        %v3747 = vpop.f32.mrf.mxu0
        %v3748 = vpop.f32.mrf.mxu0
        %v3749 = vadd.f32 0.0, %v3748
        %v3750 = vpop.f32.mrf.mxu0
        %3751 = vmatprep.mubr.bf16.mxu0 0
        %3752 = vmatmul.mubr.bf16.gmra.mxu0 %v3366
        %v3753 = vpop.f32.mrf.mxu0
        %v3754 = vadd.f32 0.0, %v3753
        %v3755 = vpop.f32.mrf.mxu0
        %v3756 = vpop.f32.mrf.mxu0
        %v3757 = vadd.f32 0.0, %v3756
        %v3758 = vpop.f32.mrf.mxu0
        %3759 = vmatprep.mubr.bf16.mxu0 0
        %3760 = vmatmul.mubr.bf16.gmra.mxu0 %v3369
        %v3761 = vpop.f32.mrf.mxu0
        %v3762 = vadd.f32 0.0, %v3761
        %v3763 = vpop.f32.mrf.mxu0
        %v3764 = vpop.f32.mrf.mxu0
        %v3765 = vadd.f32 0.0, %v3764
        %v3766 = vpop.f32.mrf.mxu0
        %3767 = vmatprep.mubr.bf16.mxu0 0
        %3768 = vmatmul.mubr.bf16.gmra.mxu0 %v3372
        %v3769 = vpop.f32.mrf.mxu0
        %v3770 = vadd.f32 0.0, %v3769
        %v3771 = vpop.f32.mrf.mxu0
        %v3772 = vpop.f32.mrf.mxu0
        %v3773 = vadd.f32 0.0, %v3772
        %v3774 = vpop.f32.mrf.mxu0
        %3775 = vmatprep.mubr.bf16.mxu0 0
        %3776 = vmatmul.mubr.bf16.gmra.mxu0 %v3375
        %v3777 = vpop.f32.mrf.mxu0
        %v3778 = vadd.f32 0.0, %v3777
        %v3779 = vpop.f32.mrf.mxu0
        %v3780 = vpop.f32.mrf.mxu0
        %v3781 = vadd.f32 0.0, %v3780
        %v3782 = vpop.f32.mrf.mxu0
        %3783 = vmatprep.mubr.bf16.mxu0 0
        %3784 = vmatmul.mubr.bf16.gmra.mxu0 %v3378
        %v3785 = vpop.f32.mrf.mxu0
        %v3786 = vadd.f32 0.0, %v3785
        %v3787 = vpop.f32.mrf.mxu0
        %v3788 = vpop.f32.mrf.mxu0
        %v3789 = vadd.f32 0.0, %v3788
        %v3790 = vpop.f32.mrf.mxu0
        %3791 = vmatprep.mubr.bf16.mxu0 0
        %3792 = vmatmul.mubr.bf16.gmra.mxu0 %v3381
        %v3793 = vpop.f32.mrf.mxu0
        %v3794 = vadd.f32 0.0, %v3793
        %v3795 = vpop.f32.mrf.mxu0
        %v3796 = vpop.f32.mrf.mxu0
        %v3797 = vadd.f32 0.0, %v3796
        %v3798 = vpop.f32.mrf.mxu0
        %3799 = vmatprep.mubr.bf16.mxu0 0
        %3800 = vmatmul.mubr.bf16.gmra.mxu0 %v3384
        %v3801 = vpop.f32.mrf.mxu0
        %v3802 = vadd.f32 0.0, %v3801
        %v3803 = vpop.f32.mrf.mxu0
        %v3804 = vpop.f32.mrf.mxu0
        %v3805 = vadd.f32 0.0, %v3804
        %v3806 = vpop.f32.mrf.mxu0
        %3807 = vmatprep.mubr.bf16.mxu0 0
        %3808 = vmatmul.mubr.bf16.gmra.mxu0 %v3387
        %v3809 = vpop.f32.mrf.mxu0
        %v3810 = vadd.f32 0.0, %v3809
        %v3811 = vpop.f32.mrf.mxu0
        %v3812 = vpop.f32.mrf.mxu0
        %v3813 = vadd.f32 0.0, %v3812
        %v3814 = vpop.f32.mrf.mxu0
        %3815 = vmatprep.mubr.bf16.mxu0 0
        %3816 = vmatmul.mubr.bf16.gmra.mxu0 %v3390
        %v3817 = vpop.f32.mrf.mxu0
        %v3818 = vadd.f32 0.0, %v3817
        %v3819 = vpop.f32.mrf.mxu0
        %v3820 = vpop.f32.mrf.mxu0
        %v3821 = vadd.f32 0.0, %v3820
        %v3822 = vpop.f32.mrf.mxu0
        %3823 = vmatprep.mubr.bf16.mxu0 0
        %3824 = vmatmul.mubr.bf16.gmra.mxu0 %v3393
        %v3825 = vpop.f32.mrf.mxu0
        %v3826 = vadd.f32 0.0, %v3825
        %v3827 = vpop.f32.mrf.mxu0
        %v3828 = vpop.f32.mrf.mxu0
        %v3829 = vadd.f32 0.0, %v3828
        %v3830 = vpop.f32.mrf.mxu0
        %3831 = vmatprep.mubr.bf16.mxu0 0
        %3832 = vmatmul.mubr.bf16.gmra.mxu0 %v3396
        %v3833 = vpop.f32.mrf.mxu0
        %v3834 = vadd.f32 0.0, %v3833
        %v3835 = vpop.f32.mrf.mxu0
        %v3836 = vpop.f32.mrf.mxu0
        %v3837 = vadd.f32 0.0, %v3836
        %v3838 = vpop.f32.mrf.mxu0
        %3839 = vmatprep.mubr.bf16.mxu0 0
        %3840 = vmatmul.mubr.bf16.gmra.mxu0 %v3399
        %v3841 = vpop.f32.mrf.mxu0
        %v3842 = vadd.f32 0.0, %v3841
        %v3843 = vpop.f32.mrf.mxu0
        %v3844 = vpop.f32.mrf.mxu0
        %v3845 = vadd.f32 0.0, %v3844
        %v3846 = vpop.f32.mrf.mxu0
        %3847 = vmatprep.mubr.bf16.mxu0 0
        %3848 = vmatmul.mubr.bf16.gmra.mxu0 %v3402
        %v3849 = vpop.f32.mrf.mxu0
        %v3850 = vadd.f32 0.0, %v3849
        %v3851 = vpop.f32.mrf.mxu0
        %v3852 = vpop.f32.mrf.mxu0
        %v3853 = vadd.f32 0.0, %v3852
        %v3854 = vpop.f32.mrf.mxu0
        %3855 = vmatprep.mubr.bf16.mxu0 0
        %3856 = vmatmul.mubr.bf16.gmra.mxu0 %v3405
        %v3857 = vpop.f32.mrf.mxu0
        %v3858 = vadd.f32 0.0, %v3857
        %v3859 = vpop.f32.mrf.mxu0
        %v3860 = vpop.f32.mrf.mxu0
        %v3861 = vadd.f32 0.0, %v3860
        %v3862 = vpop.f32.mrf.mxu0
        %3863 = vmatprep.mubr.bf16.mxu0 0
        %3864 = vmatmul.mubr.bf16.gmra.mxu0 %v3408
        %v3865 = vpop.f32.mrf.mxu0
        %v3866 = vadd.f32 0.0, %v3865
        %v3867 = vpop.f32.mrf.mxu0
        %v3868 = vpop.f32.mrf.mxu0
        %v3869 = vadd.f32 0.0, %v3868
        %v3870 = vpop.f32.mrf.mxu0
        %3871 = vmatprep.mubr.bf16.mxu0 0
        %3872 = vmatmul.mubr.bf16.gmra.mxu0 %v3411
        %v3873 = vpop.f32.mrf.mxu0
        %v3874 = vadd.f32 0.0, %v3873
        %v3875 = vpop.f32.mrf.mxu0
        %v3876 = vpop.f32.mrf.mxu0
        %v3877 = vadd.f32 0.0, %v3876
        %v3878 = vpop.f32.mrf.mxu0
        %3879 = vmatprep.mubr.bf16.mxu0 0
        %3880 = vmatmul.mubr.bf16.gmra.mxu0 %v3414
        %v3881 = vpop.f32.mrf.mxu0
        %v3882 = vadd.f32 0.0, %v3881
        %v3883 = vpop.f32.mrf.mxu0
        %v3884 = vpop.f32.mrf.mxu0
        %v3885 = vadd.f32 0.0, %v3884
        %v3886 = vpop.f32.mrf.mxu0
        %3887 = vmatprep.mubr.bf16.mxu0 0
        %3888 = vmatmul.mubr.bf16.gmra.mxu0 %v3417
        %v3889 = vpop.f32.mrf.mxu0
        %v3890 = vadd.f32 0.0, %v3889
        %v3891 = vpop.f32.mrf.mxu0
        %v3892 = vpop.f32.mrf.mxu0
        %v3893 = vadd.f32 0.0, %v3892
        %v3894 = vpop.f32.mrf.mxu0
        %3895 = vmatprep.mubr.bf16.mxu0 0
        %3896 = vmatmul.mubr.bf16.gmra.mxu0 %v3420
        %v3897 = vpop.f32.mrf.mxu0
        %v3898 = vadd.f32 0.0, %v3897
        %v3899 = vpop.f32.mrf.mxu0
        %v3900 = vpop.f32.mrf.mxu0
        %v3901 = vadd.f32 0.0, %v3900
        %v3902 = vpop.f32.mrf.mxu0
        %3903 = vmatprep.mubr.bf16.mxu0 0
        %3904 = vmatmul.mubr.bf16.gmra.mxu0 %v3423
        %v3905 = vpop.f32.mrf.mxu0
        %v3906 = vadd.f32 0.0, %v3905
        %v3907 = vpop.f32.mrf.mxu0
        %v3908 = vpop.f32.mrf.mxu0
        %v3909 = vadd.f32 0.0, %v3908
        %v3910 = vpop.f32.mrf.mxu0
        %3911 = vmatprep.mubr.bf16.mxu0 0
        %3912 = vmatmul.mubr.bf16.gmra.mxu0 %v3426
        %v3913 = vpop.f32.mrf.mxu0
        %v3914 = vadd.f32 0.0, %v3913
        %v3915 = vpop.f32.mrf.mxu0
        %v3916 = vpop.f32.mrf.mxu0
        %v3917 = vadd.f32 0.0, %v3916
        %v3918 = vpop.f32.mrf.mxu0
        %3919 = vmatprep.mubr.bf16.mxu0 0
        %3920 = vmatmul.mubr.bf16.gmra.mxu0 %v3429
        %v3921 = vpop.f32.mrf.mxu0
        %v3922 = vadd.f32 0.0, %v3921
        %v3923 = vpop.f32.mrf.mxu0
        %v3924 = vpop.f32.mrf.mxu0
        %v3925 = vadd.f32 0.0, %v3924
        %v3926 = vpop.f32.mrf.mxu0
        %3927 = vmatprep.mubr.bf16.mxu0 0
        %3928 = vmatmul.mubr.bf16.gmra.mxu0 %v3432
        %v3929 = vpop.f32.mrf.mxu0
        %v3930 = vadd.f32 0.0, %v3929
        %v3931 = vpop.f32.mrf.mxu0
        %v3932 = vpop.f32.mrf.mxu0
        %v3933 = vadd.f32 0.0, %v3932
        %v3934 = vpop.f32.mrf.mxu0
        %3935 = vmatprep.mubr.bf16.mxu0 0
        %3936 = vmatmul.mubr.bf16.gmra.mxu0 %v3435
        %v3937 = vpop.f32.mrf.mxu0
        %v3938 = vadd.f32 0.0, %v3937
        %v3939 = vpop.f32.mrf.mxu0
        %v3940 = vpop.f32.mrf.mxu0
        %v3941 = vadd.f32 0.0, %v3940
        %v3942 = vpop.f32.mrf.mxu0
        %3943 = vmatprep.mubr.bf16.mxu0 0
        %3944 = vmatmul.mubr.bf16.gmra.mxu0 %v3438
        %v3945 = vpop.f32.mrf.mxu0
        %v3946 = vadd.f32 0.0, %v3945
        %v3947 = vpop.f32.mrf.mxu0
        %v3948 = vpop.f32.mrf.mxu0
        %v3949 = vadd.f32 0.0, %v3948
        %v3950 = vpop.f32.mrf.mxu0
        %3951 = vmatprep.mubr.bf16.mxu0 0
        %3952 = vmatmul.mubr.bf16.gmra.mxu0 %v3441
        %v3953 = vpop.f32.mrf.mxu0
        %v3954 = vadd.f32 0.0, %v3953
        %v3955 = vpop.f32.mrf.mxu0
        %v3956 = vpop.f32.mrf.mxu0
        %v3957 = vadd.f32 0.0, %v3956
        %v3958 = vpop.f32.mrf.mxu0
        %3959 = vmatprep.mubr.bf16.mxu0 0
        %3960 = vmatmul.mubr.bf16.gmra.mxu0 %v3444
        %v3961 = vpop.f32.mrf.mxu0
        %v3962 = vadd.f32 0.0, %v3961
        %v3963 = vpop.f32.mrf.mxu0
        %v3964 = vpop.f32.mrf.mxu0
        %v3965 = vadd.f32 0.0, %v3964
        %v3966 = vpop.f32.mrf.mxu0
        %3967 = vmatprep.mubr.bf16.mxu0 0
        %3968 = vmatmul.mubr.bf16.gmra.mxu0 %v3447
        %v3969 = vpop.f32.mrf.mxu0
        %v3970 = vadd.f32 0.0, %v3969
        %v3971 = vpop.f32.mrf.mxu0
        %v3972 = vpop.f32.mrf.mxu0
        %v3973 = vadd.f32 0.0, %v3972
        %v3974 = vpop.f32.mrf.mxu0
        %3975 = vmatprep.mubr.bf16.mxu0 0
        %3976 = vmatmul.mubr.bf16.gmra.mxu0 %v3450
        %v3977 = vpop.f32.mrf.mxu0
        %v3978 = vadd.f32 0.0, %v3977
        %v3979 = vpop.f32.mrf.mxu0
        %v3980 = vpop.f32.mrf.mxu0
        %v3981 = vadd.f32 0.0, %v3980
        %v3982 = vpop.f32.mrf.mxu0
        %3983 = vmatprep.mubr.bf16.mxu0 0
        %3984 = vmatmul.mubr.bf16.gmra.mxu0 %v3453
        %v3985 = vpop.f32.mrf.mxu0
        %v3986 = vadd.f32 0.0, %v3985
        %v3987 = vpop.f32.mrf.mxu0
        %v3988 = vpop.f32.mrf.mxu0
        %v3989 = vadd.f32 0.0, %v3988
        %v3990 = vpop.f32.mrf.mxu0
        %3991 = vmatprep.mubr.bf16.mxu0 0
        %3992 = vmatmul.mubr.bf16.gmra.mxu0 %v3456
        %v3993 = vpop.f32.mrf.mxu0
        %v3994 = vadd.f32 0.0, %v3993
        %v3995 = vpop.f32.mrf.mxu0
        %v3996 = vpop.f32.mrf.mxu0
        %v3997 = vadd.f32 0.0, %v3996
        %v3998 = vpop.f32.mrf.mxu0
        %3999 = vmatprep.mubr.bf16.mxu0 0
        %4000 = vmatmul.mubr.bf16.gmra.mxu0 %v3459
        %v4001 = vpop.f32.mrf.mxu0
        %v4002 = vadd.f32 0.0, %v4001
        %v4003 = vpop.f32.mrf.mxu0
        %v4004 = vpop.f32.mrf.mxu0
        %v4005 = vadd.f32 0.0, %v4004
        %v4006 = vpop.f32.mrf.mxu0
        %4007 = vmatprep.mubr.bf16.mxu0 0
        %4008 = vmatmul.mubr.bf16.gmra.mxu0 %v3462
        %v4009 = vpop.f32.mrf.mxu0
        %v4010 = vadd.f32 0.0, %v4009
        %v4011 = vpop.f32.mrf.mxu0
        %v4012 = vpop.f32.mrf.mxu0
        %v4013 = vadd.f32 0.0, %v4012
        %v4014 = vpop.f32.mrf.mxu0
        %4015 = vdwg.mxu0
        %v4144 = vunpack.c.l.b16 %v2684
        %v4145 = vunpack.c.l.b16 %v2685
        %v4146 = vunpack.c.l.b16 %v2686
        %v4147 = vunpack.c.l.b16 %v2687
        %v4148 = vunpack.c.l.b16 %v2688
        %v4149 = vunpack.c.l.b16 %v2689
        %v4150 = vunpack.c.l.b16 %v2690
        %v4151 = vunpack.c.l.b16 %v2691
        %v4152 = vunpack.c.l.b16 %v2692
        %v4153 = vunpack.c.l.b16 %v2693
        %v4154 = vunpack.c.l.b16 %v2694
        %v4155 = vunpack.c.l.b16 %v2695
        %v4156 = vunpack.c.l.b16 %v2696
        %v4157 = vunpack.c.l.b16 %v2697
        %v4158 = vunpack.c.l.b16 %v2698
        %v4159 = vunpack.c.l.b16 %v2699
        %v4160 = vunpack.c.l.b16 %v2700
        %v4161 = vunpack.c.l.b16 %v2701
        %v4162 = vunpack.c.l.b16 %v2702
        %v4163 = vunpack.c.l.b16 %v2703
        %v4164 = vunpack.c.l.b16 %v2704
        %v4165 = vunpack.c.l.b16 %v2705
        %v4166 = vunpack.c.l.b16 %v2706
        %v4167 = vunpack.c.l.b16 %v2707
        %v4168 = vunpack.c.l.b16 %v2708
        %v4169 = vunpack.c.l.b16 %v2709
        %v4170 = vunpack.c.l.b16 %v2710
        %v4171 = vunpack.c.l.b16 %v2711
        %v4172 = vunpack.c.l.b16 %v2712
        %v4173 = vunpack.c.l.b16 %v2713
        %v4174 = vunpack.c.l.b16 %v2714
        %v4175 = vunpack.c.l.b16 %v2715
        %v4176 = vunpack.c.l.b16 %v2716
        %v4177 = vunpack.c.l.b16 %v2717
        %v4178 = vunpack.c.l.b16 %v2718
        %v4179 = vunpack.c.l.b16 %v2719
        %v4180 = vunpack.c.l.b16 %v2720
        %v4181 = vunpack.c.l.b16 %v2721
        %v4182 = vunpack.c.l.b16 %v2722
        %v4183 = vunpack.c.l.b16 %v2723
        %v4184 = vunpack.c.l.b16 %v2724
        %v4185 = vunpack.c.l.b16 %v2725
        %v4186 = vunpack.c.l.b16 %v2726
        %v4187 = vunpack.c.l.b16 %v2727
        %v4188 = vunpack.c.l.b16 %v2728
        %v4189 = vunpack.c.l.b16 %v2729
        %v4190 = vunpack.c.l.b16 %v2730
        %v4191 = vunpack.c.l.b16 %v2731
        %v4192 = vunpack.c.l.b16 %v2732
        %v4193 = vunpack.c.l.b16 %v2733
        %v4194 = vunpack.c.l.b16 %v2734
        %v4195 = vunpack.c.l.b16 %v2735
        %v4196 = vunpack.c.l.b16 %v2736
        %v4197 = vunpack.c.l.b16 %v2737
        %v4198 = vunpack.c.l.b16 %v2738
        %v4199 = vunpack.c.l.b16 %v2739
        %v4200 = vunpack.c.l.b16 %v2740
        %v4201 = vunpack.c.l.b16 %v2741
        %v4202 = vunpack.c.l.b16 %v2742
        %v4203 = vunpack.c.l.b16 %v2743
        %v4204 = vunpack.c.l.b16 %v2744
        %v4205 = vunpack.c.l.b16 %v2745
        %v4206 = vunpack.c.l.b16 %v2746
        %v4207 = vunpack.c.l.b16 %v2747
        %v4208 = vunpack.c.l.b16 %v2748
        %v4209 = vunpack.c.l.b16 %v2749
        %v4210 = vunpack.c.l.b16 %v2750
        %v4211 = vunpack.c.l.b16 %v2751
        %v4212 = vunpack.c.l.b16 %v2752
        %v4213 = vunpack.c.l.b16 %v2753
        %v4214 = vunpack.c.l.b16 %v2754
        %v4215 = vunpack.c.l.b16 %v2755
        %v4216 = vunpack.c.l.b16 %v2756
        %v4217 = vunpack.c.l.b16 %v2757
        %v4218 = vunpack.c.l.b16 %v2758
        %v4219 = vunpack.c.l.b16 %v2759
        %v4220 = vunpack.c.l.b16 %v2760
        %v4221 = vunpack.c.l.b16 %v2761
        %v4222 = vunpack.c.l.b16 %v2762
        %v4223 = vunpack.c.l.b16 %v2763
        %v4224 = vunpack.c.l.b16 %v2764
        %v4225 = vunpack.c.l.b16 %v2765
        %v4226 = vunpack.c.l.b16 %v2766
        %v4227 = vunpack.c.l.b16 %v2767
        %v4228 = vunpack.c.l.b16 %v2768
        %v4229 = vunpack.c.l.b16 %v2769
        %v4230 = vunpack.c.l.b16 %v2770
        %v4231 = vunpack.c.l.b16 %v2771
        %v4232 = vunpack.c.l.b16 %v2772
        %v4233 = vunpack.c.l.b16 %v2773
        %v4234 = vunpack.c.l.b16 %v2774
        %v4235 = vunpack.c.l.b16 %v2775
        %v4236 = vunpack.c.l.b16 %v2776
        %v4237 = vunpack.c.l.b16 %v2777
        %v4238 = vunpack.c.l.b16 %v2778
        %v4239 = vunpack.c.l.b16 %v2779
        %v4240 = vunpack.c.l.b16 %v2780
        %v4241 = vunpack.c.l.b16 %v2781
        %v4242 = vunpack.c.l.b16 %v2782
        %v4243 = vunpack.c.l.b16 %v2783
        %v4244 = vunpack.c.l.b16 %v2784
        %v4245 = vunpack.c.l.b16 %v2785
        %v4246 = vunpack.c.l.b16 %v2786
        %v4247 = vunpack.c.l.b16 %v2787
        %v4248 = vunpack.c.l.b16 %v2788
        %v4249 = vunpack.c.l.b16 %v2789
        %v4250 = vunpack.c.l.b16 %v2790
        %v4251 = vunpack.c.l.b16 %v2791
        %v4252 = vunpack.c.l.b16 %v2792
        %v4253 = vunpack.c.l.b16 %v2793
        %v4254 = vunpack.c.l.b16 %v2794
        %v4255 = vunpack.c.l.b16 %v2795
        %v4256 = vunpack.c.l.b16 %v2796
        %v4257 = vunpack.c.l.b16 %v2797
        %v4258 = vunpack.c.l.b16 %v2798
        %v4259 = vunpack.c.l.b16 %v2799
        %v4260 = vunpack.c.l.b16 %v2800
        %v4261 = vunpack.c.l.b16 %v2801
        %v4262 = vunpack.c.l.b16 %v2802
        %v4263 = vunpack.c.l.b16 %v2803
        %v4264 = vunpack.c.l.b16 %v2804
        %v4265 = vunpack.c.l.b16 %v2805
        %v4266 = vunpack.c.l.b16 %v2806
        %v4267 = vunpack.c.l.b16 %v2807
        %v4268 = vunpack.c.l.b16 %v2808
        %v4269 = vunpack.c.l.b16 %v2809
        %v4270 = vunpack.c.l.b16 %v2810
        %v4271 = vunpack.c.l.b16 %v2811
        %v4272 = vpack.c.b16 %v4145, %v4144
        %v4273 = vpack.c.b16 %v4147, %v4146
        %v4274 = vpack.c.b16 %v4149, %v4148
        %v4275 = vpack.c.b16 %v4151, %v4150
        %v4276 = vpack.c.b16 %v4153, %v4152
        %v4277 = vpack.c.b16 %v4155, %v4154
        %v4278 = vpack.c.b16 %v4157, %v4156
        %v4279 = vpack.c.b16 %v4159, %v4158
        %v4280 = vpack.c.b16 %v4161, %v4160
        %v4281 = vpack.c.b16 %v4163, %v4162
        %v4282 = vpack.c.b16 %v4165, %v4164
        %v4283 = vpack.c.b16 %v4167, %v4166
        %v4284 = vpack.c.b16 %v4169, %v4168
        %v4285 = vpack.c.b16 %v4171, %v4170
        %v4286 = vpack.c.b16 %v4173, %v4172
        %v4287 = vpack.c.b16 %v4175, %v4174
        %v4288 = vpack.c.b16 %v4177, %v4176
        %v4289 = vpack.c.b16 %v4179, %v4178
        %v4290 = vpack.c.b16 %v4181, %v4180
        %v4291 = vpack.c.b16 %v4183, %v4182
        %v4292 = vpack.c.b16 %v4185, %v4184
        %v4293 = vpack.c.b16 %v4187, %v4186
        %v4294 = vpack.c.b16 %v4189, %v4188
        %v4295 = vpack.c.b16 %v4191, %v4190
        %v4296 = vpack.c.b16 %v4193, %v4192
        %v4297 = vpack.c.b16 %v4195, %v4194
        %v4298 = vpack.c.b16 %v4197, %v4196
        %v4299 = vpack.c.b16 %v4199, %v4198
        %v4300 = vpack.c.b16 %v4201, %v4200
        %v4301 = vpack.c.b16 %v4203, %v4202
        %v4302 = vpack.c.b16 %v4205, %v4204
        %v4303 = vpack.c.b16 %v4207, %v4206
        %v4304 = vpack.c.b16 %v4209, %v4208
        %v4305 = vpack.c.b16 %v4211, %v4210
        %v4306 = vpack.c.b16 %v4213, %v4212
        %v4307 = vpack.c.b16 %v4215, %v4214
        %v4308 = vpack.c.b16 %v4217, %v4216
        %v4309 = vpack.c.b16 %v4219, %v4218
        %v4310 = vpack.c.b16 %v4221, %v4220
        %v4311 = vpack.c.b16 %v4223, %v4222
        %v4312 = vpack.c.b16 %v4225, %v4224
        %v4313 = vpack.c.b16 %v4227, %v4226
        %v4314 = vpack.c.b16 %v4229, %v4228
        %v4315 = vpack.c.b16 %v4231, %v4230
        %v4316 = vpack.c.b16 %v4233, %v4232
        %v4317 = vpack.c.b16 %v4235, %v4234
        %v4318 = vpack.c.b16 %v4237, %v4236
        %v4319 = vpack.c.b16 %v4239, %v4238
        %v4320 = vpack.c.b16 %v4241, %v4240
        %v4321 = vpack.c.b16 %v4243, %v4242
        %v4322 = vpack.c.b16 %v4245, %v4244
        %v4323 = vpack.c.b16 %v4247, %v4246
        %v4324 = vpack.c.b16 %v4249, %v4248
        %v4325 = vpack.c.b16 %v4251, %v4250
        %v4326 = vpack.c.b16 %v4253, %v4252
        %v4327 = vpack.c.b16 %v4255, %v4254
        %v4328 = vpack.c.b16 %v4257, %v4256
        %v4329 = vpack.c.b16 %v4259, %v4258
        %v4330 = vpack.c.b16 %v4261, %v4260
        %v4331 = vpack.c.b16 %v4263, %v4262
        %v4332 = vpack.c.b16 %v4265, %v4264
        %v4333 = vpack.c.b16 %v4267, %v4266
        %v4334 = vpack.c.b16 %v4269, %v4268
        %v4335 = vpack.c.b16 %v4271, %v4270
        %v4338 = vunpack.c.l.b16 %v2812
        %v4339 = vunpack.c.l.b16 %v2813
        %v4340 = vpack.c.b16 %v4339, %v4338
        %v4342 = vsel %vm3271, %v4272, 0
        %v4345 = vsel %vm3271, %v4273, 0
        %v4348 = vsel %vm3271, %v4274, 0
        %v4351 = vsel %vm3271, %v4275, 0
        %v4354 = vsel %vm3271, %v4276, 0
        %v4357 = vsel %vm3271, %v4277, 0
        %v4360 = vsel %vm3271, %v4278, 0
        %v4363 = vsel %vm3271, %v4279, 0
        %v4366 = vsel %vm3271, %v4280, 0
        %v4369 = vsel %vm3271, %v4281, 0
        %v4372 = vsel %vm3271, %v4282, 0
        %v4375 = vsel %vm3271, %v4283, 0
        %v4378 = vsel %vm3271, %v4284, 0
        %v4381 = vsel %vm3271, %v4285, 0
        %v4384 = vsel %vm3271, %v4286, 0
        %v4387 = vsel %vm3271, %v4287, 0
        %v4390 = vsel %vm3271, %v4288, 0
        %v4393 = vsel %vm3271, %v4289, 0
        %v4396 = vsel %vm3271, %v4290, 0
        %v4399 = vsel %vm3271, %v4291, 0
        %v4402 = vsel %vm3271, %v4292, 0
        %v4405 = vsel %vm3271, %v4293, 0
        %v4408 = vsel %vm3271, %v4294, 0
        %v4411 = vsel %vm3271, %v4295, 0
        %v4414 = vsel %vm3271, %v4296, 0
        %v4417 = vsel %vm3271, %v4297, 0
        %v4420 = vsel %vm3271, %v4298, 0
        %v4423 = vsel %vm3271, %v4299, 0
        %v4426 = vsel %vm3271, %v4300, 0
        %v4429 = vsel %vm3271, %v4301, 0
        %v4432 = vsel %vm3271, %v4302, 0
        %v4435 = vsel %vm3271, %v4303, 0
        %v4438 = vsel %vm3271, %v4304, 0
        %v4441 = vsel %vm3271, %v4305, 0
        %v4444 = vsel %vm3271, %v4306, 0
        %v4447 = vsel %vm3271, %v4307, 0
        %v4450 = vsel %vm3271, %v4308, 0
        %v4453 = vsel %vm3271, %v4309, 0
        %v4456 = vsel %vm3271, %v4310, 0
        %v4459 = vsel %vm3271, %v4311, 0
        %v4462 = vsel %vm3271, %v4312, 0
        %v4465 = vsel %vm3271, %v4313, 0
        %v4468 = vsel %vm3271, %v4314, 0
        %v4471 = vsel %vm3271, %v4315, 0
        %v4474 = vsel %vm3271, %v4316, 0
        %v4477 = vsel %vm3271, %v4317, 0
        %v4480 = vsel %vm3271, %v4318, 0
        %v4483 = vsel %vm3271, %v4319, 0
        %v4486 = vsel %vm3271, %v4320, 0
        %v4489 = vsel %vm3271, %v4321, 0
        %v4492 = vsel %vm3271, %v4322, 0
        %v4495 = vsel %vm3271, %v4323, 0
        %v4498 = vsel %vm3271, %v4324, 0
        %v4501 = vsel %vm3271, %v4325, 0
        %v4504 = vsel %vm3271, %v4326, 0
        %v4507 = vsel %vm3271, %v4327, 0
        %v4510 = vsel %vm3271, %v4328, 0
        %v4513 = vsel %vm3271, %v4329, 0
        %v4516 = vsel %vm3271, %v4330, 0
        %v4519 = vsel %vm3271, %v4331, 0
        %v4522 = vsel %vm3271, %v4332, 0
        %v4525 = vsel %vm3271, %v4333, 0
        %v4528 = vsel %vm3271, %v4334, 0
        %v4531 = vsel %vm3271, %v4335, 0
        %v4534 = vand.u32 %v4340, %v3467
        %4536 = vmatprep.subr.bf16.mxu0 0
        %4537 = vmatpush1.bf16.msra.mxu0 0
        %4538 = vmatprep.subr.bf16.mxu0 0
        %4539 = vmatpush1.bf16.msra.mxu0 0
        %4540 = vmatprep.subr.bf16.mxu0 0
        %4541 = vmatpush1.bf16.msra.mxu0 0
        %4542 = vmatprep.subr.bf16.mxu0 0
        %4543 = vmatpush1.bf16.msra.mxu0 0
        %4544 = vmatprep.subr.bf16.mxu0 0
        %4545 = vmatpush1.bf16.msra.mxu0 0
        %4546 = vmatprep.subr.bf16.mxu0 0
        %4547 = vmatpush1.bf16.msra.mxu0 0
        %4548 = vmatprep.subr.bf16.mxu0 0
        %4549 = vmatpush1.bf16.msra.mxu0 0
        %4550 = vmatprep.subr.bf16.mxu0 0
        %4551 = vmatpush1.bf16.msra.mxu0 %v4534
        %4552 = vmatprep.subr.bf16.mxu0 0
        %4553 = vmatpush2.bf16.msra.mxu0 0
        %4554 = vmatprep.subr.bf16.mxu0 0
        %4555 = vmatpush2.bf16.msra.mxu0 0
        %4556 = vmatprep.subr.bf16.mxu0 0
        %4557 = vmatpush2.bf16.msra.mxu0 0
        %4558 = vmatprep.subr.bf16.mxu0 0
        %4559 = vmatpush2.bf16.msra.mxu0 0
        %4560 = vmatprep.subr.bf16.mxu0 0
        %4561 = vmatpush2.bf16.msra.mxu0 0
        %4562 = vmatprep.subr.bf16.mxu0 0
        %4563 = vmatpush2.bf16.msra.mxu0 0
        %4564 = vmatprep.subr.bf16.mxu0 0
        %4565 = vmatpush2.bf16.msra.mxu0 0
        %4566 = vmatprep.subr.bf16.mxu0 0
        %4567 = vmatpush2.bf16.msra.mxu0 0
        %4568 = vmatprep.mubr.bf16.mxu0 0
        %4569 = vmatmul.mubr.bf16.gmra.mxu0 %v4342
        %v4570 = vpop.f32.mrf.mxu0
        %v4571 = vadd.f32 %v3506, %v4570
        %v4572 = vpop.f32.mrf.mxu0
        %v4573 = vpop.f32.mrf.mxu0
        %v4574 = vadd.f32 %v3509, %v4573
        %v4575 = vpop.f32.mrf.mxu0
        %4576 = vmatprep.mubr.bf16.mxu0 0
        %4577 = vmatmul.mubr.bf16.gmra.mxu0 %v4345
        %v4578 = vpop.f32.mrf.mxu0
        %v4579 = vadd.f32 %v3514, %v4578
        %v4580 = vpop.f32.mrf.mxu0
        %v4581 = vpop.f32.mrf.mxu0
        %v4582 = vadd.f32 %v3517, %v4581
        %v4583 = vpop.f32.mrf.mxu0
        %4584 = vmatprep.mubr.bf16.mxu0 0
        %4585 = vmatmul.mubr.bf16.gmra.mxu0 %v4348
        %v4586 = vpop.f32.mrf.mxu0
        %v4587 = vadd.f32 %v3522, %v4586
        %v4588 = vpop.f32.mrf.mxu0
        %v4589 = vpop.f32.mrf.mxu0
        %v4590 = vadd.f32 %v3525, %v4589
        %v4591 = vpop.f32.mrf.mxu0
        %4592 = vmatprep.mubr.bf16.mxu0 0
        %4593 = vmatmul.mubr.bf16.gmra.mxu0 %v4351
        %v4594 = vpop.f32.mrf.mxu0
        %v4595 = vadd.f32 %v3530, %v4594
        %v4596 = vpop.f32.mrf.mxu0
        %v4597 = vpop.f32.mrf.mxu0
        %v4598 = vadd.f32 %v3533, %v4597
        %v4599 = vpop.f32.mrf.mxu0
        %4600 = vmatprep.mubr.bf16.mxu0 0
        %4601 = vmatmul.mubr.bf16.gmra.mxu0 %v4354
        %v4602 = vpop.f32.mrf.mxu0
        %v4603 = vadd.f32 %v3538, %v4602
        %v4604 = vpop.f32.mrf.mxu0
        %v4605 = vpop.f32.mrf.mxu0
        %v4606 = vadd.f32 %v3541, %v4605
        %v4607 = vpop.f32.mrf.mxu0
        %4608 = vmatprep.mubr.bf16.mxu0 0
        %4609 = vmatmul.mubr.bf16.gmra.mxu0 %v4357
        %v4610 = vpop.f32.mrf.mxu0
        %v4611 = vadd.f32 %v3546, %v4610
        %v4612 = vpop.f32.mrf.mxu0
        %v4613 = vpop.f32.mrf.mxu0
        %v4614 = vadd.f32 %v3549, %v4613
        %v4615 = vpop.f32.mrf.mxu0
        %4616 = vmatprep.mubr.bf16.mxu0 0
        %4617 = vmatmul.mubr.bf16.gmra.mxu0 %v4360
        %v4618 = vpop.f32.mrf.mxu0
        %v4619 = vadd.f32 %v3554, %v4618
        %v4620 = vpop.f32.mrf.mxu0
        %v4621 = vpop.f32.mrf.mxu0
        %v4622 = vadd.f32 %v3557, %v4621
        %v4623 = vpop.f32.mrf.mxu0
        %4624 = vmatprep.mubr.bf16.mxu0 0
        %4625 = vmatmul.mubr.bf16.gmra.mxu0 %v4363
        %v4626 = vpop.f32.mrf.mxu0
        %v4627 = vadd.f32 %v3562, %v4626
        %v4628 = vpop.f32.mrf.mxu0
        %v4629 = vpop.f32.mrf.mxu0
        %v4630 = vadd.f32 %v3565, %v4629
        %v4631 = vpop.f32.mrf.mxu0
        %4632 = vmatprep.mubr.bf16.mxu0 0
        %4633 = vmatmul.mubr.bf16.gmra.mxu0 %v4366
        %v4634 = vpop.f32.mrf.mxu0
        %v4635 = vadd.f32 %v3570, %v4634
        %v4636 = vpop.f32.mrf.mxu0
        %v4637 = vpop.f32.mrf.mxu0
        %v4638 = vadd.f32 %v3573, %v4637
        %v4639 = vpop.f32.mrf.mxu0
        %4640 = vmatprep.mubr.bf16.mxu0 0
        %4641 = vmatmul.mubr.bf16.gmra.mxu0 %v4369
        %v4642 = vpop.f32.mrf.mxu0
        %v4643 = vadd.f32 %v3578, %v4642
        %v4644 = vpop.f32.mrf.mxu0
        %v4645 = vpop.f32.mrf.mxu0
        %v4646 = vadd.f32 %v3581, %v4645
        %v4647 = vpop.f32.mrf.mxu0
        %4648 = vmatprep.mubr.bf16.mxu0 0
        %4649 = vmatmul.mubr.bf16.gmra.mxu0 %v4372
        %v4650 = vpop.f32.mrf.mxu0
        %v4651 = vadd.f32 %v3586, %v4650
        %v4652 = vpop.f32.mrf.mxu0
        %v4653 = vpop.f32.mrf.mxu0
        %v4654 = vadd.f32 %v3589, %v4653
        %v4655 = vpop.f32.mrf.mxu0
        %4656 = vmatprep.mubr.bf16.mxu0 0
        %4657 = vmatmul.mubr.bf16.gmra.mxu0 %v4375
        %v4658 = vpop.f32.mrf.mxu0
        %v4659 = vadd.f32 %v3594, %v4658
        %v4660 = vpop.f32.mrf.mxu0
        %v4661 = vpop.f32.mrf.mxu0
        %v4662 = vadd.f32 %v3597, %v4661
        %v4663 = vpop.f32.mrf.mxu0
        %4664 = vmatprep.mubr.bf16.mxu0 0
        %4665 = vmatmul.mubr.bf16.gmra.mxu0 %v4378
        %v4666 = vpop.f32.mrf.mxu0
        %v4667 = vadd.f32 %v3602, %v4666
        %v4668 = vpop.f32.mrf.mxu0
        %v4669 = vpop.f32.mrf.mxu0
        %v4670 = vadd.f32 %v3605, %v4669
        %v4671 = vpop.f32.mrf.mxu0
        %4672 = vmatprep.mubr.bf16.mxu0 0
        %4673 = vmatmul.mubr.bf16.gmra.mxu0 %v4381
        %v4674 = vpop.f32.mrf.mxu0
        %v4675 = vadd.f32 %v3610, %v4674
        %v4676 = vpop.f32.mrf.mxu0
        %v4677 = vpop.f32.mrf.mxu0
        %v4678 = vadd.f32 %v3613, %v4677
        %v4679 = vpop.f32.mrf.mxu0
        %4680 = vmatprep.mubr.bf16.mxu0 0
        %4681 = vmatmul.mubr.bf16.gmra.mxu0 %v4384
        %v4682 = vpop.f32.mrf.mxu0
        %v4683 = vadd.f32 %v3618, %v4682
        %v4684 = vpop.f32.mrf.mxu0
        %v4685 = vpop.f32.mrf.mxu0
        %v4686 = vadd.f32 %v3621, %v4685
        %v4687 = vpop.f32.mrf.mxu0
        %4688 = vmatprep.mubr.bf16.mxu0 0
        %4689 = vmatmul.mubr.bf16.gmra.mxu0 %v4387
        %v4690 = vpop.f32.mrf.mxu0
        %v4691 = vadd.f32 %v3626, %v4690
        %v4692 = vpop.f32.mrf.mxu0
        %v4693 = vpop.f32.mrf.mxu0
        %v4694 = vadd.f32 %v3629, %v4693
        %v4695 = vpop.f32.mrf.mxu0
        %4696 = vmatprep.mubr.bf16.mxu0 0
        %4697 = vmatmul.mubr.bf16.gmra.mxu0 %v4390
        %v4698 = vpop.f32.mrf.mxu0
        %v4699 = vadd.f32 %v3634, %v4698
        %v4700 = vpop.f32.mrf.mxu0
        %v4701 = vpop.f32.mrf.mxu0
        %v4702 = vadd.f32 %v3637, %v4701
        %v4703 = vpop.f32.mrf.mxu0
        %4704 = vmatprep.mubr.bf16.mxu0 0
        %4705 = vmatmul.mubr.bf16.gmra.mxu0 %v4393
        %v4706 = vpop.f32.mrf.mxu0
        %v4707 = vadd.f32 %v3642, %v4706
        %v4708 = vpop.f32.mrf.mxu0
        %v4709 = vpop.f32.mrf.mxu0
        %v4710 = vadd.f32 %v3645, %v4709
        %v4711 = vpop.f32.mrf.mxu0
        %4712 = vmatprep.mubr.bf16.mxu0 0
        %4713 = vmatmul.mubr.bf16.gmra.mxu0 %v4396
        %v4714 = vpop.f32.mrf.mxu0
        %v4715 = vadd.f32 %v3650, %v4714
        %v4716 = vpop.f32.mrf.mxu0
        %v4717 = vpop.f32.mrf.mxu0
        %v4718 = vadd.f32 %v3653, %v4717
        %v4719 = vpop.f32.mrf.mxu0
        %4720 = vmatprep.mubr.bf16.mxu0 0
        %4721 = vmatmul.mubr.bf16.gmra.mxu0 %v4399
        %v4722 = vpop.f32.mrf.mxu0
        %v4723 = vadd.f32 %v3658, %v4722
        %v4724 = vpop.f32.mrf.mxu0
        %v4725 = vpop.f32.mrf.mxu0
        %v4726 = vadd.f32 %v3661, %v4725
        %v4727 = vpop.f32.mrf.mxu0
        %4728 = vmatprep.mubr.bf16.mxu0 0
        %4729 = vmatmul.mubr.bf16.gmra.mxu0 %v4402
        %v4730 = vpop.f32.mrf.mxu0
        %v4731 = vadd.f32 %v3666, %v4730
        %v4732 = vpop.f32.mrf.mxu0
        %v4733 = vpop.f32.mrf.mxu0
        %v4734 = vadd.f32 %v3669, %v4733
        %v4735 = vpop.f32.mrf.mxu0
        %4736 = vmatprep.mubr.bf16.mxu0 0
        %4737 = vmatmul.mubr.bf16.gmra.mxu0 %v4405
        %v4738 = vpop.f32.mrf.mxu0
        %v4739 = vadd.f32 %v3674, %v4738
        %v4740 = vpop.f32.mrf.mxu0
        %v4741 = vpop.f32.mrf.mxu0
        %v4742 = vadd.f32 %v3677, %v4741
        %v4743 = vpop.f32.mrf.mxu0
        %4744 = vmatprep.mubr.bf16.mxu0 0
        %4745 = vmatmul.mubr.bf16.gmra.mxu0 %v4408
        %v4746 = vpop.f32.mrf.mxu0
        %v4747 = vadd.f32 %v3682, %v4746
        %v4748 = vpop.f32.mrf.mxu0
        %v4749 = vpop.f32.mrf.mxu0
        %v4750 = vadd.f32 %v3685, %v4749
        %v4751 = vpop.f32.mrf.mxu0
        %4752 = vmatprep.mubr.bf16.mxu0 0
        %4753 = vmatmul.mubr.bf16.gmra.mxu0 %v4411
        %v4754 = vpop.f32.mrf.mxu0
        %v4755 = vadd.f32 %v3690, %v4754
        %v4756 = vpop.f32.mrf.mxu0
        %v4757 = vpop.f32.mrf.mxu0
        %v4758 = vadd.f32 %v3693, %v4757
        %v4759 = vpop.f32.mrf.mxu0
        %4760 = vmatprep.mubr.bf16.mxu0 0
        %4761 = vmatmul.mubr.bf16.gmra.mxu0 %v4414
        %v4762 = vpop.f32.mrf.mxu0
        %v4763 = vadd.f32 %v3698, %v4762
        %v4764 = vpop.f32.mrf.mxu0
        %v4765 = vpop.f32.mrf.mxu0
        %v4766 = vadd.f32 %v3701, %v4765
        %v4767 = vpop.f32.mrf.mxu0
        %4768 = vmatprep.mubr.bf16.mxu0 0
        %4769 = vmatmul.mubr.bf16.gmra.mxu0 %v4417
        %v4770 = vpop.f32.mrf.mxu0
        %v4771 = vadd.f32 %v3706, %v4770
        %v4772 = vpop.f32.mrf.mxu0
        %v4773 = vpop.f32.mrf.mxu0
        %v4774 = vadd.f32 %v3709, %v4773
        %v4775 = vpop.f32.mrf.mxu0
        %4776 = vmatprep.mubr.bf16.mxu0 0
        %4777 = vmatmul.mubr.bf16.gmra.mxu0 %v4420
        %v4778 = vpop.f32.mrf.mxu0
        %v4779 = vadd.f32 %v3714, %v4778
        %v4780 = vpop.f32.mrf.mxu0
        %v4781 = vpop.f32.mrf.mxu0
        %v4782 = vadd.f32 %v3717, %v4781
        %v4783 = vpop.f32.mrf.mxu0
        %4784 = vmatprep.mubr.bf16.mxu0 0
        %4785 = vmatmul.mubr.bf16.gmra.mxu0 %v4423
        %v4786 = vpop.f32.mrf.mxu0
        %v4787 = vadd.f32 %v3722, %v4786
        %v4788 = vpop.f32.mrf.mxu0
        %v4789 = vpop.f32.mrf.mxu0
        %v4790 = vadd.f32 %v3725, %v4789
        %v4791 = vpop.f32.mrf.mxu0
        %4792 = vmatprep.mubr.bf16.mxu0 0
        %4793 = vmatmul.mubr.bf16.gmra.mxu0 %v4426
        %v4794 = vpop.f32.mrf.mxu0
        %v4795 = vadd.f32 %v3730, %v4794
        %v4796 = vpop.f32.mrf.mxu0
        %v4797 = vpop.f32.mrf.mxu0
        %v4798 = vadd.f32 %v3733, %v4797
        %v4799 = vpop.f32.mrf.mxu0
        %4800 = vmatprep.mubr.bf16.mxu0 0
        %4801 = vmatmul.mubr.bf16.gmra.mxu0 %v4429
        %v4802 = vpop.f32.mrf.mxu0
        %v4803 = vadd.f32 %v3738, %v4802
        %v4804 = vpop.f32.mrf.mxu0
        %v4805 = vpop.f32.mrf.mxu0
        %v4806 = vadd.f32 %v3741, %v4805
        %v4807 = vpop.f32.mrf.mxu0
        %4808 = vmatprep.mubr.bf16.mxu0 0
        %4809 = vmatmul.mubr.bf16.gmra.mxu0 %v4432
        %v4810 = vpop.f32.mrf.mxu0
        %v4811 = vadd.f32 %v3746, %v4810
        %v4812 = vpop.f32.mrf.mxu0
        %v4813 = vpop.f32.mrf.mxu0
        %v4814 = vadd.f32 %v3749, %v4813
        %v4815 = vpop.f32.mrf.mxu0
        %4816 = vmatprep.mubr.bf16.mxu0 0
        %4817 = vmatmul.mubr.bf16.gmra.mxu0 %v4435
        %v4818 = vpop.f32.mrf.mxu0
        %v4819 = vadd.f32 %v3754, %v4818
        %v4820 = vpop.f32.mrf.mxu0
        %v4821 = vpop.f32.mrf.mxu0
        %v4822 = vadd.f32 %v3757, %v4821
        %v4823 = vpop.f32.mrf.mxu0
        %4824 = vmatprep.mubr.bf16.mxu0 0
        %4825 = vmatmul.mubr.bf16.gmra.mxu0 %v4438
        %v4826 = vpop.f32.mrf.mxu0
        %v4827 = vadd.f32 %v3762, %v4826
        %v4828 = vpop.f32.mrf.mxu0
        %v4829 = vpop.f32.mrf.mxu0
        %v4830 = vadd.f32 %v3765, %v4829
        %v4831 = vpop.f32.mrf.mxu0
        %4832 = vmatprep.mubr.bf16.mxu0 0
        %4833 = vmatmul.mubr.bf16.gmra.mxu0 %v4441
        %v4834 = vpop.f32.mrf.mxu0
        %v4835 = vadd.f32 %v3770, %v4834
        %v4836 = vpop.f32.mrf.mxu0
        %v4837 = vpop.f32.mrf.mxu0
        %v4838 = vadd.f32 %v3773, %v4837
        %v4839 = vpop.f32.mrf.mxu0
        %4840 = vmatprep.mubr.bf16.mxu0 0
        %4841 = vmatmul.mubr.bf16.gmra.mxu0 %v4444
        %v4842 = vpop.f32.mrf.mxu0
        %v4843 = vadd.f32 %v3778, %v4842
        %v4844 = vpop.f32.mrf.mxu0
        %v4845 = vpop.f32.mrf.mxu0
        %v4846 = vadd.f32 %v3781, %v4845
        %v4847 = vpop.f32.mrf.mxu0
        %4848 = vmatprep.mubr.bf16.mxu0 0
        %4849 = vmatmul.mubr.bf16.gmra.mxu0 %v4447
        %v4850 = vpop.f32.mrf.mxu0
        %v4851 = vadd.f32 %v3786, %v4850
        %v4852 = vpop.f32.mrf.mxu0
        %v4853 = vpop.f32.mrf.mxu0
        %v4854 = vadd.f32 %v3789, %v4853
        %v4855 = vpop.f32.mrf.mxu0
        %4856 = vmatprep.mubr.bf16.mxu0 0
        %4857 = vmatmul.mubr.bf16.gmra.mxu0 %v4450
        %v4858 = vpop.f32.mrf.mxu0
        %v4859 = vadd.f32 %v3794, %v4858
        %v4860 = vpop.f32.mrf.mxu0
        %v4861 = vpop.f32.mrf.mxu0
        %v4862 = vadd.f32 %v3797, %v4861
        %v4863 = vpop.f32.mrf.mxu0
        %4864 = vmatprep.mubr.bf16.mxu0 0
        %4865 = vmatmul.mubr.bf16.gmra.mxu0 %v4453
        %v4866 = vpop.f32.mrf.mxu0
        %v4867 = vadd.f32 %v3802, %v4866
        %v4868 = vpop.f32.mrf.mxu0
        %v4869 = vpop.f32.mrf.mxu0
        %v4870 = vadd.f32 %v3805, %v4869
        %v4871 = vpop.f32.mrf.mxu0
        %4872 = vmatprep.mubr.bf16.mxu0 0
        %4873 = vmatmul.mubr.bf16.gmra.mxu0 %v4456
        %v4874 = vpop.f32.mrf.mxu0
        %v4875 = vadd.f32 %v3810, %v4874
        %v4876 = vpop.f32.mrf.mxu0
        %v4877 = vpop.f32.mrf.mxu0
        %v4878 = vadd.f32 %v3813, %v4877
        %v4879 = vpop.f32.mrf.mxu0
        %4880 = vmatprep.mubr.bf16.mxu0 0
        %4881 = vmatmul.mubr.bf16.gmra.mxu0 %v4459
        %v4882 = vpop.f32.mrf.mxu0
        %v4883 = vadd.f32 %v3818, %v4882
        %v4884 = vpop.f32.mrf.mxu0
        %v4885 = vpop.f32.mrf.mxu0
        %v4886 = vadd.f32 %v3821, %v4885
        %v4887 = vpop.f32.mrf.mxu0
        %4888 = vmatprep.mubr.bf16.mxu0 0
        %4889 = vmatmul.mubr.bf16.gmra.mxu0 %v4462
        %v4890 = vpop.f32.mrf.mxu0
        %v4891 = vadd.f32 %v3826, %v4890
        %v4892 = vpop.f32.mrf.mxu0
        %v4893 = vpop.f32.mrf.mxu0
        %v4894 = vadd.f32 %v3829, %v4893
        %v4895 = vpop.f32.mrf.mxu0
        %4896 = vmatprep.mubr.bf16.mxu0 0
        %4897 = vmatmul.mubr.bf16.gmra.mxu0 %v4465
        %v4898 = vpop.f32.mrf.mxu0
        %v4899 = vadd.f32 %v3834, %v4898
        %v4900 = vpop.f32.mrf.mxu0
        %v4901 = vpop.f32.mrf.mxu0
        %v4902 = vadd.f32 %v3837, %v4901
        %v4903 = vpop.f32.mrf.mxu0
        %4904 = vmatprep.mubr.bf16.mxu0 0
        %4905 = vmatmul.mubr.bf16.gmra.mxu0 %v4468
        %v4906 = vpop.f32.mrf.mxu0
        %v4907 = vadd.f32 %v3842, %v4906
        %v4908 = vpop.f32.mrf.mxu0
        %v4909 = vpop.f32.mrf.mxu0
        %v4910 = vadd.f32 %v3845, %v4909
        %v4911 = vpop.f32.mrf.mxu0
        %4912 = vmatprep.mubr.bf16.mxu0 0
        %4913 = vmatmul.mubr.bf16.gmra.mxu0 %v4471
        %v4914 = vpop.f32.mrf.mxu0
        %v4915 = vadd.f32 %v3850, %v4914
        %v4916 = vpop.f32.mrf.mxu0
        %v4917 = vpop.f32.mrf.mxu0
        %v4918 = vadd.f32 %v3853, %v4917
        %v4919 = vpop.f32.mrf.mxu0
        %4920 = vmatprep.mubr.bf16.mxu0 0
        %4921 = vmatmul.mubr.bf16.gmra.mxu0 %v4474
        %v4922 = vpop.f32.mrf.mxu0
        %v4923 = vadd.f32 %v3858, %v4922
        %v4924 = vpop.f32.mrf.mxu0
        %v4925 = vpop.f32.mrf.mxu0
        %v4926 = vadd.f32 %v3861, %v4925
        %v4927 = vpop.f32.mrf.mxu0
        %4928 = vmatprep.mubr.bf16.mxu0 0
        %4929 = vmatmul.mubr.bf16.gmra.mxu0 %v4477
        %v4930 = vpop.f32.mrf.mxu0
        %v4931 = vadd.f32 %v3866, %v4930
        %v4932 = vpop.f32.mrf.mxu0
        %v4933 = vpop.f32.mrf.mxu0
        %v4934 = vadd.f32 %v3869, %v4933
        %v4935 = vpop.f32.mrf.mxu0
        %4936 = vmatprep.mubr.bf16.mxu0 0
        %4937 = vmatmul.mubr.bf16.gmra.mxu0 %v4480
        %v4938 = vpop.f32.mrf.mxu0
        %v4939 = vadd.f32 %v3874, %v4938
        %v4940 = vpop.f32.mrf.mxu0
        %v4941 = vpop.f32.mrf.mxu0
        %v4942 = vadd.f32 %v3877, %v4941
        %v4943 = vpop.f32.mrf.mxu0
        %4944 = vmatprep.mubr.bf16.mxu0 0
        %4945 = vmatmul.mubr.bf16.gmra.mxu0 %v4483
        %v4946 = vpop.f32.mrf.mxu0
        %v4947 = vadd.f32 %v3882, %v4946
        %v4948 = vpop.f32.mrf.mxu0
        %v4949 = vpop.f32.mrf.mxu0
        %v4950 = vadd.f32 %v3885, %v4949
        %v4951 = vpop.f32.mrf.mxu0
        %4952 = vmatprep.mubr.bf16.mxu0 0
        %4953 = vmatmul.mubr.bf16.gmra.mxu0 %v4486
        %v4954 = vpop.f32.mrf.mxu0
        %v4955 = vadd.f32 %v3890, %v4954
        %v4956 = vpop.f32.mrf.mxu0
        %v4957 = vpop.f32.mrf.mxu0
        %v4958 = vadd.f32 %v3893, %v4957
        %v4959 = vpop.f32.mrf.mxu0
        %4960 = vmatprep.mubr.bf16.mxu0 0
        %4961 = vmatmul.mubr.bf16.gmra.mxu0 %v4489
        %v4962 = vpop.f32.mrf.mxu0
        %v4963 = vadd.f32 %v3898, %v4962
        %v4964 = vpop.f32.mrf.mxu0
        %v4965 = vpop.f32.mrf.mxu0
        %v4966 = vadd.f32 %v3901, %v4965
        %v4967 = vpop.f32.mrf.mxu0
        %4968 = vmatprep.mubr.bf16.mxu0 0
        %4969 = vmatmul.mubr.bf16.gmra.mxu0 %v4492
        %v4970 = vpop.f32.mrf.mxu0
        %v4971 = vadd.f32 %v3906, %v4970
        %v4972 = vpop.f32.mrf.mxu0
        %v4973 = vpop.f32.mrf.mxu0
        %v4974 = vadd.f32 %v3909, %v4973
        %v4975 = vpop.f32.mrf.mxu0
        %4976 = vmatprep.mubr.bf16.mxu0 0
        %4977 = vmatmul.mubr.bf16.gmra.mxu0 %v4495
        %v4978 = vpop.f32.mrf.mxu0
        %v4979 = vadd.f32 %v3914, %v4978
        %v4980 = vpop.f32.mrf.mxu0
        %v4981 = vpop.f32.mrf.mxu0
        %v4982 = vadd.f32 %v3917, %v4981
        %v4983 = vpop.f32.mrf.mxu0
        %4984 = vmatprep.mubr.bf16.mxu0 0
        %4985 = vmatmul.mubr.bf16.gmra.mxu0 %v4498
        %v4986 = vpop.f32.mrf.mxu0
        %v4987 = vadd.f32 %v3922, %v4986
        %v4988 = vpop.f32.mrf.mxu0
        %v4989 = vpop.f32.mrf.mxu0
        %v4990 = vadd.f32 %v3925, %v4989
        %v4991 = vpop.f32.mrf.mxu0
        %4992 = vmatprep.mubr.bf16.mxu0 0
        %4993 = vmatmul.mubr.bf16.gmra.mxu0 %v4501
        %v4994 = vpop.f32.mrf.mxu0
        %v4995 = vadd.f32 %v3930, %v4994
        %v4996 = vpop.f32.mrf.mxu0
        %v4997 = vpop.f32.mrf.mxu0
        %v4998 = vadd.f32 %v3933, %v4997
        %v4999 = vpop.f32.mrf.mxu0
        %5000 = vmatprep.mubr.bf16.mxu0 0
        %5001 = vmatmul.mubr.bf16.gmra.mxu0 %v4504
        %v5002 = vpop.f32.mrf.mxu0
        %v5003 = vadd.f32 %v3938, %v5002
        %v5004 = vpop.f32.mrf.mxu0
        %v5005 = vpop.f32.mrf.mxu0
        %v5006 = vadd.f32 %v3941, %v5005
        %v5007 = vpop.f32.mrf.mxu0
        %5008 = vmatprep.mubr.bf16.mxu0 0
        %5009 = vmatmul.mubr.bf16.gmra.mxu0 %v4507
        %v5010 = vpop.f32.mrf.mxu0
        %v5011 = vadd.f32 %v3946, %v5010
        %v5012 = vpop.f32.mrf.mxu0
        %v5013 = vpop.f32.mrf.mxu0
        %v5014 = vadd.f32 %v3949, %v5013
        %v5015 = vpop.f32.mrf.mxu0
        %5016 = vmatprep.mubr.bf16.mxu0 0
        %5017 = vmatmul.mubr.bf16.gmra.mxu0 %v4510
        %v5018 = vpop.f32.mrf.mxu0
        %v5019 = vadd.f32 %v3954, %v5018
        %v5020 = vpop.f32.mrf.mxu0
        %v5021 = vpop.f32.mrf.mxu0
        %v5022 = vadd.f32 %v3957, %v5021
        %v5023 = vpop.f32.mrf.mxu0
        %5024 = vmatprep.mubr.bf16.mxu0 0
        %5025 = vmatmul.mubr.bf16.gmra.mxu0 %v4513
        %v5026 = vpop.f32.mrf.mxu0
        %v5027 = vadd.f32 %v3962, %v5026
        %v5028 = vpop.f32.mrf.mxu0
        %v5029 = vpop.f32.mrf.mxu0
        %v5030 = vadd.f32 %v3965, %v5029
        %v5031 = vpop.f32.mrf.mxu0
        %5032 = vmatprep.mubr.bf16.mxu0 0
        %5033 = vmatmul.mubr.bf16.gmra.mxu0 %v4516
        %v5034 = vpop.f32.mrf.mxu0
        %v5035 = vadd.f32 %v3970, %v5034
        %v5036 = vpop.f32.mrf.mxu0
        %v5037 = vpop.f32.mrf.mxu0
        %v5038 = vadd.f32 %v3973, %v5037
        %v5039 = vpop.f32.mrf.mxu0
        %5040 = vmatprep.mubr.bf16.mxu0 0
        %5041 = vmatmul.mubr.bf16.gmra.mxu0 %v4519
        %v5042 = vpop.f32.mrf.mxu0
        %v5043 = vadd.f32 %v3978, %v5042
        %v5044 = vpop.f32.mrf.mxu0
        %v5045 = vpop.f32.mrf.mxu0
        %v5046 = vadd.f32 %v3981, %v5045
        %v5047 = vpop.f32.mrf.mxu0
        %5048 = vmatprep.mubr.bf16.mxu0 0
        %5049 = vmatmul.mubr.bf16.gmra.mxu0 %v4522
        %v5050 = vpop.f32.mrf.mxu0
        %v5051 = vadd.f32 %v3986, %v5050
        %v5052 = vpop.f32.mrf.mxu0
        %v5053 = vpop.f32.mrf.mxu0
        %v5054 = vadd.f32 %v3989, %v5053
        %v5055 = vpop.f32.mrf.mxu0
        %5056 = vmatprep.mubr.bf16.mxu0 0
        %5057 = vmatmul.mubr.bf16.gmra.mxu0 %v4525
        %v5058 = vpop.f32.mrf.mxu0
        %v5059 = vadd.f32 %v3994, %v5058
        %v5060 = vpop.f32.mrf.mxu0
        %v5061 = vpop.f32.mrf.mxu0
        %v5062 = vadd.f32 %v3997, %v5061
        %v5063 = vpop.f32.mrf.mxu0
        %5064 = vmatprep.mubr.bf16.mxu0 0
        %5065 = vmatmul.mubr.bf16.gmra.mxu0 %v4528
        %v5066 = vpop.f32.mrf.mxu0
        %v5067 = vadd.f32 %v4002, %v5066
        %v5068 = vpop.f32.mrf.mxu0
        %v5069 = vpop.f32.mrf.mxu0
        %v5070 = vadd.f32 %v4005, %v5069
        %v5071 = vpop.f32.mrf.mxu0
        %5072 = vmatprep.mubr.bf16.mxu0 0
        %5073 = vmatmul.mubr.bf16.gmra.mxu0 %v4531
        %v5074 = vpop.f32.mrf.mxu0
        %v5075 = vadd.f32 %v4010, %v5074
        %v5076 = vpop.f32.mrf.mxu0
        %v5077 = vpop.f32.mrf.mxu0
        %v5078 = vadd.f32 %v4013, %v5077
        %v5079 = vpop.f32.mrf.mxu0
        %5080 = vdwg.mxu0
        %s5081 = scalar_lea.vmem [#allocation2], 32
        %v5082 = vld [vmem:[%s5081] sm:$0xf]
        %v5083 = vld [vmem:[%s5081 + $0x4] sm:$0xf]
        %v5084 = vld [vmem:[%s5081 + $0x8] sm:$0xf]
        %v5085 = vld [vmem:[%s5081 + $0xc] sm:$0xf]
        %v5086 = vld [vmem:[%s5081 + $0x10] sm:$0xf]
        %v5087 = vld [vmem:[%s5081 + $0x14] sm:$0xf]
        %v5088 = vld [vmem:[%s5081 + $0x18] sm:$0xf]
        %v5089 = vld [vmem:[%s5081 + $0x1c] sm:$0xf]
        %v5090 = vld [vmem:[%s5081 + $0x20] sm:$0xf]
        %v5091 = vld [vmem:[%s5081 + $0x24] sm:$0xf]
        %v5092 = vld [vmem:[%s5081 + $0x28] sm:$0xf]
        %v5093 = vld [vmem:[%s5081 + $0x2c] sm:$0xf]
        %v5094 = vld [vmem:[%s5081 + $0x30] sm:$0xf]
        %v5095 = vld [vmem:[%s5081 + $0x34] sm:$0xf]
        %v5096 = vld [vmem:[%s5081 + $0x38] sm:$0xf]
        %v5097 = vld [vmem:[%s5081 + $0x3c] sm:$0xf]
        %v5098 = vld [vmem:[%s5081 + $0x40] sm:$0xf]
        %v5099 = vld [vmem:[%s5081 + $0x44] sm:$0xf]
        %v5100 = vld [vmem:[%s5081 + $0x48] sm:$0xf]
        %v5101 = vld [vmem:[%s5081 + $0x4c] sm:$0xf]
        %v5102 = vld [vmem:[%s5081 + $0x50] sm:$0xf]
        %v5103 = vld [vmem:[%s5081 + $0x54] sm:$0xf]
        %v5104 = vld [vmem:[%s5081 + $0x58] sm:$0xf]
        %v5105 = vld [vmem:[%s5081 + $0x5c] sm:$0xf]
        %v5106 = vld [vmem:[%s5081 + $0x60] sm:$0xf]
        %v5107 = vld [vmem:[%s5081 + $0x64] sm:$0xf]
        %v5108 = vld [vmem:[%s5081 + $0x68] sm:$0xf]
        %v5109 = vld [vmem:[%s5081 + $0x6c] sm:$0xf]
        %v5110 = vld [vmem:[%s5081 + $0x70] sm:$0xf]
        %v5111 = vld [vmem:[%s5081 + $0x74] sm:$0xf]
        %v5112 = vld [vmem:[%s5081 + $0x78] sm:$0xf]
        %v5113 = vld [vmem:[%s5081 + $0x7c] sm:$0xf]
        %v5114 = vld [vmem:[%s5081 + $0x80] sm:$0xf]
        %v5115 = vld [vmem:[%s5081 + $0x84] sm:$0xf]
        %v5116 = vld [vmem:[%s5081 + $0x88] sm:$0xf]
        %v5117 = vld [vmem:[%s5081 + $0x8c] sm:$0xf]
        %v5118 = vld [vmem:[%s5081 + $0x90] sm:$0xf]
        %v5119 = vld [vmem:[%s5081 + $0x94] sm:$0xf]
        %v5120 = vld [vmem:[%s5081 + $0x98] sm:$0xf]
        %v5121 = vld [vmem:[%s5081 + $0x9c] sm:$0xf]
        %v5122 = vld [vmem:[%s5081 + $0xa0] sm:$0xf]
        %v5123 = vld [vmem:[%s5081 + $0xa4] sm:$0xf]
        %v5124 = vld [vmem:[%s5081 + $0xa8] sm:$0xf]
        %v5125 = vld [vmem:[%s5081 + $0xac] sm:$0xf]
        %v5126 = vld [vmem:[%s5081 + $0xb0] sm:$0xf]
        %v5127 = vld [vmem:[%s5081 + $0xb4] sm:$0xf]
        %v5128 = vld [vmem:[%s5081 + $0xb8] sm:$0xf]
        %v5129 = vld [vmem:[%s5081 + $0xbc] sm:$0xf]
        %v5130 = vld [vmem:[%s5081 + $0xc0] sm:$0xf]
        %v5131 = vld [vmem:[%s5081 + $0xc4] sm:$0xf]
        %v5132 = vld [vmem:[%s5081 + $0xc8] sm:$0xf]
        %v5133 = vld [vmem:[%s5081 + $0xcc] sm:$0xf]
        %v5134 = vld [vmem:[%s5081 + $0xd0] sm:$0xf]
        %v5135 = vld [vmem:[%s5081 + $0xd4] sm:$0xf]
        %v5136 = vld [vmem:[%s5081 + $0xd8] sm:$0xf]
        %v5137 = vld [vmem:[%s5081 + $0xdc] sm:$0xf]
        %v5138 = vld [vmem:[%s5081 + $0xe0] sm:$0xf]
        %v5139 = vld [vmem:[%s5081 + $0xe4] sm:$0xf]
        %v5140 = vld [vmem:[%s5081 + $0xe8] sm:$0xf]
        %v5141 = vld [vmem:[%s5081 + $0xec] sm:$0xf]
        %v5142 = vld [vmem:[%s5081 + $0xf0] sm:$0xf]
        %v5143 = vld [vmem:[%s5081 + $0xf4] sm:$0xf]
        %v5144 = vld [vmem:[%s5081 + $0xf8] sm:$0xf]
        %v5145 = vld [vmem:[%s5081 + $0xfc] sm:$0xf]
        %v5146 = vld [vmem:[%s5081 + $0x100] sm:$0xf]
        %v5147 = vld [vmem:[%s5081 + $0x104] sm:$0xf]
        %v5148 = vld [vmem:[%s5081 + $0x108] sm:$0xf]
        %v5149 = vld [vmem:[%s5081 + $0x10c] sm:$0xf]
        %v5150 = vld [vmem:[%s5081 + $0x110] sm:$0xf]
        %v5151 = vld [vmem:[%s5081 + $0x114] sm:$0xf]
        %v5152 = vld [vmem:[%s5081 + $0x118] sm:$0xf]
        %v5153 = vld [vmem:[%s5081 + $0x11c] sm:$0xf]
        %v5154 = vld [vmem:[%s5081 + $0x120] sm:$0xf]
        %v5155 = vld [vmem:[%s5081 + $0x124] sm:$0xf]
        %v5156 = vld [vmem:[%s5081 + $0x128] sm:$0xf]
        %v5157 = vld [vmem:[%s5081 + $0x12c] sm:$0xf]
        %v5158 = vld [vmem:[%s5081 + $0x130] sm:$0xf]
        %v5159 = vld [vmem:[%s5081 + $0x134] sm:$0xf]
        %v5160 = vld [vmem:[%s5081 + $0x138] sm:$0xf]
        %v5161 = vld [vmem:[%s5081 + $0x13c] sm:$0xf]
        %v5162 = vld [vmem:[%s5081 + $0x140] sm:$0xf]
        %v5163 = vld [vmem:[%s5081 + $0x144] sm:$0xf]
        %v5164 = vld [vmem:[%s5081 + $0x148] sm:$0xf]
        %v5165 = vld [vmem:[%s5081 + $0x14c] sm:$0xf]
        %v5166 = vld [vmem:[%s5081 + $0x150] sm:$0xf]
        %v5167 = vld [vmem:[%s5081 + $0x154] sm:$0xf]
        %v5168 = vld [vmem:[%s5081 + $0x158] sm:$0xf]
        %v5169 = vld [vmem:[%s5081 + $0x15c] sm:$0xf]
        %v5170 = vld [vmem:[%s5081 + $0x160] sm:$0xf]
        %v5171 = vld [vmem:[%s5081 + $0x164] sm:$0xf]
        %v5172 = vld [vmem:[%s5081 + $0x168] sm:$0xf]
        %v5173 = vld [vmem:[%s5081 + $0x16c] sm:$0xf]
        %v5174 = vld [vmem:[%s5081 + $0x170] sm:$0xf]
        %v5175 = vld [vmem:[%s5081 + $0x174] sm:$0xf]
        %v5176 = vld [vmem:[%s5081 + $0x178] sm:$0xf]
        %v5177 = vld [vmem:[%s5081 + $0x17c] sm:$0xf]
        %v5178 = vld [vmem:[%s5081 + $0x180] sm:$0xf]
        %v5179 = vld [vmem:[%s5081 + $0x184] sm:$0xf]
        %v5180 = vld [vmem:[%s5081 + $0x188] sm:$0xf]
        %v5181 = vld [vmem:[%s5081 + $0x18c] sm:$0xf]
        %v5182 = vld [vmem:[%s5081 + $0x190] sm:$0xf]
        %v5183 = vld [vmem:[%s5081 + $0x194] sm:$0xf]
        %v5184 = vld [vmem:[%s5081 + $0x198] sm:$0xf]
        %v5185 = vld [vmem:[%s5081 + $0x19c] sm:$0xf]
        %v5186 = vld [vmem:[%s5081 + $0x1a0] sm:$0xf]
        %v5187 = vld [vmem:[%s5081 + $0x1a4] sm:$0xf]
        %v5188 = vld [vmem:[%s5081 + $0x1a8] sm:$0xf]
        %v5189 = vld [vmem:[%s5081 + $0x1ac] sm:$0xf]
        %v5190 = vld [vmem:[%s5081 + $0x1b0] sm:$0xf]
        %v5191 = vld [vmem:[%s5081 + $0x1b4] sm:$0xf]
        %v5192 = vld [vmem:[%s5081 + $0x1b8] sm:$0xf]
        %v5193 = vld [vmem:[%s5081 + $0x1bc] sm:$0xf]
        %v5194 = vld [vmem:[%s5081 + $0x1c0] sm:$0xf]
        %v5195 = vld [vmem:[%s5081 + $0x1c4] sm:$0xf]
        %v5196 = vld [vmem:[%s5081 + $0x1c8] sm:$0xf]
        %v5197 = vld [vmem:[%s5081 + $0x1cc] sm:$0xf]
        %v5198 = vld [vmem:[%s5081 + $0x1d0] sm:$0xf]
        %v5199 = vld [vmem:[%s5081 + $0x1d4] sm:$0xf]
        %v5200 = vld [vmem:[%s5081 + $0x1d8] sm:$0xf]
        %v5201 = vld [vmem:[%s5081 + $0x1dc] sm:$0xf]
        %v5202 = vld [vmem:[%s5081 + $0x1e0] sm:$0xf]
        %v5203 = vld [vmem:[%s5081 + $0x1e4] sm:$0xf]
        %v5204 = vld [vmem:[%s5081 + $0x1e8] sm:$0xf]
        %v5205 = vld [vmem:[%s5081 + $0x1ec] sm:$0xf]
        %v5206 = vld [vmem:[%s5081 + $0x1f0] sm:$0xf]
        %v5207 = vld [vmem:[%s5081 + $0x1f4] sm:$0xf]
        %v5208 = vld [vmem:[%s5081 + $0x1f8] sm:$0xf]
        %v5209 = vld [vmem:[%s5081 + $0x1fc] sm:$0xf]
        %s5210 = scalar_lea.vmem %s248, 16
        %v5211 = vld [vmem:[%s5210] sm:$0xf]
        %v5212 = vld [vmem:[%s5210 + $0x4] sm:$0x1]
        %v5341 = vunpack.c.l.b16 %v5082
        %v5342 = vunpack.c.l.b16 %v5083
        %v5343 = vunpack.c.l.b16 %v5084
        %v5344 = vunpack.c.l.b16 %v5085
        %v5345 = vunpack.c.l.b16 %v5086
        %v5346 = vunpack.c.l.b16 %v5087
        %v5347 = vunpack.c.l.b16 %v5088
        %v5348 = vunpack.c.l.b16 %v5089
        %v5349 = vunpack.c.l.b16 %v5090
        %v5350 = vunpack.c.l.b16 %v5091
        %v5351 = vunpack.c.l.b16 %v5092
        %v5352 = vunpack.c.l.b16 %v5093
        %v5353 = vunpack.c.l.b16 %v5094
        %v5354 = vunpack.c.l.b16 %v5095
        %v5355 = vunpack.c.l.b16 %v5096
        %v5356 = vunpack.c.l.b16 %v5097
        %v5357 = vunpack.c.l.b16 %v5098
        %v5358 = vunpack.c.l.b16 %v5099
        %v5359 = vunpack.c.l.b16 %v5100
        %v5360 = vunpack.c.l.b16 %v5101
        %v5361 = vunpack.c.l.b16 %v5102
        %v5362 = vunpack.c.l.b16 %v5103
        %v5363 = vunpack.c.l.b16 %v5104
        %v5364 = vunpack.c.l.b16 %v5105
        %v5365 = vunpack.c.l.b16 %v5106
        %v5366 = vunpack.c.l.b16 %v5107
        %v5367 = vunpack.c.l.b16 %v5108
        %v5368 = vunpack.c.l.b16 %v5109
        %v5369 = vunpack.c.l.b16 %v5110
        %v5370 = vunpack.c.l.b16 %v5111
        %v5371 = vunpack.c.l.b16 %v5112
        %v5372 = vunpack.c.l.b16 %v5113
        %v5373 = vunpack.c.l.b16 %v5114
        %v5374 = vunpack.c.l.b16 %v5115
        %v5375 = vunpack.c.l.b16 %v5116
        %v5376 = vunpack.c.l.b16 %v5117
        %v5377 = vunpack.c.l.b16 %v5118
        %v5378 = vunpack.c.l.b16 %v5119
        %v5379 = vunpack.c.l.b16 %v5120
        %v5380 = vunpack.c.l.b16 %v5121
        %v5381 = vunpack.c.l.b16 %v5122
        %v5382 = vunpack.c.l.b16 %v5123
        %v5383 = vunpack.c.l.b16 %v5124
        %v5384 = vunpack.c.l.b16 %v5125
        %v5385 = vunpack.c.l.b16 %v5126
        %v5386 = vunpack.c.l.b16 %v5127
        %v5387 = vunpack.c.l.b16 %v5128
        %v5388 = vunpack.c.l.b16 %v5129
        %v5389 = vunpack.c.l.b16 %v5130
        %v5390 = vunpack.c.l.b16 %v5131
        %v5391 = vunpack.c.l.b16 %v5132
        %v5392 = vunpack.c.l.b16 %v5133
        %v5393 = vunpack.c.l.b16 %v5134
        %v5394 = vunpack.c.l.b16 %v5135
        %v5395 = vunpack.c.l.b16 %v5136
        %v5396 = vunpack.c.l.b16 %v5137
        %v5397 = vunpack.c.l.b16 %v5138
        %v5398 = vunpack.c.l.b16 %v5139
        %v5399 = vunpack.c.l.b16 %v5140
        %v5400 = vunpack.c.l.b16 %v5141
        %v5401 = vunpack.c.l.b16 %v5142
        %v5402 = vunpack.c.l.b16 %v5143
        %v5403 = vunpack.c.l.b16 %v5144
        %v5404 = vunpack.c.l.b16 %v5145
        %v5405 = vunpack.c.l.b16 %v5146
        %v5406 = vunpack.c.l.b16 %v5147
        %v5407 = vunpack.c.l.b16 %v5148
        %v5408 = vunpack.c.l.b16 %v5149
        %v5409 = vunpack.c.l.b16 %v5150
        %v5410 = vunpack.c.l.b16 %v5151
        %v5411 = vunpack.c.l.b16 %v5152
        %v5412 = vunpack.c.l.b16 %v5153
        %v5413 = vunpack.c.l.b16 %v5154
        %v5414 = vunpack.c.l.b16 %v5155
        %v5415 = vunpack.c.l.b16 %v5156
        %v5416 = vunpack.c.l.b16 %v5157
        %v5417 = vunpack.c.l.b16 %v5158
        %v5418 = vunpack.c.l.b16 %v5159
        %v5419 = vunpack.c.l.b16 %v5160
        %v5420 = vunpack.c.l.b16 %v5161
        %v5421 = vunpack.c.l.b16 %v5162
        %v5422 = vunpack.c.l.b16 %v5163
        %v5423 = vunpack.c.l.b16 %v5164
        %v5424 = vunpack.c.l.b16 %v5165
        %v5425 = vunpack.c.l.b16 %v5166
        %v5426 = vunpack.c.l.b16 %v5167
        %v5427 = vunpack.c.l.b16 %v5168
        %v5428 = vunpack.c.l.b16 %v5169
        %v5429 = vunpack.c.l.b16 %v5170
        %v5430 = vunpack.c.l.b16 %v5171
        %v5431 = vunpack.c.l.b16 %v5172
        %v5432 = vunpack.c.l.b16 %v5173
        %v5433 = vunpack.c.l.b16 %v5174
        %v5434 = vunpack.c.l.b16 %v5175
        %v5435 = vunpack.c.l.b16 %v5176
        %v5436 = vunpack.c.l.b16 %v5177
        %v5437 = vunpack.c.l.b16 %v5178
        %v5438 = vunpack.c.l.b16 %v5179
        %v5439 = vunpack.c.l.b16 %v5180
        %v5440 = vunpack.c.l.b16 %v5181
        %v5441 = vunpack.c.l.b16 %v5182
        %v5442 = vunpack.c.l.b16 %v5183
        %v5443 = vunpack.c.l.b16 %v5184
        %v5444 = vunpack.c.l.b16 %v5185
        %v5445 = vunpack.c.l.b16 %v5186
        %v5446 = vunpack.c.l.b16 %v5187
        %v5447 = vunpack.c.l.b16 %v5188
        %v5448 = vunpack.c.l.b16 %v5189
        %v5449 = vunpack.c.l.b16 %v5190
        %v5450 = vunpack.c.l.b16 %v5191
        %v5451 = vunpack.c.l.b16 %v5192
        %v5452 = vunpack.c.l.b16 %v5193
        %v5453 = vunpack.c.l.b16 %v5194
        %v5454 = vunpack.c.l.b16 %v5195
        %v5455 = vunpack.c.l.b16 %v5196
        %v5456 = vunpack.c.l.b16 %v5197
        %v5457 = vunpack.c.l.b16 %v5198
        %v5458 = vunpack.c.l.b16 %v5199
        %v5459 = vunpack.c.l.b16 %v5200
        %v5460 = vunpack.c.l.b16 %v5201
        %v5461 = vunpack.c.l.b16 %v5202
        %v5462 = vunpack.c.l.b16 %v5203
        %v5463 = vunpack.c.l.b16 %v5204
        %v5464 = vunpack.c.l.b16 %v5205
        %v5465 = vunpack.c.l.b16 %v5206
        %v5466 = vunpack.c.l.b16 %v5207
        %v5467 = vunpack.c.l.b16 %v5208
        %v5468 = vunpack.c.l.b16 %v5209
        %v5469 = vpack.c.b16 %v5342, %v5341
        %v5470 = vpack.c.b16 %v5344, %v5343
        %v5471 = vpack.c.b16 %v5346, %v5345
        %v5472 = vpack.c.b16 %v5348, %v5347
        %v5473 = vpack.c.b16 %v5350, %v5349
        %v5474 = vpack.c.b16 %v5352, %v5351
        %v5475 = vpack.c.b16 %v5354, %v5353
        %v5476 = vpack.c.b16 %v5356, %v5355
        %v5477 = vpack.c.b16 %v5358, %v5357
        %v5478 = vpack.c.b16 %v5360, %v5359
        %v5479 = vpack.c.b16 %v5362, %v5361
        %v5480 = vpack.c.b16 %v5364, %v5363
        %v5481 = vpack.c.b16 %v5366, %v5365
        %v5482 = vpack.c.b16 %v5368, %v5367
        %v5483 = vpack.c.b16 %v5370, %v5369
        %v5484 = vpack.c.b16 %v5372, %v5371
        %v5485 = vpack.c.b16 %v5374, %v5373
        %v5486 = vpack.c.b16 %v5376, %v5375
        %v5487 = vpack.c.b16 %v5378, %v5377
        %v5488 = vpack.c.b16 %v5380, %v5379
        %v5489 = vpack.c.b16 %v5382, %v5381
        %v5490 = vpack.c.b16 %v5384, %v5383
        %v5491 = vpack.c.b16 %v5386, %v5385
        %v5492 = vpack.c.b16 %v5388, %v5387
        %v5493 = vpack.c.b16 %v5390, %v5389
        %v5494 = vpack.c.b16 %v5392, %v5391
        %v5495 = vpack.c.b16 %v5394, %v5393
        %v5496 = vpack.c.b16 %v5396, %v5395
        %v5497 = vpack.c.b16 %v5398, %v5397
        %v5498 = vpack.c.b16 %v5400, %v5399
        %v5499 = vpack.c.b16 %v5402, %v5401
        %v5500 = vpack.c.b16 %v5404, %v5403
        %v5501 = vpack.c.b16 %v5406, %v5405
        %v5502 = vpack.c.b16 %v5408, %v5407
        %v5503 = vpack.c.b16 %v5410, %v5409
        %v5504 = vpack.c.b16 %v5412, %v5411
        %v5505 = vpack.c.b16 %v5414, %v5413
        %v5506 = vpack.c.b16 %v5416, %v5415
        %v5507 = vpack.c.b16 %v5418, %v5417
        %v5508 = vpack.c.b16 %v5420, %v5419
        %v5509 = vpack.c.b16 %v5422, %v5421
        %v5510 = vpack.c.b16 %v5424, %v5423
        %v5511 = vpack.c.b16 %v5426, %v5425
        %v5512 = vpack.c.b16 %v5428, %v5427
        %v5513 = vpack.c.b16 %v5430, %v5429
        %v5514 = vpack.c.b16 %v5432, %v5431
        %v5515 = vpack.c.b16 %v5434, %v5433
        %v5516 = vpack.c.b16 %v5436, %v5435
        %v5517 = vpack.c.b16 %v5438, %v5437
        %v5518 = vpack.c.b16 %v5440, %v5439
        %v5519 = vpack.c.b16 %v5442, %v5441
        %v5520 = vpack.c.b16 %v5444, %v5443
        %v5521 = vpack.c.b16 %v5446, %v5445
        %v5522 = vpack.c.b16 %v5448, %v5447
        %v5523 = vpack.c.b16 %v5450, %v5449
        %v5524 = vpack.c.b16 %v5452, %v5451
        %v5525 = vpack.c.b16 %v5454, %v5453
        %v5526 = vpack.c.b16 %v5456, %v5455
        %v5527 = vpack.c.b16 %v5458, %v5457
        %v5528 = vpack.c.b16 %v5460, %v5459
        %v5529 = vpack.c.b16 %v5462, %v5461
        %v5530 = vpack.c.b16 %v5464, %v5463
        %v5531 = vpack.c.b16 %v5466, %v5465
        %v5532 = vpack.c.b16 %v5468, %v5467
        %v5535 = vunpack.c.l.b16 %v5211
        %v5536 = vunpack.c.l.b16 %v5212
        %v5537 = vpack.c.b16 %v5536, %v5535
        %v5539 = vsel %vm3271, %v5469, 0
        %v5542 = vsel %vm3271, %v5470, 0
        %v5545 = vsel %vm3271, %v5471, 0
        %v5548 = vsel %vm3271, %v5472, 0
        %v5551 = vsel %vm3271, %v5473, 0
        %v5554 = vsel %vm3271, %v5474, 0
        %v5557 = vsel %vm3271, %v5475, 0
        %v5560 = vsel %vm3271, %v5476, 0
        %v5563 = vsel %vm3271, %v5477, 0
        %v5566 = vsel %vm3271, %v5478, 0
        %v5569 = vsel %vm3271, %v5479, 0
        %v5572 = vsel %vm3271, %v5480, 0
        %v5575 = vsel %vm3271, %v5481, 0
        %v5578 = vsel %vm3271, %v5482, 0
        %v5581 = vsel %vm3271, %v5483, 0
        %v5584 = vsel %vm3271, %v5484, 0
        %v5587 = vsel %vm3271, %v5485, 0
        %v5590 = vsel %vm3271, %v5486, 0
        %v5593 = vsel %vm3271, %v5487, 0
        %v5596 = vsel %vm3271, %v5488, 0
        %v5599 = vsel %vm3271, %v5489, 0
        %v5602 = vsel %vm3271, %v5490, 0
        %v5605 = vsel %vm3271, %v5491, 0
        %v5608 = vsel %vm3271, %v5492, 0
        %v5611 = vsel %vm3271, %v5493, 0
        %v5614 = vsel %vm3271, %v5494, 0
        %v5617 = vsel %vm3271, %v5495, 0
        %v5620 = vsel %vm3271, %v5496, 0
        %v5623 = vsel %vm3271, %v5497, 0
        %v5626 = vsel %vm3271, %v5498, 0
        %v5629 = vsel %vm3271, %v5499, 0
        %v5632 = vsel %vm3271, %v5500, 0
        %v5635 = vsel %vm3271, %v5501, 0
        %v5638 = vsel %vm3271, %v5502, 0
        %v5641 = vsel %vm3271, %v5503, 0
        %v5644 = vsel %vm3271, %v5504, 0
        %v5647 = vsel %vm3271, %v5505, 0
        %v5650 = vsel %vm3271, %v5506, 0
        %v5653 = vsel %vm3271, %v5507, 0
        %v5656 = vsel %vm3271, %v5508, 0
        %v5659 = vsel %vm3271, %v5509, 0
        %v5662 = vsel %vm3271, %v5510, 0
        %v5665 = vsel %vm3271, %v5511, 0
        %v5668 = vsel %vm3271, %v5512, 0
        %v5671 = vsel %vm3271, %v5513, 0
        %v5674 = vsel %vm3271, %v5514, 0
        %v5677 = vsel %vm3271, %v5515, 0
        %v5680 = vsel %vm3271, %v5516, 0
        %v5683 = vsel %vm3271, %v5517, 0
        %v5686 = vsel %vm3271, %v5518, 0
        %v5689 = vsel %vm3271, %v5519, 0
        %v5692 = vsel %vm3271, %v5520, 0
        %v5695 = vsel %vm3271, %v5521, 0
        %v5698 = vsel %vm3271, %v5522, 0
        %v5701 = vsel %vm3271, %v5523, 0
        %v5704 = vsel %vm3271, %v5524, 0
        %v5707 = vsel %vm3271, %v5525, 0
        %v5710 = vsel %vm3271, %v5526, 0
        %v5713 = vsel %vm3271, %v5527, 0
        %v5716 = vsel %vm3271, %v5528, 0
        %v5719 = vsel %vm3271, %v5529, 0
        %v5722 = vsel %vm3271, %v5530, 0
        %v5725 = vsel %vm3271, %v5531, 0
        %v5728 = vsel %vm3271, %v5532, 0
        %v5731 = vand.u32 %v5537, %v3467
        %5733 = vmatprep.subr.bf16.mxu0 0
        %5734 = vmatpush1.bf16.msra.mxu0 0
        %5735 = vmatprep.subr.bf16.mxu0 0
        %5736 = vmatpush1.bf16.msra.mxu0 0
        %5737 = vmatprep.subr.bf16.mxu0 0
        %5738 = vmatpush1.bf16.msra.mxu0 0
        %5739 = vmatprep.subr.bf16.mxu0 0
        %5740 = vmatpush1.bf16.msra.mxu0 0
        %5741 = vmatprep.subr.bf16.mxu0 0
        %5742 = vmatpush1.bf16.msra.mxu0 0
        %5743 = vmatprep.subr.bf16.mxu0 0
        %5744 = vmatpush1.bf16.msra.mxu0 0
        %5745 = vmatprep.subr.bf16.mxu0 0
        %5746 = vmatpush1.bf16.msra.mxu0 0
        %5747 = vmatprep.subr.bf16.mxu0 0
        %5748 = vmatpush1.bf16.msra.mxu0 %v5731
        %5749 = vmatprep.subr.bf16.mxu0 0
        %5750 = vmatpush2.bf16.msra.mxu0 0
        %5751 = vmatprep.subr.bf16.mxu0 0
        %5752 = vmatpush2.bf16.msra.mxu0 0
        %5753 = vmatprep.subr.bf16.mxu0 0
        %5754 = vmatpush2.bf16.msra.mxu0 0
        %5755 = vmatprep.subr.bf16.mxu0 0
        %5756 = vmatpush2.bf16.msra.mxu0 0
        %5757 = vmatprep.subr.bf16.mxu0 0
        %5758 = vmatpush2.bf16.msra.mxu0 0
        %5759 = vmatprep.subr.bf16.mxu0 0
        %5760 = vmatpush2.bf16.msra.mxu0 0
        %5761 = vmatprep.subr.bf16.mxu0 0
        %5762 = vmatpush2.bf16.msra.mxu0 0
        %5763 = vmatprep.subr.bf16.mxu0 0
        %5764 = vmatpush2.bf16.msra.mxu0 0
        %5765 = vmatprep.mubr.bf16.mxu0 0
        %5766 = vmatmul.mubr.bf16.gmra.mxu0 %v5539
        %v5767 = vpop.f32.mrf.mxu0
        %v5768 = vadd.f32 0.0, %v5767
        %v5769 = vpop.f32.mrf.mxu0
        %v5770 = vpop.f32.mrf.mxu0
        %v5771 = vadd.f32 0.0, %v5770
        %v5772 = vpop.f32.mrf.mxu0
        %5773 = vmatprep.mubr.bf16.mxu0 0
        %5774 = vmatmul.mubr.bf16.gmra.mxu0 %v5542
        %v5775 = vpop.f32.mrf.mxu0
        %v5776 = vadd.f32 0.0, %v5775
        %v5777 = vpop.f32.mrf.mxu0
        %v5778 = vpop.f32.mrf.mxu0
        %v5779 = vadd.f32 0.0, %v5778
        %v5780 = vpop.f32.mrf.mxu0
        %5781 = vmatprep.mubr.bf16.mxu0 0
        %5782 = vmatmul.mubr.bf16.gmra.mxu0 %v5545
        %v5783 = vpop.f32.mrf.mxu0
        %v5784 = vadd.f32 0.0, %v5783
        %v5785 = vpop.f32.mrf.mxu0
        %v5786 = vpop.f32.mrf.mxu0
        %v5787 = vadd.f32 0.0, %v5786
        %v5788 = vpop.f32.mrf.mxu0
        %5789 = vmatprep.mubr.bf16.mxu0 0
        %5790 = vmatmul.mubr.bf16.gmra.mxu0 %v5548
        %v5791 = vpop.f32.mrf.mxu0
        %v5792 = vadd.f32 0.0, %v5791
        %v5793 = vpop.f32.mrf.mxu0
        %v5794 = vpop.f32.mrf.mxu0
        %v5795 = vadd.f32 0.0, %v5794
        %v5796 = vpop.f32.mrf.mxu0
        %5797 = vmatprep.mubr.bf16.mxu0 0
        %5798 = vmatmul.mubr.bf16.gmra.mxu0 %v5551
        %v5799 = vpop.f32.mrf.mxu0
        %v5800 = vadd.f32 0.0, %v5799
        %v5801 = vpop.f32.mrf.mxu0
        %v5802 = vpop.f32.mrf.mxu0
        %v5803 = vadd.f32 0.0, %v5802
        %v5804 = vpop.f32.mrf.mxu0
        %5805 = vmatprep.mubr.bf16.mxu0 0
        %5806 = vmatmul.mubr.bf16.gmra.mxu0 %v5554
        %v5807 = vpop.f32.mrf.mxu0
        %v5808 = vadd.f32 0.0, %v5807
        %v5809 = vpop.f32.mrf.mxu0
        %v5810 = vpop.f32.mrf.mxu0
        %v5811 = vadd.f32 0.0, %v5810
        %v5812 = vpop.f32.mrf.mxu0
        %5813 = vmatprep.mubr.bf16.mxu0 0
        %5814 = vmatmul.mubr.bf16.gmra.mxu0 %v5557
        %v5815 = vpop.f32.mrf.mxu0
        %v5816 = vadd.f32 0.0, %v5815
        %v5817 = vpop.f32.mrf.mxu0
        %v5818 = vpop.f32.mrf.mxu0
        %v5819 = vadd.f32 0.0, %v5818
        %v5820 = vpop.f32.mrf.mxu0
        %5821 = vmatprep.mubr.bf16.mxu0 0
        %5822 = vmatmul.mubr.bf16.gmra.mxu0 %v5560
        %v5823 = vpop.f32.mrf.mxu0
        %v5824 = vadd.f32 0.0, %v5823
        %v5825 = vpop.f32.mrf.mxu0
        %v5826 = vpop.f32.mrf.mxu0
        %v5827 = vadd.f32 0.0, %v5826
        %v5828 = vpop.f32.mrf.mxu0
        %5829 = vmatprep.mubr.bf16.mxu0 0
        %5830 = vmatmul.mubr.bf16.gmra.mxu0 %v5563
        %v5831 = vpop.f32.mrf.mxu0
        %v5832 = vadd.f32 0.0, %v5831
        %v5833 = vpop.f32.mrf.mxu0
        %v5834 = vpop.f32.mrf.mxu0
        %v5835 = vadd.f32 0.0, %v5834
        %v5836 = vpop.f32.mrf.mxu0
        %5837 = vmatprep.mubr.bf16.mxu0 0
        %5838 = vmatmul.mubr.bf16.gmra.mxu0 %v5566
        %v5839 = vpop.f32.mrf.mxu0
        %v5840 = vadd.f32 0.0, %v5839
        %v5841 = vpop.f32.mrf.mxu0
        %v5842 = vpop.f32.mrf.mxu0
        %v5843 = vadd.f32 0.0, %v5842
        %v5844 = vpop.f32.mrf.mxu0
        %5845 = vmatprep.mubr.bf16.mxu0 0
        %5846 = vmatmul.mubr.bf16.gmra.mxu0 %v5569
        %v5847 = vpop.f32.mrf.mxu0
        %v5848 = vadd.f32 0.0, %v5847
        %v5849 = vpop.f32.mrf.mxu0
        %v5850 = vpop.f32.mrf.mxu0
        %v5851 = vadd.f32 0.0, %v5850
        %v5852 = vpop.f32.mrf.mxu0
        %5853 = vmatprep.mubr.bf16.mxu0 0
        %5854 = vmatmul.mubr.bf16.gmra.mxu0 %v5572
        %v5855 = vpop.f32.mrf.mxu0
        %v5856 = vadd.f32 0.0, %v5855
        %v5857 = vpop.f32.mrf.mxu0
        %v5858 = vpop.f32.mrf.mxu0
        %v5859 = vadd.f32 0.0, %v5858
        %v5860 = vpop.f32.mrf.mxu0
        %5861 = vmatprep.mubr.bf16.mxu0 0
        %5862 = vmatmul.mubr.bf16.gmra.mxu0 %v5575
        %v5863 = vpop.f32.mrf.mxu0
        %v5864 = vadd.f32 0.0, %v5863
        %v5865 = vpop.f32.mrf.mxu0
        %v5866 = vpop.f32.mrf.mxu0
        %v5867 = vadd.f32 0.0, %v5866
        %v5868 = vpop.f32.mrf.mxu0
        %5869 = vmatprep.mubr.bf16.mxu0 0
        %5870 = vmatmul.mubr.bf16.gmra.mxu0 %v5578
        %v5871 = vpop.f32.mrf.mxu0
        %v5872 = vadd.f32 0.0, %v5871
        %v5873 = vpop.f32.mrf.mxu0
        %v5874 = vpop.f32.mrf.mxu0
        %v5875 = vadd.f32 0.0, %v5874
        %v5876 = vpop.f32.mrf.mxu0
        %5877 = vmatprep.mubr.bf16.mxu0 0
        %5878 = vmatmul.mubr.bf16.gmra.mxu0 %v5581
        %v5879 = vpop.f32.mrf.mxu0
        %v5880 = vadd.f32 0.0, %v5879
        %v5881 = vpop.f32.mrf.mxu0
        %v5882 = vpop.f32.mrf.mxu0
        %v5883 = vadd.f32 0.0, %v5882
        %v5884 = vpop.f32.mrf.mxu0
        %5885 = vmatprep.mubr.bf16.mxu0 0
        %5886 = vmatmul.mubr.bf16.gmra.mxu0 %v5584
        %v5887 = vpop.f32.mrf.mxu0
        %v5888 = vadd.f32 0.0, %v5887
        %v5889 = vpop.f32.mrf.mxu0
        %v5890 = vpop.f32.mrf.mxu0
        %v5891 = vadd.f32 0.0, %v5890
        %v5892 = vpop.f32.mrf.mxu0
        %5893 = vmatprep.mubr.bf16.mxu0 0
        %5894 = vmatmul.mubr.bf16.gmra.mxu0 %v5587
        %v5895 = vpop.f32.mrf.mxu0
        %v5896 = vadd.f32 0.0, %v5895
        %v5897 = vpop.f32.mrf.mxu0
        %v5898 = vpop.f32.mrf.mxu0
        %v5899 = vadd.f32 0.0, %v5898
        %v5900 = vpop.f32.mrf.mxu0
        %5901 = vmatprep.mubr.bf16.mxu0 0
        %5902 = vmatmul.mubr.bf16.gmra.mxu0 %v5590
        %v5903 = vpop.f32.mrf.mxu0
        %v5904 = vadd.f32 0.0, %v5903
        %v5905 = vpop.f32.mrf.mxu0
        %v5906 = vpop.f32.mrf.mxu0
        %v5907 = vadd.f32 0.0, %v5906
        %v5908 = vpop.f32.mrf.mxu0
        %5909 = vmatprep.mubr.bf16.mxu0 0
        %5910 = vmatmul.mubr.bf16.gmra.mxu0 %v5593
        %v5911 = vpop.f32.mrf.mxu0
        %v5912 = vadd.f32 0.0, %v5911
        %v5913 = vpop.f32.mrf.mxu0
        %v5914 = vpop.f32.mrf.mxu0
        %v5915 = vadd.f32 0.0, %v5914
        %v5916 = vpop.f32.mrf.mxu0
        %5917 = vmatprep.mubr.bf16.mxu0 0
        %5918 = vmatmul.mubr.bf16.gmra.mxu0 %v5596
        %v5919 = vpop.f32.mrf.mxu0
        %v5920 = vadd.f32 0.0, %v5919
        %v5921 = vpop.f32.mrf.mxu0
        %v5922 = vpop.f32.mrf.mxu0
        %v5923 = vadd.f32 0.0, %v5922
        %v5924 = vpop.f32.mrf.mxu0
        %5925 = vmatprep.mubr.bf16.mxu0 0
        %5926 = vmatmul.mubr.bf16.gmra.mxu0 %v5599
        %v5927 = vpop.f32.mrf.mxu0
        %v5928 = vadd.f32 0.0, %v5927
        %v5929 = vpop.f32.mrf.mxu0
        %v5930 = vpop.f32.mrf.mxu0
        %v5931 = vadd.f32 0.0, %v5930
        %v5932 = vpop.f32.mrf.mxu0
        %5933 = vmatprep.mubr.bf16.mxu0 0
        %5934 = vmatmul.mubr.bf16.gmra.mxu0 %v5602
        %v5935 = vpop.f32.mrf.mxu0
        %v5936 = vadd.f32 0.0, %v5935
        %v5937 = vpop.f32.mrf.mxu0
        %v5938 = vpop.f32.mrf.mxu0
        %v5939 = vadd.f32 0.0, %v5938
        %v5940 = vpop.f32.mrf.mxu0
        %5941 = vmatprep.mubr.bf16.mxu0 0
        %5942 = vmatmul.mubr.bf16.gmra.mxu0 %v5605
        %v5943 = vpop.f32.mrf.mxu0
        %v5944 = vadd.f32 0.0, %v5943
        %v5945 = vpop.f32.mrf.mxu0
        %v5946 = vpop.f32.mrf.mxu0
        %v5947 = vadd.f32 0.0, %v5946
        %v5948 = vpop.f32.mrf.mxu0
        %5949 = vmatprep.mubr.bf16.mxu0 0
        %5950 = vmatmul.mubr.bf16.gmra.mxu0 %v5608
        %v5951 = vpop.f32.mrf.mxu0
        %v5952 = vadd.f32 0.0, %v5951
        %v5953 = vpop.f32.mrf.mxu0
        %v5954 = vpop.f32.mrf.mxu0
        %v5955 = vadd.f32 0.0, %v5954
        %v5956 = vpop.f32.mrf.mxu0
        %5957 = vmatprep.mubr.bf16.mxu0 0
        %5958 = vmatmul.mubr.bf16.gmra.mxu0 %v5611
        %v5959 = vpop.f32.mrf.mxu0
        %v5960 = vadd.f32 0.0, %v5959
        %v5961 = vpop.f32.mrf.mxu0
        %v5962 = vpop.f32.mrf.mxu0
        %v5963 = vadd.f32 0.0, %v5962
        %v5964 = vpop.f32.mrf.mxu0
        %5965 = vmatprep.mubr.bf16.mxu0 0
        %5966 = vmatmul.mubr.bf16.gmra.mxu0 %v5614
        %v5967 = vpop.f32.mrf.mxu0
        %v5968 = vadd.f32 0.0, %v5967
        %v5969 = vpop.f32.mrf.mxu0
        %v5970 = vpop.f32.mrf.mxu0
        %v5971 = vadd.f32 0.0, %v5970
        %v5972 = vpop.f32.mrf.mxu0
        %5973 = vmatprep.mubr.bf16.mxu0 0
        %5974 = vmatmul.mubr.bf16.gmra.mxu0 %v5617
        %v5975 = vpop.f32.mrf.mxu0
        %v5976 = vadd.f32 0.0, %v5975
        %v5977 = vpop.f32.mrf.mxu0
        %v5978 = vpop.f32.mrf.mxu0
        %v5979 = vadd.f32 0.0, %v5978
        %v5980 = vpop.f32.mrf.mxu0
        %5981 = vmatprep.mubr.bf16.mxu0 0
        %5982 = vmatmul.mubr.bf16.gmra.mxu0 %v5620
        %v5983 = vpop.f32.mrf.mxu0
        %v5984 = vadd.f32 0.0, %v5983
        %v5985 = vpop.f32.mrf.mxu0
        %v5986 = vpop.f32.mrf.mxu0
        %v5987 = vadd.f32 0.0, %v5986
        %v5988 = vpop.f32.mrf.mxu0
        %5989 = vmatprep.mubr.bf16.mxu0 0
        %5990 = vmatmul.mubr.bf16.gmra.mxu0 %v5623
        %v5991 = vpop.f32.mrf.mxu0
        %v5992 = vadd.f32 0.0, %v5991
        %v5993 = vpop.f32.mrf.mxu0
        %v5994 = vpop.f32.mrf.mxu0
        %v5995 = vadd.f32 0.0, %v5994
        %v5996 = vpop.f32.mrf.mxu0
        %5997 = vmatprep.mubr.bf16.mxu0 0
        %5998 = vmatmul.mubr.bf16.gmra.mxu0 %v5626
        %v5999 = vpop.f32.mrf.mxu0
        %v6000 = vadd.f32 0.0, %v5999
        %v6001 = vpop.f32.mrf.mxu0
        %v6002 = vpop.f32.mrf.mxu0
        %v6003 = vadd.f32 0.0, %v6002
        %v6004 = vpop.f32.mrf.mxu0
        %6005 = vmatprep.mubr.bf16.mxu0 0
        %6006 = vmatmul.mubr.bf16.gmra.mxu0 %v5629
        %v6007 = vpop.f32.mrf.mxu0
        %v6008 = vadd.f32 0.0, %v6007
        %v6009 = vpop.f32.mrf.mxu0
        %v6010 = vpop.f32.mrf.mxu0
        %v6011 = vadd.f32 0.0, %v6010
        %v6012 = vpop.f32.mrf.mxu0
        %6013 = vmatprep.mubr.bf16.mxu0 0
        %6014 = vmatmul.mubr.bf16.gmra.mxu0 %v5632
        %v6015 = vpop.f32.mrf.mxu0
        %v6016 = vadd.f32 0.0, %v6015
        %v6017 = vpop.f32.mrf.mxu0
        %v6018 = vpop.f32.mrf.mxu0
        %v6019 = vadd.f32 0.0, %v6018
        %v6020 = vpop.f32.mrf.mxu0
        %6021 = vmatprep.mubr.bf16.mxu0 0
        %6022 = vmatmul.mubr.bf16.gmra.mxu0 %v5635
        %v6023 = vpop.f32.mrf.mxu0
        %v6024 = vadd.f32 0.0, %v6023
        %v6025 = vpop.f32.mrf.mxu0
        %v6026 = vpop.f32.mrf.mxu0
        %v6027 = vadd.f32 0.0, %v6026
        %v6028 = vpop.f32.mrf.mxu0
        %6029 = vmatprep.mubr.bf16.mxu0 0
        %6030 = vmatmul.mubr.bf16.gmra.mxu0 %v5638
        %v6031 = vpop.f32.mrf.mxu0
        %v6032 = vadd.f32 0.0, %v6031
        %v6033 = vpop.f32.mrf.mxu0
        %v6034 = vpop.f32.mrf.mxu0
        %v6035 = vadd.f32 0.0, %v6034
        %v6036 = vpop.f32.mrf.mxu0
        %6037 = vmatprep.mubr.bf16.mxu0 0
        %6038 = vmatmul.mubr.bf16.gmra.mxu0 %v5641
        %v6039 = vpop.f32.mrf.mxu0
        %v6040 = vadd.f32 0.0, %v6039
        %v6041 = vpop.f32.mrf.mxu0
        %v6042 = vpop.f32.mrf.mxu0
        %v6043 = vadd.f32 0.0, %v6042
        %v6044 = vpop.f32.mrf.mxu0
        %6045 = vmatprep.mubr.bf16.mxu0 0
        %6046 = vmatmul.mubr.bf16.gmra.mxu0 %v5644
        %v6047 = vpop.f32.mrf.mxu0
        %v6048 = vadd.f32 0.0, %v6047
        %v6049 = vpop.f32.mrf.mxu0
        %v6050 = vpop.f32.mrf.mxu0
        %v6051 = vadd.f32 0.0, %v6050
        %v6052 = vpop.f32.mrf.mxu0
        %6053 = vmatprep.mubr.bf16.mxu0 0
        %6054 = vmatmul.mubr.bf16.gmra.mxu0 %v5647
        %v6055 = vpop.f32.mrf.mxu0
        %v6056 = vadd.f32 0.0, %v6055
        %v6057 = vpop.f32.mrf.mxu0
        %v6058 = vpop.f32.mrf.mxu0
        %v6059 = vadd.f32 0.0, %v6058
        %v6060 = vpop.f32.mrf.mxu0
        %6061 = vmatprep.mubr.bf16.mxu0 0
        %6062 = vmatmul.mubr.bf16.gmra.mxu0 %v5650
        %v6063 = vpop.f32.mrf.mxu0
        %v6064 = vadd.f32 0.0, %v6063
        %v6065 = vpop.f32.mrf.mxu0
        %v6066 = vpop.f32.mrf.mxu0
        %v6067 = vadd.f32 0.0, %v6066
        %v6068 = vpop.f32.mrf.mxu0
        %6069 = vmatprep.mubr.bf16.mxu0 0
        %6070 = vmatmul.mubr.bf16.gmra.mxu0 %v5653
        %v6071 = vpop.f32.mrf.mxu0
        %v6072 = vadd.f32 0.0, %v6071
        %v6073 = vpop.f32.mrf.mxu0
        %v6074 = vpop.f32.mrf.mxu0
        %v6075 = vadd.f32 0.0, %v6074
        %v6076 = vpop.f32.mrf.mxu0
        %6077 = vmatprep.mubr.bf16.mxu0 0
        %6078 = vmatmul.mubr.bf16.gmra.mxu0 %v5656
        %v6079 = vpop.f32.mrf.mxu0
        %v6080 = vadd.f32 0.0, %v6079
        %v6081 = vpop.f32.mrf.mxu0
        %v6082 = vpop.f32.mrf.mxu0
        %v6083 = vadd.f32 0.0, %v6082
        %v6084 = vpop.f32.mrf.mxu0
        %6085 = vmatprep.mubr.bf16.mxu0 0
        %6086 = vmatmul.mubr.bf16.gmra.mxu0 %v5659
        %v6087 = vpop.f32.mrf.mxu0
        %v6088 = vadd.f32 0.0, %v6087
        %v6089 = vpop.f32.mrf.mxu0
        %v6090 = vpop.f32.mrf.mxu0
        %v6091 = vadd.f32 0.0, %v6090
        %v6092 = vpop.f32.mrf.mxu0
        %6093 = vmatprep.mubr.bf16.mxu0 0
        %6094 = vmatmul.mubr.bf16.gmra.mxu0 %v5662
        %v6095 = vpop.f32.mrf.mxu0
        %v6096 = vadd.f32 0.0, %v6095
        %v6097 = vpop.f32.mrf.mxu0
        %v6098 = vpop.f32.mrf.mxu0
        %v6099 = vadd.f32 0.0, %v6098
        %v6100 = vpop.f32.mrf.mxu0
        %6101 = vmatprep.mubr.bf16.mxu0 0
        %6102 = vmatmul.mubr.bf16.gmra.mxu0 %v5665
        %v6103 = vpop.f32.mrf.mxu0
        %v6104 = vadd.f32 0.0, %v6103
        %v6105 = vpop.f32.mrf.mxu0
        %v6106 = vpop.f32.mrf.mxu0
        %v6107 = vadd.f32 0.0, %v6106
        %v6108 = vpop.f32.mrf.mxu0
        %6109 = vmatprep.mubr.bf16.mxu0 0
        %6110 = vmatmul.mubr.bf16.gmra.mxu0 %v5668
        %v6111 = vpop.f32.mrf.mxu0
        %v6112 = vadd.f32 0.0, %v6111
        %v6113 = vpop.f32.mrf.mxu0
        %v6114 = vpop.f32.mrf.mxu0
        %v6115 = vadd.f32 0.0, %v6114
        %v6116 = vpop.f32.mrf.mxu0
        %6117 = vmatprep.mubr.bf16.mxu0 0
        %6118 = vmatmul.mubr.bf16.gmra.mxu0 %v5671
        %v6119 = vpop.f32.mrf.mxu0
        %v6120 = vadd.f32 0.0, %v6119
        %v6121 = vpop.f32.mrf.mxu0
        %v6122 = vpop.f32.mrf.mxu0
        %v6123 = vadd.f32 0.0, %v6122
        %v6124 = vpop.f32.mrf.mxu0
        %6125 = vmatprep.mubr.bf16.mxu0 0
        %6126 = vmatmul.mubr.bf16.gmra.mxu0 %v5674
        %v6127 = vpop.f32.mrf.mxu0
        %v6128 = vadd.f32 0.0, %v6127
        %v6129 = vpop.f32.mrf.mxu0
        %v6130 = vpop.f32.mrf.mxu0
        %v6131 = vadd.f32 0.0, %v6130
        %v6132 = vpop.f32.mrf.mxu0
        %6133 = vmatprep.mubr.bf16.mxu0 0
        %6134 = vmatmul.mubr.bf16.gmra.mxu0 %v5677
        %v6135 = vpop.f32.mrf.mxu0
        %v6136 = vadd.f32 0.0, %v6135
        %v6137 = vpop.f32.mrf.mxu0
        %v6138 = vpop.f32.mrf.mxu0
        %v6139 = vadd.f32 0.0, %v6138
        %v6140 = vpop.f32.mrf.mxu0
        %6141 = vmatprep.mubr.bf16.mxu0 0
        %6142 = vmatmul.mubr.bf16.gmra.mxu0 %v5680
        %v6143 = vpop.f32.mrf.mxu0
        %v6144 = vadd.f32 0.0, %v6143
        %v6145 = vpop.f32.mrf.mxu0
        %v6146 = vpop.f32.mrf.mxu0
        %v6147 = vadd.f32 0.0, %v6146
        %v6148 = vpop.f32.mrf.mxu0
        %6149 = vmatprep.mubr.bf16.mxu0 0
        %6150 = vmatmul.mubr.bf16.gmra.mxu0 %v5683
        %v6151 = vpop.f32.mrf.mxu0
        %v6152 = vadd.f32 0.0, %v6151
        %v6153 = vpop.f32.mrf.mxu0
        %v6154 = vpop.f32.mrf.mxu0
        %v6155 = vadd.f32 0.0, %v6154
        %v6156 = vpop.f32.mrf.mxu0
        %6157 = vmatprep.mubr.bf16.mxu0 0
        %6158 = vmatmul.mubr.bf16.gmra.mxu0 %v5686
        %v6159 = vpop.f32.mrf.mxu0
        %v6160 = vadd.f32 0.0, %v6159
        %v6161 = vpop.f32.mrf.mxu0
        %v6162 = vpop.f32.mrf.mxu0
        %v6163 = vadd.f32 0.0, %v6162
        %v6164 = vpop.f32.mrf.mxu0
        %6165 = vmatprep.mubr.bf16.mxu0 0
        %6166 = vmatmul.mubr.bf16.gmra.mxu0 %v5689
        %v6167 = vpop.f32.mrf.mxu0
        %v6168 = vadd.f32 0.0, %v6167
        %v6169 = vpop.f32.mrf.mxu0
        %v6170 = vpop.f32.mrf.mxu0
        %v6171 = vadd.f32 0.0, %v6170
        %v6172 = vpop.f32.mrf.mxu0
        %6173 = vmatprep.mubr.bf16.mxu0 0
        %6174 = vmatmul.mubr.bf16.gmra.mxu0 %v5692
        %v6175 = vpop.f32.mrf.mxu0
        %v6176 = vadd.f32 0.0, %v6175
        %v6177 = vpop.f32.mrf.mxu0
        %v6178 = vpop.f32.mrf.mxu0
        %v6179 = vadd.f32 0.0, %v6178
        %v6180 = vpop.f32.mrf.mxu0
        %6181 = vmatprep.mubr.bf16.mxu0 0
        %6182 = vmatmul.mubr.bf16.gmra.mxu0 %v5695
        %v6183 = vpop.f32.mrf.mxu0
        %v6184 = vadd.f32 0.0, %v6183
        %v6185 = vpop.f32.mrf.mxu0
        %v6186 = vpop.f32.mrf.mxu0
        %v6187 = vadd.f32 0.0, %v6186
        %v6188 = vpop.f32.mrf.mxu0
        %6189 = vmatprep.mubr.bf16.mxu0 0
        %6190 = vmatmul.mubr.bf16.gmra.mxu0 %v5698
        %v6191 = vpop.f32.mrf.mxu0
        %v6192 = vadd.f32 0.0, %v6191
        %v6193 = vpop.f32.mrf.mxu0
        %v6194 = vpop.f32.mrf.mxu0
        %v6195 = vadd.f32 0.0, %v6194
        %v6196 = vpop.f32.mrf.mxu0
        %6197 = vmatprep.mubr.bf16.mxu0 0
        %6198 = vmatmul.mubr.bf16.gmra.mxu0 %v5701
        %v6199 = vpop.f32.mrf.mxu0
        %v6200 = vadd.f32 0.0, %v6199
        %v6201 = vpop.f32.mrf.mxu0
        %v6202 = vpop.f32.mrf.mxu0
        %v6203 = vadd.f32 0.0, %v6202
        %v6204 = vpop.f32.mrf.mxu0
        %6205 = vmatprep.mubr.bf16.mxu0 0
        %6206 = vmatmul.mubr.bf16.gmra.mxu0 %v5704
        %v6207 = vpop.f32.mrf.mxu0
        %v6208 = vadd.f32 0.0, %v6207
        %v6209 = vpop.f32.mrf.mxu0
        %v6210 = vpop.f32.mrf.mxu0
        %v6211 = vadd.f32 0.0, %v6210
        %v6212 = vpop.f32.mrf.mxu0
        %6213 = vmatprep.mubr.bf16.mxu0 0
        %6214 = vmatmul.mubr.bf16.gmra.mxu0 %v5707
        %v6215 = vpop.f32.mrf.mxu0
        %v6216 = vadd.f32 0.0, %v6215
        %v6217 = vpop.f32.mrf.mxu0
        %v6218 = vpop.f32.mrf.mxu0
        %v6219 = vadd.f32 0.0, %v6218
        %v6220 = vpop.f32.mrf.mxu0
        %6221 = vmatprep.mubr.bf16.mxu0 0
        %6222 = vmatmul.mubr.bf16.gmra.mxu0 %v5710
        %v6223 = vpop.f32.mrf.mxu0
        %v6224 = vadd.f32 0.0, %v6223
        %v6225 = vpop.f32.mrf.mxu0
        %v6226 = vpop.f32.mrf.mxu0
        %v6227 = vadd.f32 0.0, %v6226
        %v6228 = vpop.f32.mrf.mxu0
        %6229 = vmatprep.mubr.bf16.mxu0 0
        %6230 = vmatmul.mubr.bf16.gmra.mxu0 %v5713
        %v6231 = vpop.f32.mrf.mxu0
        %v6232 = vadd.f32 0.0, %v6231
        %v6233 = vpop.f32.mrf.mxu0
        %v6234 = vpop.f32.mrf.mxu0
        %v6235 = vadd.f32 0.0, %v6234
        %v6236 = vpop.f32.mrf.mxu0
        %6237 = vmatprep.mubr.bf16.mxu0 0
        %6238 = vmatmul.mubr.bf16.gmra.mxu0 %v5716
        %v6239 = vpop.f32.mrf.mxu0
        %v6240 = vadd.f32 0.0, %v6239
        %v6241 = vpop.f32.mrf.mxu0
        %v6242 = vpop.f32.mrf.mxu0
        %v6243 = vadd.f32 0.0, %v6242
        %v6244 = vpop.f32.mrf.mxu0
        %6245 = vmatprep.mubr.bf16.mxu0 0
        %6246 = vmatmul.mubr.bf16.gmra.mxu0 %v5719
        %v6247 = vpop.f32.mrf.mxu0
        %v6248 = vadd.f32 0.0, %v6247
        %v6249 = vpop.f32.mrf.mxu0
        %v6250 = vpop.f32.mrf.mxu0
        %v6251 = vadd.f32 0.0, %v6250
        %v6252 = vpop.f32.mrf.mxu0
        %6253 = vmatprep.mubr.bf16.mxu0 0
        %6254 = vmatmul.mubr.bf16.gmra.mxu0 %v5722
        %v6255 = vpop.f32.mrf.mxu0
        %v6256 = vadd.f32 0.0, %v6255
        %v6257 = vpop.f32.mrf.mxu0
        %v6258 = vpop.f32.mrf.mxu0
        %v6259 = vadd.f32 0.0, %v6258
        %v6260 = vpop.f32.mrf.mxu0
        %6261 = vmatprep.mubr.bf16.mxu0 0
        %6262 = vmatmul.mubr.bf16.gmra.mxu0 %v5725
        %v6263 = vpop.f32.mrf.mxu0
        %v6264 = vadd.f32 0.0, %v6263
        %v6265 = vpop.f32.mrf.mxu0
        %v6266 = vpop.f32.mrf.mxu0
        %v6267 = vadd.f32 0.0, %v6266
        %v6268 = vpop.f32.mrf.mxu0
        %6269 = vmatprep.mubr.bf16.mxu0 0
        %6270 = vmatmul.mubr.bf16.gmra.mxu0 %v5728
        %v6271 = vpop.f32.mrf.mxu0
        %v6272 = vadd.f32 0.0, %v6271
        %v6273 = vpop.f32.mrf.mxu0
        %v6274 = vpop.f32.mrf.mxu0
        %v6275 = vadd.f32 0.0, %v6274
        %v6276 = vpop.f32.mrf.mxu0
        %6277 = vdwg.mxu0
        %v6278 = vadd.f32 %v4571, %v5768
        %v6279 = vadd.f32 %v4574, %v5771
        %v6280 = vadd.f32 %v4579, %v5776
        %v6281 = vadd.f32 %v4582, %v5779
        %v6282 = vadd.f32 %v4587, %v5784
        %v6283 = vadd.f32 %v4590, %v5787
        %v6284 = vadd.f32 %v4595, %v5792
        %v6285 = vadd.f32 %v4598, %v5795
        %v6286 = vadd.f32 %v4603, %v5800
        %v6287 = vadd.f32 %v4606, %v5803
        %v6288 = vadd.f32 %v4611, %v5808
        %v6289 = vadd.f32 %v4614, %v5811
        %v6290 = vadd.f32 %v4619, %v5816
        %v6291 = vadd.f32 %v4622, %v5819
        %v6292 = vadd.f32 %v4627, %v5824
        %v6293 = vadd.f32 %v4630, %v5827
        %v6294 = vadd.f32 %v4635, %v5832
        %v6295 = vadd.f32 %v4638, %v5835
        %v6296 = vadd.f32 %v4643, %v5840
        %v6297 = vadd.f32 %v4646, %v5843
        %v6298 = vadd.f32 %v4651, %v5848
        %v6299 = vadd.f32 %v4654, %v5851
        %v6300 = vadd.f32 %v4659, %v5856
        %v6301 = vadd.f32 %v4662, %v5859
        %v6302 = vadd.f32 %v4667, %v5864
        %v6303 = vadd.f32 %v4670, %v5867
        %v6304 = vadd.f32 %v4675, %v5872
        %v6305 = vadd.f32 %v4678, %v5875
        %v6306 = vadd.f32 %v4683, %v5880
        %v6307 = vadd.f32 %v4686, %v5883
        %v6308 = vadd.f32 %v4691, %v5888
        %v6309 = vadd.f32 %v4694, %v5891
        %v6310 = vadd.f32 %v4699, %v5896
        %v6311 = vadd.f32 %v4702, %v5899
        %v6312 = vadd.f32 %v4707, %v5904
        %v6313 = vadd.f32 %v4710, %v5907
        %v6314 = vadd.f32 %v4715, %v5912
        %v6315 = vadd.f32 %v4718, %v5915
        %v6316 = vadd.f32 %v4723, %v5920
        %v6317 = vadd.f32 %v4726, %v5923
        %v6318 = vadd.f32 %v4731, %v5928
        %v6319 = vadd.f32 %v4734, %v5931
        %v6320 = vadd.f32 %v4739, %v5936
        %v6321 = vadd.f32 %v4742, %v5939
        %v6322 = vadd.f32 %v4747, %v5944
        %v6323 = vadd.f32 %v4750, %v5947
        %v6324 = vadd.f32 %v4755, %v5952
        %v6325 = vadd.f32 %v4758, %v5955
        %v6326 = vadd.f32 %v4763, %v5960
        %v6327 = vadd.f32 %v4766, %v5963
        %v6328 = vadd.f32 %v4771, %v5968
        %v6329 = vadd.f32 %v4774, %v5971
        %v6330 = vadd.f32 %v4779, %v5976
        %v6331 = vadd.f32 %v4782, %v5979
        %v6332 = vadd.f32 %v4787, %v5984
        %v6333 = vadd.f32 %v4790, %v5987
        %v6334 = vadd.f32 %v4795, %v5992
        %v6335 = vadd.f32 %v4798, %v5995
        %v6336 = vadd.f32 %v4803, %v6000
        %v6337 = vadd.f32 %v4806, %v6003
        %v6338 = vadd.f32 %v4811, %v6008
        %v6339 = vadd.f32 %v4814, %v6011
        %v6340 = vadd.f32 %v4819, %v6016
        %v6341 = vadd.f32 %v4822, %v6019
        %v6342 = vadd.f32 %v4827, %v6024
        %v6343 = vadd.f32 %v4830, %v6027
        %v6344 = vadd.f32 %v4835, %v6032
        %v6345 = vadd.f32 %v4838, %v6035
        %v6346 = vadd.f32 %v4843, %v6040
        %v6347 = vadd.f32 %v4846, %v6043
        %v6348 = vadd.f32 %v4851, %v6048
        %v6349 = vadd.f32 %v4854, %v6051
        %v6350 = vadd.f32 %v4859, %v6056
        %v6351 = vadd.f32 %v4862, %v6059
        %v6352 = vadd.f32 %v4867, %v6064
        %v6353 = vadd.f32 %v4870, %v6067
        %v6354 = vadd.f32 %v4875, %v6072
        %v6355 = vadd.f32 %v4878, %v6075
        %v6356 = vadd.f32 %v4883, %v6080
        %v6357 = vadd.f32 %v4886, %v6083
        %v6358 = vadd.f32 %v4891, %v6088
        %v6359 = vadd.f32 %v4894, %v6091
        %v6360 = vadd.f32 %v4899, %v6096
        %v6361 = vadd.f32 %v4902, %v6099
        %v6362 = vadd.f32 %v4907, %v6104
        %v6363 = vadd.f32 %v4910, %v6107
        %v6364 = vadd.f32 %v4915, %v6112
        %v6365 = vadd.f32 %v4918, %v6115
        %v6366 = vadd.f32 %v4923, %v6120
        %v6367 = vadd.f32 %v4926, %v6123
        %v6368 = vadd.f32 %v4931, %v6128
        %v6369 = vadd.f32 %v4934, %v6131
        %v6370 = vadd.f32 %v4939, %v6136
        %v6371 = vadd.f32 %v4942, %v6139
        %v6372 = vadd.f32 %v4947, %v6144
        %v6373 = vadd.f32 %v4950, %v6147
        %v6374 = vadd.f32 %v4955, %v6152
        %v6375 = vadd.f32 %v4958, %v6155
        %v6376 = vadd.f32 %v4963, %v6160
        %v6377 = vadd.f32 %v4966, %v6163
        %v6378 = vadd.f32 %v4971, %v6168
        %v6379 = vadd.f32 %v4974, %v6171
        %v6380 = vadd.f32 %v4979, %v6176
        %v6381 = vadd.f32 %v4982, %v6179
        %v6382 = vadd.f32 %v4987, %v6184
        %v6383 = vadd.f32 %v4990, %v6187
        %v6384 = vadd.f32 %v4995, %v6192
        %v6385 = vadd.f32 %v4998, %v6195
        %v6386 = vadd.f32 %v5003, %v6200
        %v6387 = vadd.f32 %v5006, %v6203
        %v6388 = vadd.f32 %v5011, %v6208
        %v6389 = vadd.f32 %v5014, %v6211
        %v6390 = vadd.f32 %v5019, %v6216
        %v6391 = vadd.f32 %v5022, %v6219
        %v6392 = vadd.f32 %v5027, %v6224
        %v6393 = vadd.f32 %v5030, %v6227
        %v6394 = vadd.f32 %v5035, %v6232
        %v6395 = vadd.f32 %v5038, %v6235
        %v6396 = vadd.f32 %v5043, %v6240
        %v6397 = vadd.f32 %v5046, %v6243
        %v6398 = vadd.f32 %v5051, %v6248
        %v6399 = vadd.f32 %v5054, %v6251
        %v6400 = vadd.f32 %v5059, %v6256
        %v6401 = vadd.f32 %v5062, %v6259
        %v6402 = vadd.f32 %v5067, %v6264
        %v6403 = vadd.f32 %v5070, %v6267
        %v6404 = vadd.f32 %v5075, %v6272
        %v6405 = vadd.f32 %v5078, %v6275
        %v6406 = vld [vmem:[%s251] sm:$0x1]
        %v6408 = vlaneseq
        %v6409 = vshrl.u32 %v6408, 7
        %v6410 = vsub.s32 0, %v6409
        %v6411 = vrot.slane %v6406, %v6410
        %v6413 = vmul.f32 %v6278, %v6411
        %v6414 = vmul.f32 %v6279, %v6411
        %v6415 = vmul.f32 %v6280, %v6411
        %v6416 = vmul.f32 %v6281, %v6411
        %v6417 = vmul.f32 %v6282, %v6411
        %v6418 = vmul.f32 %v6283, %v6411
        %v6419 = vmul.f32 %v6284, %v6411
        %v6420 = vmul.f32 %v6285, %v6411
        %v6421 = vmul.f32 %v6286, %v6411
        %v6422 = vmul.f32 %v6287, %v6411
        %v6423 = vmul.f32 %v6288, %v6411
        %v6424 = vmul.f32 %v6289, %v6411
        %v6425 = vmul.f32 %v6290, %v6411
        %v6426 = vmul.f32 %v6291, %v6411
        %v6427 = vmul.f32 %v6292, %v6411
        %v6428 = vmul.f32 %v6293, %v6411
        %v6429 = vmul.f32 %v6294, %v6411
        %v6430 = vmul.f32 %v6295, %v6411
        %v6431 = vmul.f32 %v6296, %v6411
        %v6432 = vmul.f32 %v6297, %v6411
        %v6433 = vmul.f32 %v6298, %v6411
        %v6434 = vmul.f32 %v6299, %v6411
        %v6435 = vmul.f32 %v6300, %v6411
        %v6436 = vmul.f32 %v6301, %v6411
        %v6437 = vmul.f32 %v6302, %v6411
        %v6438 = vmul.f32 %v6303, %v6411
        %v6439 = vmul.f32 %v6304, %v6411
        %v6440 = vmul.f32 %v6305, %v6411
        %v6441 = vmul.f32 %v6306, %v6411
        %v6442 = vmul.f32 %v6307, %v6411
        %v6443 = vmul.f32 %v6308, %v6411
        %v6444 = vmul.f32 %v6309, %v6411
        %v6445 = vmul.f32 %v6310, %v6411
        %v6446 = vmul.f32 %v6311, %v6411
        %v6447 = vmul.f32 %v6312, %v6411
        %v6448 = vmul.f32 %v6313, %v6411
        %v6449 = vmul.f32 %v6314, %v6411
        %v6450 = vmul.f32 %v6315, %v6411
        %v6451 = vmul.f32 %v6316, %v6411
        %v6452 = vmul.f32 %v6317, %v6411
        %v6453 = vmul.f32 %v6318, %v6411
        %v6454 = vmul.f32 %v6319, %v6411
        %v6455 = vmul.f32 %v6320, %v6411
        %v6456 = vmul.f32 %v6321, %v6411
        %v6457 = vmul.f32 %v6322, %v6411
        %v6458 = vmul.f32 %v6323, %v6411
        %v6459 = vmul.f32 %v6324, %v6411
        %v6460 = vmul.f32 %v6325, %v6411
        %v6461 = vmul.f32 %v6326, %v6411
        %v6462 = vmul.f32 %v6327, %v6411
        %v6463 = vmul.f32 %v6328, %v6411
        %v6464 = vmul.f32 %v6329, %v6411
        %v6465 = vmul.f32 %v6330, %v6411
        %v6466 = vmul.f32 %v6331, %v6411
        %v6467 = vmul.f32 %v6332, %v6411
        %v6468 = vmul.f32 %v6333, %v6411
        %v6469 = vmul.f32 %v6334, %v6411
        %v6470 = vmul.f32 %v6335, %v6411
        %v6471 = vmul.f32 %v6336, %v6411
        %v6472 = vmul.f32 %v6337, %v6411
        %v6473 = vmul.f32 %v6338, %v6411
        %v6474 = vmul.f32 %v6339, %v6411
        %v6475 = vmul.f32 %v6340, %v6411
        %v6476 = vmul.f32 %v6341, %v6411
        %v6477 = vmul.f32 %v6342, %v6411
        %v6478 = vmul.f32 %v6343, %v6411
        %v6479 = vmul.f32 %v6344, %v6411
        %v6480 = vmul.f32 %v6345, %v6411
        %v6481 = vmul.f32 %v6346, %v6411
        %v6482 = vmul.f32 %v6347, %v6411
        %v6483 = vmul.f32 %v6348, %v6411
        %v6484 = vmul.f32 %v6349, %v6411
        %v6485 = vmul.f32 %v6350, %v6411
        %v6486 = vmul.f32 %v6351, %v6411
        %v6487 = vmul.f32 %v6352, %v6411
        %v6488 = vmul.f32 %v6353, %v6411
        %v6489 = vmul.f32 %v6354, %v6411
        %v6490 = vmul.f32 %v6355, %v6411
        %v6491 = vmul.f32 %v6356, %v6411
        %v6492 = vmul.f32 %v6357, %v6411
        %v6493 = vmul.f32 %v6358, %v6411
        %v6494 = vmul.f32 %v6359, %v6411
        %v6495 = vmul.f32 %v6360, %v6411
        %v6496 = vmul.f32 %v6361, %v6411
        %v6497 = vmul.f32 %v6362, %v6411
        %v6498 = vmul.f32 %v6363, %v6411
        %v6499 = vmul.f32 %v6364, %v6411
        %v6500 = vmul.f32 %v6365, %v6411
        %v6501 = vmul.f32 %v6366, %v6411
        %v6502 = vmul.f32 %v6367, %v6411
        %v6503 = vmul.f32 %v6368, %v6411
        %v6504 = vmul.f32 %v6369, %v6411
        %v6505 = vmul.f32 %v6370, %v6411
        %v6506 = vmul.f32 %v6371, %v6411
        %v6507 = vmul.f32 %v6372, %v6411
        %v6508 = vmul.f32 %v6373, %v6411
        %v6509 = vmul.f32 %v6374, %v6411
        %v6510 = vmul.f32 %v6375, %v6411
        %v6511 = vmul.f32 %v6376, %v6411
        %v6512 = vmul.f32 %v6377, %v6411
        %v6513 = vmul.f32 %v6378, %v6411
        %v6514 = vmul.f32 %v6379, %v6411
        %v6515 = vmul.f32 %v6380, %v6411
        %v6516 = vmul.f32 %v6381, %v6411
        %v6517 = vmul.f32 %v6382, %v6411
        %v6518 = vmul.f32 %v6383, %v6411
        %v6519 = vmul.f32 %v6384, %v6411
        %v6520 = vmul.f32 %v6385, %v6411
        %v6521 = vmul.f32 %v6386, %v6411
        %v6522 = vmul.f32 %v6387, %v6411
        %v6523 = vmul.f32 %v6388, %v6411
        %v6524 = vmul.f32 %v6389, %v6411
        %v6525 = vmul.f32 %v6390, %v6411
        %v6526 = vmul.f32 %v6391, %v6411
        %v6527 = vmul.f32 %v6392, %v6411
        %v6528 = vmul.f32 %v6393, %v6411
        %v6529 = vmul.f32 %v6394, %v6411
        %v6530 = vmul.f32 %v6395, %v6411
        %v6531 = vmul.f32 %v6396, %v6411
        %v6532 = vmul.f32 %v6397, %v6411
        %v6533 = vmul.f32 %v6398, %v6411
        %v6534 = vmul.f32 %v6399, %v6411
        %v6535 = vmul.f32 %v6400, %v6411
        %v6536 = vmul.f32 %v6401, %v6411
        %v6537 = vmul.f32 %v6402, %v6411
        %v6538 = vmul.f32 %v6403, %v6411
        %v6539 = vmul.f32 %v6404, %v6411
        %v6540 = vmul.f32 %v6405, %v6411
        %v6541 = vld [vmem:[%s254] sm:$0x1]
        %v6543 = vlaneseq
        %v6544 = vshrl.u32 %v6543, 7
        %v6545 = vsub.s32 0, %v6544
        %v6546 = vrot.slane %v6541, %v6545
        %v6548 = vadd.f32 %v6413, %v6546
        %v6549 = vadd.f32 %v6414, %v6546
        %v6550 = vadd.f32 %v6415, %v6546
        %v6551 = vadd.f32 %v6416, %v6546
        %v6552 = vadd.f32 %v6417, %v6546
        %v6553 = vadd.f32 %v6418, %v6546
        %v6554 = vadd.f32 %v6419, %v6546
        %v6555 = vadd.f32 %v6420, %v6546
        %v6556 = vadd.f32 %v6421, %v6546
        %v6557 = vadd.f32 %v6422, %v6546
        %v6558 = vadd.f32 %v6423, %v6546
        %v6559 = vadd.f32 %v6424, %v6546
        %v6560 = vadd.f32 %v6425, %v6546
        %v6561 = vadd.f32 %v6426, %v6546
        %v6562 = vadd.f32 %v6427, %v6546
        %v6563 = vadd.f32 %v6428, %v6546
        %v6564 = vadd.f32 %v6429, %v6546
        %v6565 = vadd.f32 %v6430, %v6546
        %v6566 = vadd.f32 %v6431, %v6546
        %v6567 = vadd.f32 %v6432, %v6546
        %v6568 = vadd.f32 %v6433, %v6546
        %v6569 = vadd.f32 %v6434, %v6546
        %v6570 = vadd.f32 %v6435, %v6546
        %v6571 = vadd.f32 %v6436, %v6546
        %v6572 = vadd.f32 %v6437, %v6546
        %v6573 = vadd.f32 %v6438, %v6546
        %v6574 = vadd.f32 %v6439, %v6546
        %v6575 = vadd.f32 %v6440, %v6546
        %v6576 = vadd.f32 %v6441, %v6546
        %v6577 = vadd.f32 %v6442, %v6546
        %v6578 = vadd.f32 %v6443, %v6546
        %v6579 = vadd.f32 %v6444, %v6546
        %v6580 = vadd.f32 %v6445, %v6546
        %v6581 = vadd.f32 %v6446, %v6546
        %v6582 = vadd.f32 %v6447, %v6546
        %v6583 = vadd.f32 %v6448, %v6546
        %v6584 = vadd.f32 %v6449, %v6546
        %v6585 = vadd.f32 %v6450, %v6546
        %v6586 = vadd.f32 %v6451, %v6546
        %v6587 = vadd.f32 %v6452, %v6546
        %v6588 = vadd.f32 %v6453, %v6546
        %v6589 = vadd.f32 %v6454, %v6546
        %v6590 = vadd.f32 %v6455, %v6546
        %v6591 = vadd.f32 %v6456, %v6546
        %v6592 = vadd.f32 %v6457, %v6546
        %v6593 = vadd.f32 %v6458, %v6546
        %v6594 = vadd.f32 %v6459, %v6546
        %v6595 = vadd.f32 %v6460, %v6546
        %v6596 = vadd.f32 %v6461, %v6546
        %v6597 = vadd.f32 %v6462, %v6546
        %v6598 = vadd.f32 %v6463, %v6546
        %v6599 = vadd.f32 %v6464, %v6546
        %v6600 = vadd.f32 %v6465, %v6546
        %v6601 = vadd.f32 %v6466, %v6546
        %v6602 = vadd.f32 %v6467, %v6546
        %v6603 = vadd.f32 %v6468, %v6546
        %v6604 = vadd.f32 %v6469, %v6546
        %v6605 = vadd.f32 %v6470, %v6546
        %v6606 = vadd.f32 %v6471, %v6546
        %v6607 = vadd.f32 %v6472, %v6546
        %v6608 = vadd.f32 %v6473, %v6546
        %v6609 = vadd.f32 %v6474, %v6546
        %v6610 = vadd.f32 %v6475, %v6546
        %v6611 = vadd.f32 %v6476, %v6546
        %v6612 = vadd.f32 %v6477, %v6546
        %v6613 = vadd.f32 %v6478, %v6546
        %v6614 = vadd.f32 %v6479, %v6546
        %v6615 = vadd.f32 %v6480, %v6546
        %v6616 = vadd.f32 %v6481, %v6546
        %v6617 = vadd.f32 %v6482, %v6546
        %v6618 = vadd.f32 %v6483, %v6546
        %v6619 = vadd.f32 %v6484, %v6546
        %v6620 = vadd.f32 %v6485, %v6546
        %v6621 = vadd.f32 %v6486, %v6546
        %v6622 = vadd.f32 %v6487, %v6546
        %v6623 = vadd.f32 %v6488, %v6546
        %v6624 = vadd.f32 %v6489, %v6546
        %v6625 = vadd.f32 %v6490, %v6546
        %v6626 = vadd.f32 %v6491, %v6546
        %v6627 = vadd.f32 %v6492, %v6546
        %v6628 = vadd.f32 %v6493, %v6546
        %v6629 = vadd.f32 %v6494, %v6546
        %v6630 = vadd.f32 %v6495, %v6546
        %v6631 = vadd.f32 %v6496, %v6546
        %v6632 = vadd.f32 %v6497, %v6546
        %v6633 = vadd.f32 %v6498, %v6546
        %v6634 = vadd.f32 %v6499, %v6546
        %v6635 = vadd.f32 %v6500, %v6546
        %v6636 = vadd.f32 %v6501, %v6546
        %v6637 = vadd.f32 %v6502, %v6546
        %v6638 = vadd.f32 %v6503, %v6546
        %v6639 = vadd.f32 %v6504, %v6546
        %v6640 = vadd.f32 %v6505, %v6546
        %v6641 = vadd.f32 %v6506, %v6546
        %v6642 = vadd.f32 %v6507, %v6546
        %v6643 = vadd.f32 %v6508, %v6546
        %v6644 = vadd.f32 %v6509, %v6546
        %v6645 = vadd.f32 %v6510, %v6546
        %v6646 = vadd.f32 %v6511, %v6546
        %v6647 = vadd.f32 %v6512, %v6546
        %v6648 = vadd.f32 %v6513, %v6546
        %v6649 = vadd.f32 %v6514, %v6546
        %v6650 = vadd.f32 %v6515, %v6546
        %v6651 = vadd.f32 %v6516, %v6546
        %v6652 = vadd.f32 %v6517, %v6546
        %v6653 = vadd.f32 %v6518, %v6546
        %v6654 = vadd.f32 %v6519, %v6546
        %v6655 = vadd.f32 %v6520, %v6546
        %v6656 = vadd.f32 %v6521, %v6546
        %v6657 = vadd.f32 %v6522, %v6546
        %v6658 = vadd.f32 %v6523, %v6546
        %v6659 = vadd.f32 %v6524, %v6546
        %v6660 = vadd.f32 %v6525, %v6546
        %v6661 = vadd.f32 %v6526, %v6546
        %v6662 = vadd.f32 %v6527, %v6546
        %v6663 = vadd.f32 %v6528, %v6546
        %v6664 = vadd.f32 %v6529, %v6546
        %v6665 = vadd.f32 %v6530, %v6546
        %v6666 = vadd.f32 %v6531, %v6546
        %v6667 = vadd.f32 %v6532, %v6546
        %v6668 = vadd.f32 %v6533, %v6546
        %v6669 = vadd.f32 %v6534, %v6546
        %v6670 = vadd.f32 %v6535, %v6546
        %v6671 = vadd.f32 %v6536, %v6546
        %v6672 = vadd.f32 %v6537, %v6546
        %v6673 = vadd.f32 %v6538, %v6546
        %v6674 = vadd.f32 %v6539, %v6546
        %v6675 = vadd.f32 %v6540, %v6546
        %v6676 = vmax.f32 %v6548, 0.0
        %v6677 = vmax.f32 %v6549, 0.0
        %v6678 = vmax.f32 %v6550, 0.0
        %v6679 = vmax.f32 %v6551, 0.0
        %v6680 = vmax.f32 %v6552, 0.0
        %v6681 = vmax.f32 %v6553, 0.0
        %v6682 = vmax.f32 %v6554, 0.0
        %v6683 = vmax.f32 %v6555, 0.0
        %v6684 = vmax.f32 %v6556, 0.0
        %v6685 = vmax.f32 %v6557, 0.0
        %v6686 = vmax.f32 %v6558, 0.0
        %v6687 = vmax.f32 %v6559, 0.0
        %v6688 = vmax.f32 %v6560, 0.0
        %v6689 = vmax.f32 %v6561, 0.0
        %v6690 = vmax.f32 %v6562, 0.0
        %v6691 = vmax.f32 %v6563, 0.0
        %v6692 = vmax.f32 %v6564, 0.0
        %v6693 = vmax.f32 %v6565, 0.0
        %v6694 = vmax.f32 %v6566, 0.0
        %v6695 = vmax.f32 %v6567, 0.0
        %v6696 = vmax.f32 %v6568, 0.0
        %v6697 = vmax.f32 %v6569, 0.0
        %v6698 = vmax.f32 %v6570, 0.0
        %v6699 = vmax.f32 %v6571, 0.0
        %v6700 = vmax.f32 %v6572, 0.0
        %v6701 = vmax.f32 %v6573, 0.0
        %v6702 = vmax.f32 %v6574, 0.0
        %v6703 = vmax.f32 %v6575, 0.0
        %v6704 = vmax.f32 %v6576, 0.0
        %v6705 = vmax.f32 %v6577, 0.0
        %v6706 = vmax.f32 %v6578, 0.0
        %v6707 = vmax.f32 %v6579, 0.0
        %v6708 = vmax.f32 %v6580, 0.0
        %v6709 = vmax.f32 %v6581, 0.0
        %v6710 = vmax.f32 %v6582, 0.0
        %v6711 = vmax.f32 %v6583, 0.0
        %v6712 = vmax.f32 %v6584, 0.0
        %v6713 = vmax.f32 %v6585, 0.0
        %v6714 = vmax.f32 %v6586, 0.0
        %v6715 = vmax.f32 %v6587, 0.0
        %v6716 = vmax.f32 %v6588, 0.0
        %v6717 = vmax.f32 %v6589, 0.0
        %v6718 = vmax.f32 %v6590, 0.0
        %v6719 = vmax.f32 %v6591, 0.0
        %v6720 = vmax.f32 %v6592, 0.0
        %v6721 = vmax.f32 %v6593, 0.0
        %v6722 = vmax.f32 %v6594, 0.0
        %v6723 = vmax.f32 %v6595, 0.0
        %v6724 = vmax.f32 %v6596, 0.0
        %v6725 = vmax.f32 %v6597, 0.0
        %v6726 = vmax.f32 %v6598, 0.0
        %v6727 = vmax.f32 %v6599, 0.0
        %v6728 = vmax.f32 %v6600, 0.0
        %v6729 = vmax.f32 %v6601, 0.0
        %v6730 = vmax.f32 %v6602, 0.0
        %v6731 = vmax.f32 %v6603, 0.0
        %v6732 = vmax.f32 %v6604, 0.0
        %v6733 = vmax.f32 %v6605, 0.0
        %v6734 = vmax.f32 %v6606, 0.0
        %v6735 = vmax.f32 %v6607, 0.0
        %v6736 = vmax.f32 %v6608, 0.0
        %v6737 = vmax.f32 %v6609, 0.0
        %v6738 = vmax.f32 %v6610, 0.0
        %v6739 = vmax.f32 %v6611, 0.0
        %v6740 = vmax.f32 %v6612, 0.0
        %v6741 = vmax.f32 %v6613, 0.0
        %v6742 = vmax.f32 %v6614, 0.0
        %v6743 = vmax.f32 %v6615, 0.0
        %v6744 = vmax.f32 %v6616, 0.0
        %v6745 = vmax.f32 %v6617, 0.0
        %v6746 = vmax.f32 %v6618, 0.0
        %v6747 = vmax.f32 %v6619, 0.0
        %v6748 = vmax.f32 %v6620, 0.0
        %v6749 = vmax.f32 %v6621, 0.0
        %v6750 = vmax.f32 %v6622, 0.0
        %v6751 = vmax.f32 %v6623, 0.0
        %v6752 = vmax.f32 %v6624, 0.0
        %v6753 = vmax.f32 %v6625, 0.0
        %v6754 = vmax.f32 %v6626, 0.0
        %v6755 = vmax.f32 %v6627, 0.0
        %v6756 = vmax.f32 %v6628, 0.0
        %v6757 = vmax.f32 %v6629, 0.0
        %v6758 = vmax.f32 %v6630, 0.0
        %v6759 = vmax.f32 %v6631, 0.0
        %v6760 = vmax.f32 %v6632, 0.0
        %v6761 = vmax.f32 %v6633, 0.0
        %v6762 = vmax.f32 %v6634, 0.0
        %v6763 = vmax.f32 %v6635, 0.0
        %v6764 = vmax.f32 %v6636, 0.0
        %v6765 = vmax.f32 %v6637, 0.0
        %v6766 = vmax.f32 %v6638, 0.0
        %v6767 = vmax.f32 %v6639, 0.0
        %v6768 = vmax.f32 %v6640, 0.0
        %v6769 = vmax.f32 %v6641, 0.0
        %v6770 = vmax.f32 %v6642, 0.0
        %v6771 = vmax.f32 %v6643, 0.0
        %v6772 = vmax.f32 %v6644, 0.0
        %v6773 = vmax.f32 %v6645, 0.0
        %v6774 = vmax.f32 %v6646, 0.0
        %v6775 = vmax.f32 %v6647, 0.0
        %v6776 = vmax.f32 %v6648, 0.0
        %v6777 = vmax.f32 %v6649, 0.0
        %v6778 = vmax.f32 %v6650, 0.0
        %v6779 = vmax.f32 %v6651, 0.0
        %v6780 = vmax.f32 %v6652, 0.0
        %v6781 = vmax.f32 %v6653, 0.0
        %v6782 = vmax.f32 %v6654, 0.0
        %v6783 = vmax.f32 %v6655, 0.0
        %v6784 = vmax.f32 %v6656, 0.0
        %v6785 = vmax.f32 %v6657, 0.0
        %v6786 = vmax.f32 %v6658, 0.0
        %v6787 = vmax.f32 %v6659, 0.0
        %v6788 = vmax.f32 %v6660, 0.0
        %v6789 = vmax.f32 %v6661, 0.0
        %v6790 = vmax.f32 %v6662, 0.0
        %v6791 = vmax.f32 %v6663, 0.0
        %v6792 = vmax.f32 %v6664, 0.0
        %v6793 = vmax.f32 %v6665, 0.0
        %v6794 = vmax.f32 %v6666, 0.0
        %v6795 = vmax.f32 %v6667, 0.0
        %v6796 = vmax.f32 %v6668, 0.0
        %v6797 = vmax.f32 %v6669, 0.0
        %v6798 = vmax.f32 %v6670, 0.0
        %v6799 = vmax.f32 %v6671, 0.0
        %v6800 = vmax.f32 %v6672, 0.0
        %v6801 = vmax.f32 %v6673, 0.0
        %v6802 = vmax.f32 %v6674, 0.0
        %v6803 = vmax.f32 %v6675, 0.0
        %v6804 = vpack.c.bf16 %v6677, %v6676
        %v6805 = vpack.c.bf16 %v6679, %v6678
        %v6806 = vpack.c.bf16 %v6681, %v6680
        %v6807 = vpack.c.bf16 %v6683, %v6682
        %v6808 = vpack.c.bf16 %v6685, %v6684
        %v6809 = vpack.c.bf16 %v6687, %v6686
        %v6810 = vpack.c.bf16 %v6689, %v6688
        %v6811 = vpack.c.bf16 %v6691, %v6690
        %v6812 = vpack.c.bf16 %v6693, %v6692
        %v6813 = vpack.c.bf16 %v6695, %v6694
        %v6814 = vpack.c.bf16 %v6697, %v6696
        %v6815 = vpack.c.bf16 %v6699, %v6698
        %v6816 = vpack.c.bf16 %v6701, %v6700
        %v6817 = vpack.c.bf16 %v6703, %v6702
        %v6818 = vpack.c.bf16 %v6705, %v6704
        %v6819 = vpack.c.bf16 %v6707, %v6706
        %v6820 = vpack.c.bf16 %v6709, %v6708
        %v6821 = vpack.c.bf16 %v6711, %v6710
        %v6822 = vpack.c.bf16 %v6713, %v6712
        %v6823 = vpack.c.bf16 %v6715, %v6714
        %v6824 = vpack.c.bf16 %v6717, %v6716
        %v6825 = vpack.c.bf16 %v6719, %v6718
        %v6826 = vpack.c.bf16 %v6721, %v6720
        %v6827 = vpack.c.bf16 %v6723, %v6722
        %v6828 = vpack.c.bf16 %v6725, %v6724
        %v6829 = vpack.c.bf16 %v6727, %v6726
        %v6830 = vpack.c.bf16 %v6729, %v6728
        %v6831 = vpack.c.bf16 %v6731, %v6730
        %v6832 = vpack.c.bf16 %v6733, %v6732
        %v6833 = vpack.c.bf16 %v6735, %v6734
        %v6834 = vpack.c.bf16 %v6737, %v6736
        %v6835 = vpack.c.bf16 %v6739, %v6738
        %v6836 = vpack.c.bf16 %v6741, %v6740
        %v6837 = vpack.c.bf16 %v6743, %v6742
        %v6838 = vpack.c.bf16 %v6745, %v6744
        %v6839 = vpack.c.bf16 %v6747, %v6746
        %v6840 = vpack.c.bf16 %v6749, %v6748
        %v6841 = vpack.c.bf16 %v6751, %v6750
        %v6842 = vpack.c.bf16 %v6753, %v6752
        %v6843 = vpack.c.bf16 %v6755, %v6754
        %v6844 = vpack.c.bf16 %v6757, %v6756
        %v6845 = vpack.c.bf16 %v6759, %v6758
        %v6846 = vpack.c.bf16 %v6761, %v6760
        %v6847 = vpack.c.bf16 %v6763, %v6762
        %v6848 = vpack.c.bf16 %v6765, %v6764
        %v6849 = vpack.c.bf16 %v6767, %v6766
        %v6850 = vpack.c.bf16 %v6769, %v6768
        %v6851 = vpack.c.bf16 %v6771, %v6770
        %v6852 = vpack.c.bf16 %v6773, %v6772
        %v6853 = vpack.c.bf16 %v6775, %v6774
        %v6854 = vpack.c.bf16 %v6777, %v6776
        %v6855 = vpack.c.bf16 %v6779, %v6778
        %v6856 = vpack.c.bf16 %v6781, %v6780
        %v6857 = vpack.c.bf16 %v6783, %v6782
        %v6858 = vpack.c.bf16 %v6785, %v6784
        %v6859 = vpack.c.bf16 %v6787, %v6786
        %v6860 = vpack.c.bf16 %v6789, %v6788
        %v6861 = vpack.c.bf16 %v6791, %v6790
        %v6862 = vpack.c.bf16 %v6793, %v6792
        %v6863 = vpack.c.bf16 %v6795, %v6794
        %v6864 = vpack.c.bf16 %v6797, %v6796
        %v6865 = vpack.c.bf16 %v6799, %v6798
        %v6866 = vpack.c.bf16 %v6801, %v6800
        %v6867 = vpack.c.bf16 %v6803, %v6802
        %v6932 = vunpack.c.l.b16 %v6804
        %v6933 = vunpack.c.h.b16 %v6804
        %v6934 = vunpack.c.l.b16 %v6805
        %v6935 = vunpack.c.h.b16 %v6805
        %v6936 = vunpack.c.l.b16 %v6806
        %v6937 = vunpack.c.h.b16 %v6806
        %v6938 = vunpack.c.l.b16 %v6807
        %v6939 = vunpack.c.h.b16 %v6807
        %v6940 = vunpack.c.l.b16 %v6808
        %v6941 = vunpack.c.h.b16 %v6808
        %v6942 = vunpack.c.l.b16 %v6809
        %v6943 = vunpack.c.h.b16 %v6809
        %v6944 = vunpack.c.l.b16 %v6810
        %v6945 = vunpack.c.h.b16 %v6810
        %v6946 = vunpack.c.l.b16 %v6811
        %v6947 = vunpack.c.h.b16 %v6811
        %v6948 = vunpack.c.l.b16 %v6812
        %v6949 = vunpack.c.h.b16 %v6812
        %v6950 = vunpack.c.l.b16 %v6813
        %v6951 = vunpack.c.h.b16 %v6813
        %v6952 = vunpack.c.l.b16 %v6814
        %v6953 = vunpack.c.h.b16 %v6814
        %v6954 = vunpack.c.l.b16 %v6815
        %v6955 = vunpack.c.h.b16 %v6815
        %v6956 = vunpack.c.l.b16 %v6816
        %v6957 = vunpack.c.h.b16 %v6816
        %v6958 = vunpack.c.l.b16 %v6817
        %v6959 = vunpack.c.h.b16 %v6817
        %v6960 = vunpack.c.l.b16 %v6818
        %v6961 = vunpack.c.h.b16 %v6818
        %v6962 = vunpack.c.l.b16 %v6819
        %v6963 = vunpack.c.h.b16 %v6819
        %v6964 = vunpack.c.l.b16 %v6820
        %v6965 = vunpack.c.h.b16 %v6820
        %v6966 = vunpack.c.l.b16 %v6821
        %v6967 = vunpack.c.h.b16 %v6821
        %v6968 = vunpack.c.l.b16 %v6822
        %v6969 = vunpack.c.h.b16 %v6822
        %v6970 = vunpack.c.l.b16 %v6823
        %v6971 = vunpack.c.h.b16 %v6823
        %v6972 = vunpack.c.l.b16 %v6824
        %v6973 = vunpack.c.h.b16 %v6824
        %v6974 = vunpack.c.l.b16 %v6825
        %v6975 = vunpack.c.h.b16 %v6825
        %v6976 = vunpack.c.l.b16 %v6826
        %v6977 = vunpack.c.h.b16 %v6826
        %v6978 = vunpack.c.l.b16 %v6827
        %v6979 = vunpack.c.h.b16 %v6827
        %v6980 = vunpack.c.l.b16 %v6828
        %v6981 = vunpack.c.h.b16 %v6828
        %v6982 = vunpack.c.l.b16 %v6829
        %v6983 = vunpack.c.h.b16 %v6829
        %v6984 = vunpack.c.l.b16 %v6830
        %v6985 = vunpack.c.h.b16 %v6830
        %v6986 = vunpack.c.l.b16 %v6831
        %v6987 = vunpack.c.h.b16 %v6831
        %v6988 = vunpack.c.l.b16 %v6832
        %v6989 = vunpack.c.h.b16 %v6832
        %v6990 = vunpack.c.l.b16 %v6833
        %v6991 = vunpack.c.h.b16 %v6833
        %v6992 = vunpack.c.l.b16 %v6834
        %v6993 = vunpack.c.h.b16 %v6834
        %v6994 = vunpack.c.l.b16 %v6835
        %v6995 = vunpack.c.h.b16 %v6835
        %v6996 = vunpack.c.l.b16 %v6836
        %v6997 = vunpack.c.h.b16 %v6836
        %v6998 = vunpack.c.l.b16 %v6837
        %v6999 = vunpack.c.h.b16 %v6837
        %v7000 = vunpack.c.l.b16 %v6838
        %v7001 = vunpack.c.h.b16 %v6838
        %v7002 = vunpack.c.l.b16 %v6839
        %v7003 = vunpack.c.h.b16 %v6839
        %v7004 = vunpack.c.l.b16 %v6840
        %v7005 = vunpack.c.h.b16 %v6840
        %v7006 = vunpack.c.l.b16 %v6841
        %v7007 = vunpack.c.h.b16 %v6841
        %v7008 = vunpack.c.l.b16 %v6842
        %v7009 = vunpack.c.h.b16 %v6842
        %v7010 = vunpack.c.l.b16 %v6843
        %v7011 = vunpack.c.h.b16 %v6843
        %v7012 = vunpack.c.l.b16 %v6844
        %v7013 = vunpack.c.h.b16 %v6844
        %v7014 = vunpack.c.l.b16 %v6845
        %v7015 = vunpack.c.h.b16 %v6845
        %v7016 = vunpack.c.l.b16 %v6846
        %v7017 = vunpack.c.h.b16 %v6846
        %v7018 = vunpack.c.l.b16 %v6847
        %v7019 = vunpack.c.h.b16 %v6847
        %v7020 = vunpack.c.l.b16 %v6848
        %v7021 = vunpack.c.h.b16 %v6848
        %v7022 = vunpack.c.l.b16 %v6849
        %v7023 = vunpack.c.h.b16 %v6849
        %v7024 = vunpack.c.l.b16 %v6850
        %v7025 = vunpack.c.h.b16 %v6850
        %v7026 = vunpack.c.l.b16 %v6851
        %v7027 = vunpack.c.h.b16 %v6851
        %v7028 = vunpack.c.l.b16 %v6852
        %v7029 = vunpack.c.h.b16 %v6852
        %v7030 = vunpack.c.l.b16 %v6853
        %v7031 = vunpack.c.h.b16 %v6853
        %v7032 = vunpack.c.l.b16 %v6854
        %v7033 = vunpack.c.h.b16 %v6854
        %v7034 = vunpack.c.l.b16 %v6855
        %v7035 = vunpack.c.h.b16 %v6855
        %v7036 = vunpack.c.l.b16 %v6856
        %v7037 = vunpack.c.h.b16 %v6856
        %v7038 = vunpack.c.l.b16 %v6857
        %v7039 = vunpack.c.h.b16 %v6857
        %v7040 = vunpack.c.l.b16 %v6858
        %v7041 = vunpack.c.h.b16 %v6858
        %v7042 = vunpack.c.l.b16 %v6859
        %v7043 = vunpack.c.h.b16 %v6859
        %v7044 = vunpack.c.l.b16 %v6860
        %v7045 = vunpack.c.h.b16 %v6860
        %v7046 = vunpack.c.l.b16 %v6861
        %v7047 = vunpack.c.h.b16 %v6861
        %v7048 = vunpack.c.l.b16 %v6862
        %v7049 = vunpack.c.h.b16 %v6862
        %v7050 = vunpack.c.l.b16 %v6863
        %v7051 = vunpack.c.h.b16 %v6863
        %v7052 = vunpack.c.l.b16 %v6864
        %v7053 = vunpack.c.h.b16 %v6864
        %v7054 = vunpack.c.l.b16 %v6865
        %v7055 = vunpack.c.h.b16 %v6865
        %v7056 = vunpack.c.l.b16 %v6866
        %v7057 = vunpack.c.h.b16 %v6866
        %v7058 = vunpack.c.l.b16 %v6867
        %v7059 = vunpack.c.h.b16 %v6867
        %v7060 = vpack.c.b16 %v6932, %v6932
        %v7061 = vpack.c.b16 %v6933, %v6933
        %v7062 = vpack.c.b16 %v6934, %v6934
        %v7063 = vpack.c.b16 %v6935, %v6935
        %v7064 = vpack.c.b16 %v6936, %v6936
        %v7065 = vpack.c.b16 %v6937, %v6937
        %v7066 = vpack.c.b16 %v6938, %v6938
        %v7067 = vpack.c.b16 %v6939, %v6939
        %v7068 = vpack.c.b16 %v6940, %v6940
        %v7069 = vpack.c.b16 %v6941, %v6941
        %v7070 = vpack.c.b16 %v6942, %v6942
        %v7071 = vpack.c.b16 %v6943, %v6943
        %v7072 = vpack.c.b16 %v6944, %v6944
        %v7073 = vpack.c.b16 %v6945, %v6945
        %v7074 = vpack.c.b16 %v6946, %v6946
        %v7075 = vpack.c.b16 %v6947, %v6947
        %v7076 = vpack.c.b16 %v6948, %v6948
        %v7077 = vpack.c.b16 %v6949, %v6949
        %v7078 = vpack.c.b16 %v6950, %v6950
        %v7079 = vpack.c.b16 %v6951, %v6951
        %v7080 = vpack.c.b16 %v6952, %v6952
        %v7081 = vpack.c.b16 %v6953, %v6953
        %v7082 = vpack.c.b16 %v6954, %v6954
        %v7083 = vpack.c.b16 %v6955, %v6955
        %v7084 = vpack.c.b16 %v6956, %v6956
        %v7085 = vpack.c.b16 %v6957, %v6957
        %v7086 = vpack.c.b16 %v6958, %v6958
        %v7087 = vpack.c.b16 %v6959, %v6959
        %v7088 = vpack.c.b16 %v6960, %v6960
        %v7089 = vpack.c.b16 %v6961, %v6961
        %v7090 = vpack.c.b16 %v6962, %v6962
        %v7091 = vpack.c.b16 %v6963, %v6963
        %v7092 = vpack.c.b16 %v6964, %v6964
        %v7093 = vpack.c.b16 %v6965, %v6965
        %v7094 = vpack.c.b16 %v6966, %v6966
        %v7095 = vpack.c.b16 %v6967, %v6967
        %v7096 = vpack.c.b16 %v6968, %v6968
        %v7097 = vpack.c.b16 %v6969, %v6969
        %v7098 = vpack.c.b16 %v6970, %v6970
        %v7099 = vpack.c.b16 %v6971, %v6971
        %v7100 = vpack.c.b16 %v6972, %v6972
        %v7101 = vpack.c.b16 %v6973, %v6973
        %v7102 = vpack.c.b16 %v6974, %v6974
        %v7103 = vpack.c.b16 %v6975, %v6975
        %v7104 = vpack.c.b16 %v6976, %v6976
        %v7105 = vpack.c.b16 %v6977, %v6977
        %v7106 = vpack.c.b16 %v6978, %v6978
        %v7107 = vpack.c.b16 %v6979, %v6979
        %v7108 = vpack.c.b16 %v6980, %v6980
        %v7109 = vpack.c.b16 %v6981, %v6981
        %v7110 = vpack.c.b16 %v6982, %v6982
        %v7111 = vpack.c.b16 %v6983, %v6983
        %v7112 = vpack.c.b16 %v6984, %v6984
        %v7113 = vpack.c.b16 %v6985, %v6985
        %v7114 = vpack.c.b16 %v6986, %v6986
        %v7115 = vpack.c.b16 %v6987, %v6987
        %v7116 = vpack.c.b16 %v6988, %v6988
        %v7117 = vpack.c.b16 %v6989, %v6989
        %v7118 = vpack.c.b16 %v6990, %v6990
        %v7119 = vpack.c.b16 %v6991, %v6991
        %v7120 = vpack.c.b16 %v6992, %v6992
        %v7121 = vpack.c.b16 %v6993, %v6993
        %v7122 = vpack.c.b16 %v6994, %v6994
        %v7123 = vpack.c.b16 %v6995, %v6995
        %v7124 = vpack.c.b16 %v6996, %v6996
        %v7125 = vpack.c.b16 %v6997, %v6997
        %v7126 = vpack.c.b16 %v6998, %v6998
        %v7127 = vpack.c.b16 %v6999, %v6999
        %v7128 = vpack.c.b16 %v7000, %v7000
        %v7129 = vpack.c.b16 %v7001, %v7001
        %v7130 = vpack.c.b16 %v7002, %v7002
        %v7131 = vpack.c.b16 %v7003, %v7003
        %v7132 = vpack.c.b16 %v7004, %v7004
        %v7133 = vpack.c.b16 %v7005, %v7005
        %v7134 = vpack.c.b16 %v7006, %v7006
        %v7135 = vpack.c.b16 %v7007, %v7007
        %v7136 = vpack.c.b16 %v7008, %v7008
        %v7137 = vpack.c.b16 %v7009, %v7009
        %v7138 = vpack.c.b16 %v7010, %v7010
        %v7139 = vpack.c.b16 %v7011, %v7011
        %v7140 = vpack.c.b16 %v7012, %v7012
        %v7141 = vpack.c.b16 %v7013, %v7013
        %v7142 = vpack.c.b16 %v7014, %v7014
        %v7143 = vpack.c.b16 %v7015, %v7015
        %v7144 = vpack.c.b16 %v7016, %v7016
        %v7145 = vpack.c.b16 %v7017, %v7017
        %v7146 = vpack.c.b16 %v7018, %v7018
        %v7147 = vpack.c.b16 %v7019, %v7019
        %v7148 = vpack.c.b16 %v7020, %v7020
        %v7149 = vpack.c.b16 %v7021, %v7021
        %v7150 = vpack.c.b16 %v7022, %v7022
        %v7151 = vpack.c.b16 %v7023, %v7023
        %v7152 = vpack.c.b16 %v7024, %v7024
        %v7153 = vpack.c.b16 %v7025, %v7025
        %v7154 = vpack.c.b16 %v7026, %v7026
        %v7155 = vpack.c.b16 %v7027, %v7027
        %v7156 = vpack.c.b16 %v7028, %v7028
        %v7157 = vpack.c.b16 %v7029, %v7029
        %v7158 = vpack.c.b16 %v7030, %v7030
        %v7159 = vpack.c.b16 %v7031, %v7031
        %v7160 = vpack.c.b16 %v7032, %v7032
        %v7161 = vpack.c.b16 %v7033, %v7033
        %v7162 = vpack.c.b16 %v7034, %v7034
        %v7163 = vpack.c.b16 %v7035, %v7035
        %v7164 = vpack.c.b16 %v7036, %v7036
        %v7165 = vpack.c.b16 %v7037, %v7037
        %v7166 = vpack.c.b16 %v7038, %v7038
        %v7167 = vpack.c.b16 %v7039, %v7039
        %v7168 = vpack.c.b16 %v7040, %v7040
        %v7169 = vpack.c.b16 %v7041, %v7041
        %v7170 = vpack.c.b16 %v7042, %v7042
        %v7171 = vpack.c.b16 %v7043, %v7043
        %v7172 = vpack.c.b16 %v7044, %v7044
        %v7173 = vpack.c.b16 %v7045, %v7045
        %v7174 = vpack.c.b16 %v7046, %v7046
        %v7175 = vpack.c.b16 %v7047, %v7047
        %v7176 = vpack.c.b16 %v7048, %v7048
        %v7177 = vpack.c.b16 %v7049, %v7049
        %v7178 = vpack.c.b16 %v7050, %v7050
        %v7179 = vpack.c.b16 %v7051, %v7051
        %v7180 = vpack.c.b16 %v7052, %v7052
        %v7181 = vpack.c.b16 %v7053, %v7053
        %v7182 = vpack.c.b16 %v7054, %v7054
        %v7183 = vpack.c.b16 %v7055, %v7055
        %v7184 = vpack.c.b16 %v7056, %v7056
        %v7185 = vpack.c.b16 %v7057, %v7057
        %v7186 = vpack.c.b16 %v7058, %v7058
        %v7187 = vpack.c.b16 %v7059, %v7059
        %vm7316 = vcmask 519168
        %7317 = vst.msk [vmem:[%s239] sm:$0xf] %vm7316, %v7060
        %7318 = vst.msk [vmem:[%s239 + $0x4] sm:$0xf] %vm7316, %v7061
        %7319 = vst.msk [vmem:[%s239 + $0x8] sm:$0xf] %vm7316, %v7062
        %7320 = vst.msk [vmem:[%s239 + $0xc] sm:$0xf] %vm7316, %v7063
        %7321 = vst.msk [vmem:[%s239 + $0x10] sm:$0xf] %vm7316, %v7064
        %7322 = vst.msk [vmem:[%s239 + $0x14] sm:$0xf] %vm7316, %v7065
        %7323 = vst.msk [vmem:[%s239 + $0x18] sm:$0xf] %vm7316, %v7066
        %7324 = vst.msk [vmem:[%s239 + $0x1c] sm:$0xf] %vm7316, %v7067
        %7325 = vst.msk [vmem:[%s239 + $0x20] sm:$0xf] %vm7316, %v7068
        %7326 = vst.msk [vmem:[%s239 + $0x24] sm:$0xf] %vm7316, %v7069
        %7327 = vst.msk [vmem:[%s239 + $0x28] sm:$0xf] %vm7316, %v7070
        %7328 = vst.msk [vmem:[%s239 + $0x2c] sm:$0xf] %vm7316, %v7071
        %7329 = vst.msk [vmem:[%s239 + $0x30] sm:$0xf] %vm7316, %v7072
        %7330 = vst.msk [vmem:[%s239 + $0x34] sm:$0xf] %vm7316, %v7073
        %7331 = vst.msk [vmem:[%s239 + $0x38] sm:$0xf] %vm7316, %v7074
        %7332 = vst.msk [vmem:[%s239 + $0x3c] sm:$0xf] %vm7316, %v7075
        %7333 = vst.msk [vmem:[%s239 + $0x40] sm:$0xf] %vm7316, %v7076
        %7334 = vst.msk [vmem:[%s239 + $0x44] sm:$0xf] %vm7316, %v7077
        %7335 = vst.msk [vmem:[%s239 + $0x48] sm:$0xf] %vm7316, %v7078
        %7336 = vst.msk [vmem:[%s239 + $0x4c] sm:$0xf] %vm7316, %v7079
        %7337 = vst.msk [vmem:[%s239 + $0x50] sm:$0xf] %vm7316, %v7080
        %7338 = vst.msk [vmem:[%s239 + $0x54] sm:$0xf] %vm7316, %v7081
        %7339 = vst.msk [vmem:[%s239 + $0x58] sm:$0xf] %vm7316, %v7082
        %7340 = vst.msk [vmem:[%s239 + $0x5c] sm:$0xf] %vm7316, %v7083
        %7341 = vst.msk [vmem:[%s239 + $0x60] sm:$0xf] %vm7316, %v7084
        %7342 = vst.msk [vmem:[%s239 + $0x64] sm:$0xf] %vm7316, %v7085
        %7343 = vst.msk [vmem:[%s239 + $0x68] sm:$0xf] %vm7316, %v7086
        %7344 = vst.msk [vmem:[%s239 + $0x6c] sm:$0xf] %vm7316, %v7087
        %7345 = vst.msk [vmem:[%s239 + $0x70] sm:$0xf] %vm7316, %v7088
        %7346 = vst.msk [vmem:[%s239 + $0x74] sm:$0xf] %vm7316, %v7089
        %7347 = vst.msk [vmem:[%s239 + $0x78] sm:$0xf] %vm7316, %v7090
        %7348 = vst.msk [vmem:[%s239 + $0x7c] sm:$0xf] %vm7316, %v7091
        %7349 = vst.msk [vmem:[%s239 + $0x80] sm:$0xf] %vm7316, %v7092
        %7350 = vst.msk [vmem:[%s239 + $0x84] sm:$0xf] %vm7316, %v7093
        %7351 = vst.msk [vmem:[%s239 + $0x88] sm:$0xf] %vm7316, %v7094
        %7352 = vst.msk [vmem:[%s239 + $0x8c] sm:$0xf] %vm7316, %v7095
        %7353 = vst.msk [vmem:[%s239 + $0x90] sm:$0xf] %vm7316, %v7096
        %7354 = vst.msk [vmem:[%s239 + $0x94] sm:$0xf] %vm7316, %v7097
        %7355 = vst.msk [vmem:[%s239 + $0x98] sm:$0xf] %vm7316, %v7098
        %7356 = vst.msk [vmem:[%s239 + $0x9c] sm:$0xf] %vm7316, %v7099
        %7357 = vst.msk [vmem:[%s239 + $0xa0] sm:$0xf] %vm7316, %v7100
        %7358 = vst.msk [vmem:[%s239 + $0xa4] sm:$0xf] %vm7316, %v7101
        %7359 = vst.msk [vmem:[%s239 + $0xa8] sm:$0xf] %vm7316, %v7102
        %7360 = vst.msk [vmem:[%s239 + $0xac] sm:$0xf] %vm7316, %v7103
        %7361 = vst.msk [vmem:[%s239 + $0xb0] sm:$0xf] %vm7316, %v7104
        %7362 = vst.msk [vmem:[%s239 + $0xb4] sm:$0xf] %vm7316, %v7105
        %7363 = vst.msk [vmem:[%s239 + $0xb8] sm:$0xf] %vm7316, %v7106
        %7364 = vst.msk [vmem:[%s239 + $0xbc] sm:$0xf] %vm7316, %v7107
        %7365 = vst.msk [vmem:[%s239 + $0xc0] sm:$0xf] %vm7316, %v7108
        %7366 = vst.msk [vmem:[%s239 + $0xc4] sm:$0xf] %vm7316, %v7109
        %7367 = vst.msk [vmem:[%s239 + $0xc8] sm:$0xf] %vm7316, %v7110
        %7368 = vst.msk [vmem:[%s239 + $0xcc] sm:$0xf] %vm7316, %v7111
        %7369 = vst.msk [vmem:[%s239 + $0xd0] sm:$0xf] %vm7316, %v7112
        %7370 = vst.msk [vmem:[%s239 + $0xd4] sm:$0xf] %vm7316, %v7113
        %7371 = vst.msk [vmem:[%s239 + $0xd8] sm:$0xf] %vm7316, %v7114
        %7372 = vst.msk [vmem:[%s239 + $0xdc] sm:$0xf] %vm7316, %v7115
        %7373 = vst.msk [vmem:[%s239 + $0xe0] sm:$0xf] %vm7316, %v7116
        %7374 = vst.msk [vmem:[%s239 + $0xe4] sm:$0xf] %vm7316, %v7117
        %7375 = vst.msk [vmem:[%s239 + $0xe8] sm:$0xf] %vm7316, %v7118
        %7376 = vst.msk [vmem:[%s239 + $0xec] sm:$0xf] %vm7316, %v7119
        %7377 = vst.msk [vmem:[%s239 + $0xf0] sm:$0xf] %vm7316, %v7120
        %7378 = vst.msk [vmem:[%s239 + $0xf4] sm:$0xf] %vm7316, %v7121
        %7379 = vst.msk [vmem:[%s239 + $0xf8] sm:$0xf] %vm7316, %v7122
        %7380 = vst.msk [vmem:[%s239 + $0xfc] sm:$0xf] %vm7316, %v7123
        %7381 = vst.msk [vmem:[%s239 + $0x100] sm:$0xf] %vm7316, %v7124
        %7382 = vst.msk [vmem:[%s239 + $0x104] sm:$0xf] %vm7316, %v7125
        %7383 = vst.msk [vmem:[%s239 + $0x108] sm:$0xf] %vm7316, %v7126
        %7384 = vst.msk [vmem:[%s239 + $0x10c] sm:$0xf] %vm7316, %v7127
        %7385 = vst.msk [vmem:[%s239 + $0x110] sm:$0xf] %vm7316, %v7128
        %7386 = vst.msk [vmem:[%s239 + $0x114] sm:$0xf] %vm7316, %v7129
        %7387 = vst.msk [vmem:[%s239 + $0x118] sm:$0xf] %vm7316, %v7130
        %7388 = vst.msk [vmem:[%s239 + $0x11c] sm:$0xf] %vm7316, %v7131
        %7389 = vst.msk [vmem:[%s239 + $0x120] sm:$0xf] %vm7316, %v7132
        %7390 = vst.msk [vmem:[%s239 + $0x124] sm:$0xf] %vm7316, %v7133
        %7391 = vst.msk [vmem:[%s239 + $0x128] sm:$0xf] %vm7316, %v7134
        %7392 = vst.msk [vmem:[%s239 + $0x12c] sm:$0xf] %vm7316, %v7135
        %7393 = vst.msk [vmem:[%s239 + $0x130] sm:$0xf] %vm7316, %v7136
        %7394 = vst.msk [vmem:[%s239 + $0x134] sm:$0xf] %vm7316, %v7137
        %7395 = vst.msk [vmem:[%s239 + $0x138] sm:$0xf] %vm7316, %v7138
        %7396 = vst.msk [vmem:[%s239 + $0x13c] sm:$0xf] %vm7316, %v7139
        %7397 = vst.msk [vmem:[%s239 + $0x140] sm:$0xf] %vm7316, %v7140
        %7398 = vst.msk [vmem:[%s239 + $0x144] sm:$0xf] %vm7316, %v7141
        %7399 = vst.msk [vmem:[%s239 + $0x148] sm:$0xf] %vm7316, %v7142
        %7400 = vst.msk [vmem:[%s239 + $0x14c] sm:$0xf] %vm7316, %v7143
        %7401 = vst.msk [vmem:[%s239 + $0x150] sm:$0xf] %vm7316, %v7144
        %7402 = vst.msk [vmem:[%s239 + $0x154] sm:$0xf] %vm7316, %v7145
        %7403 = vst.msk [vmem:[%s239 + $0x158] sm:$0xf] %vm7316, %v7146
        %7404 = vst.msk [vmem:[%s239 + $0x15c] sm:$0xf] %vm7316, %v7147
        %7405 = vst.msk [vmem:[%s239 + $0x160] sm:$0xf] %vm7316, %v7148
        %7406 = vst.msk [vmem:[%s239 + $0x164] sm:$0xf] %vm7316, %v7149
        %7407 = vst.msk [vmem:[%s239 + $0x168] sm:$0xf] %vm7316, %v7150
        %7408 = vst.msk [vmem:[%s239 + $0x16c] sm:$0xf] %vm7316, %v7151
        %7409 = vst.msk [vmem:[%s239 + $0x170] sm:$0xf] %vm7316, %v7152
        %7410 = vst.msk [vmem:[%s239 + $0x174] sm:$0xf] %vm7316, %v7153
        %7411 = vst.msk [vmem:[%s239 + $0x178] sm:$0xf] %vm7316, %v7154
        %7412 = vst.msk [vmem:[%s239 + $0x17c] sm:$0xf] %vm7316, %v7155
        %7413 = vst.msk [vmem:[%s239 + $0x180] sm:$0xf] %vm7316, %v7156
        %7414 = vst.msk [vmem:[%s239 + $0x184] sm:$0xf] %vm7316, %v7157
        %7415 = vst.msk [vmem:[%s239 + $0x188] sm:$0xf] %vm7316, %v7158
        %7416 = vst.msk [vmem:[%s239 + $0x18c] sm:$0xf] %vm7316, %v7159
        %7417 = vst.msk [vmem:[%s239 + $0x190] sm:$0xf] %vm7316, %v7160
        %7418 = vst.msk [vmem:[%s239 + $0x194] sm:$0xf] %vm7316, %v7161
        %7419 = vst.msk [vmem:[%s239 + $0x198] sm:$0xf] %vm7316, %v7162
        %7420 = vst.msk [vmem:[%s239 + $0x19c] sm:$0xf] %vm7316, %v7163
        %7421 = vst.msk [vmem:[%s239 + $0x1a0] sm:$0xf] %vm7316, %v7164
        %7422 = vst.msk [vmem:[%s239 + $0x1a4] sm:$0xf] %vm7316, %v7165
        %7423 = vst.msk [vmem:[%s239 + $0x1a8] sm:$0xf] %vm7316, %v7166
        %7424 = vst.msk [vmem:[%s239 + $0x1ac] sm:$0xf] %vm7316, %v7167
        %7425 = vst.msk [vmem:[%s239 + $0x1b0] sm:$0xf] %vm7316, %v7168
        %7426 = vst.msk [vmem:[%s239 + $0x1b4] sm:$0xf] %vm7316, %v7169
        %7427 = vst.msk [vmem:[%s239 + $0x1b8] sm:$0xf] %vm7316, %v7170
        %7428 = vst.msk [vmem:[%s239 + $0x1bc] sm:$0xf] %vm7316, %v7171
        %7429 = vst.msk [vmem:[%s239 + $0x1c0] sm:$0xf] %vm7316, %v7172
        %7430 = vst.msk [vmem:[%s239 + $0x1c4] sm:$0xf] %vm7316, %v7173
        %7431 = vst.msk [vmem:[%s239 + $0x1c8] sm:$0xf] %vm7316, %v7174
        %7432 = vst.msk [vmem:[%s239 + $0x1cc] sm:$0xf] %vm7316, %v7175
        %7433 = vst.msk [vmem:[%s239 + $0x1d0] sm:$0xf] %vm7316, %v7176
        %7434 = vst.msk [vmem:[%s239 + $0x1d4] sm:$0xf] %vm7316, %v7177
        %7435 = vst.msk [vmem:[%s239 + $0x1d8] sm:$0xf] %vm7316, %v7178
        %7436 = vst.msk [vmem:[%s239 + $0x1dc] sm:$0xf] %vm7316, %v7179
        %7437 = vst.msk [vmem:[%s239 + $0x1e0] sm:$0xf] %vm7316, %v7180
        %7438 = vst.msk [vmem:[%s239 + $0x1e4] sm:$0xf] %vm7316, %v7181
        %7439 = vst.msk [vmem:[%s239 + $0x1e8] sm:$0xf] %vm7316, %v7182
        %7440 = vst.msk [vmem:[%s239 + $0x1ec] sm:$0xf] %vm7316, %v7183
        %7441 = vst.msk [vmem:[%s239 + $0x1f0] sm:$0xf] %vm7316, %v7184
        %7442 = vst.msk [vmem:[%s239 + $0x1f4] sm:$0xf] %vm7316, %v7185
        %7443 = vst.msk [vmem:[%s239 + $0x1f8] sm:$0xf] %vm7316, %v7186
        %7444 = vst.msk [vmem:[%s239 + $0x1fc] sm:$0xf] %vm7316, %v7187
        %s7445 = sand.u32 %s144, 1
        %s7446 = scalar_lea.sflag [#allocation4], %s7445
        %s7447 = sand.u32 %s144, 1
        %s7448 = smul.addr %s7447, 512
        %s7449 = scalar_lea.vmem [#allocation3], %s7448
        // Predicated region
        $region41: #{tpu_custom_call.1} parent=35 // pred_check
          %p7450 = pneg %p154
        $region42: #{tpu_custom_call.1} parent=35 // pred_check_branch
          %7452 = sbr.rel (%p7450) target = $region44
        $region43: #{tpu_custom_call.1} parent=35 // pred_region
          %s7454 = ssub.s32 8192, 8192
          %7455 = vsyncadd %s7446, %s7454
          %s7456 = smul.addr %s22, 128
          %s7457 = sadd.s32 %s23, %s7456
          %s7458 = smul.addr %s7457, 64
          %s7459 = scalar_lea.hbm %s4, %s7458
          %s7460 = sshll.u32 %s7449, 4
          %s7461 = int_to_ptr.vmem [resolvable:$true] %s7460
          %7466 = dma.vmem_to_hbm [thread:$0]  %s7461, 8192, %s7459, %s7446, 64, 64, 4
        $region44: #{tpu_custom_call.1} parent=35 // pred_fallthru
          _
      $region36: #{tpu_custom_call.1} parent=5 // pred_fallthru
        _
      %p7467 = scmp.le.s32.totalorder 2, %s13
      // Predicated region
      $region45: #{tpu_custom_call.1} parent=5 // pred_check
        %p7468 = pneg %p7467
      $region46: #{tpu_custom_call.1} parent=5 // pred_check_branch
        %7470 = sbr.rel (%p7468) target = $region48
      $region47: #{tpu_custom_call.1} parent=5 // pred_region
        %s7471 = ssub.s32 %s13, 2
        // Predicated region
        $region49: #{tpu_custom_call.1} parent=47 // pred_check
          %p7472 = pneg %p160
        $region50: #{tpu_custom_call.1} parent=47 // pred_check_branch
          %7474 = sbr.rel (%p7472) target = $region52
        $region51: #{tpu_custom_call.1} parent=47 // pred_region
          %s7475 = sand.u32 %s145, 1
          %s7476 = scalar_lea.sflag [#allocation4], %s7475
          %s7477 = sand.u32 %s145, 1
          %s7478 = smul.addr %s7477, 512
          %s7479 = scalar_lea.vmem [#allocation3], %s7478
          %7480 = dma.done %s7476, 8192
        $region52: #{tpu_custom_call.1} parent=47 // pred_fallthru
          _
      $region48: #{tpu_custom_call.1} parent=5 // pred_fallthru
        _
    $region6: #{tpu_custom_call.1} parent=1 // loop_footer
      %s17 = sadd.s32 1, %s13
    $region7: #{tpu_custom_call.1} parent=1 // loop_footer_branch
      %12 = sbr.rel target = $region3
    $region8: #{tpu_custom_call.1} parent=1 // loop_exit
      _
    %7481 = vsyncpa [#allocation4], 1
    %s7482 = scalar_lea.sflag [#allocation4], 1
    %7483 = vsyncpa %s7482, 1

</llo_original>
